<compile_context>
chip_gen: v7x
topology: tpu7x:2x2x1
jax: 0.10.0
libtpu: 0.0.40
codegen_flags: <defaults>
</compile_context>

<pallas_src>
import functools

import jax
import jax.numpy as jnp
from jax.experimental import pallas as pl
from jax.experimental.pallas import tpu as pltpu

EPS = 1e-5
LANE = 128  # lane width: output channels padded to a multiple of this


# ----------------------------------------------------------------------------
# Fused (conv3x3+BN+ReLU) x2 kernel -- one (TH, W) row tile per grid step
# ----------------------------------------------------------------------------
def _fused_inconv_kernel(rc, xb_ref, xt_ref, xu_ref, w1_ref, s1_ref,
                         w2_ref, s2_ref, o_ref, xk2_ref):
    """
    rc      : python int, rows per in-kernel matmul chunk
    xb_ref  : (1, TH, W, K1) bf16  conv1 im2col rows of this tile (K1 = 9*in_ch)
    xt_ref  : (1, 1,  W, K1) bf16  im2col row just above the tile (clamped)
    xu_ref  : (1, 1,  W, K1) bf16  im2col row just below the tile (clamped)
    w1_ref  : (K1, C)        bf16  conv1 taps * bn1 scale
    s1_ref  : (1, C)         f32   bn1 shift (conv bias folded)
    w2_ref  : (3, 3*C, C)    bf16  conv2 taps * bn2 scale, per ky, K = kx*C + ci
    s2_ref  : (1, C)         f32   bn2 shift (conv bias folded)
    o_ref   : (1, TH, W, C)        output row tile
    xk2_ref : (TH+2, W, 3*C) bf16  scratch: dx-packed conv1 activations (conv2 LHS)
    """
    t = pl.program_id(1)
    nt = pl.num_programs(1)
    TH, W, C = o_ref.shape[1], o_ref.shape[2], o_ref.shape[3]
    K1 = xb_ref.shape[3]
    cdt = xk2_ref.dtype
    s1 = s1_ref[...]
    s2 = s2_ref[...]

    def conv1_rows(xrows):
        # xrows: (R, W, K1) bf16 -> ReLU(xrows @ w1 + shift1): (R, W, C) bf16
        r = xrows.shape[0]
        acc = jnp.dot(xrows.reshape(r * W, K1), w1_ref[...],
                      preferred_element_type=jnp.float32)
        return jnp.maximum(acc + s1, 0.0).reshape(r, W, C).astype(cdt)

    def store_dx_packed(i0, h):
        # h: (R, W, C).  Write rows [i0, i0+R) of the dx-packed conv2 window:
        #   lanes [0,   C)  = h shifted right along W (h[:, c-1]; zero at c=0)
        #   lanes [C,  2C)  = h
        #   lanes [2C, 3C)  = h shifted left  along W (h[:, c+1]; zero at c=W-1)
        # All stores are full-width and 128-lane aligned; the +-1 column shift is
        # realized in-register (XLU) via concatenate with a zero border column.
        r = h.shape[0]
        z = jnp.zeros((r, 1, C), h.dtype)
        xk2_ref[i0:i0 + r, :, 0:C] = jnp.concatenate([z, h[:, :W - 1, :]], axis=1)
        xk2_ref[i0:i0 + r, :, C:2 * C] = h
        xk2_ref[i0:i0 + r, :, 2 * C:3 * C] = jnp.concatenate([h[:, 1:, :], z], axis=1)

    # ---- Phase 1: conv1+BN1+ReLU for rows [-1, TH] of this tile -> xk2 scratch ----
    # Halo rows outside the image are conv2's zero padding: mask the *activation*
    # (native-dtype select, no f32 round trip).
    ht = conv1_rows(xt_ref[0])
    ht = jnp.where(t > 0, ht, jnp.zeros_like(ht))
    store_dx_packed(0, ht)

    for i0 in range(0, TH, rc):                       # body rows, chunked M dim
        store_dx_packed(i0 + 1, conv1_rows(xb_ref[0, i0:i0 + rc]))

    hb = conv1_rows(xu_ref[0])
    hb = jnp.where(t < nt - 1, hb, jnp.zeros_like(hb))
    store_dx_packed(TH + 1, hb)

    # ---- Phase 2: conv2+BN2+ReLU, 3 chained dots with K = 3*C per row chunk ----
    for r0 in range(0, TH, rc):
        acc = jnp.dot(xk2_ref[r0:r0 + rc].reshape(rc * W, 3 * C), w2_ref[0],
                      preferred_element_type=jnp.float32)
        acc = acc + jnp.dot(xk2_ref[r0 + 1:r0 + 1 + rc].reshape(rc * W, 3 * C),
                            w2_ref[1], preferred_element_type=jnp.float32)
        acc = acc + jnp.dot(xk2_ref[r0 + 2:r0 + 2 + rc].reshape(rc * W, 3 * C),
                            w2_ref[2], preferred_element_type=jnp.float32)
        y = jnp.maximum(acc + s2, 0.0)
        o_ref[0, r0:r0 + rc] = y.reshape(rc, W, C).astype(o_ref.dtype)


# ----------------------------------------------------------------------------
# Tiling policy
# ----------------------------------------------------------------------------
def _pick_tile_h(h, target=32):
    """Largest divisor of h that is <= target (row-tile height)."""
    th = 1
    for d in range(1, min(h, target) + 1):
        if h % d == 0:
            th = d
    return th


def _pick_chunk_rows(th, w):
    """Rows per in-kernel matmul chunk: ~128 M rows, at most 8 unrolled chunks."""
    target = max(1, 128 // max(w, 1), -(-th // 8))
    for d in range(1, th + 1):
        if th % d == 0 and d >= target:
            return d
    return th


def fused_conv_bn_relu_x2(xk1, w1k, s1, w2k, s2, *, out_dtype=jnp.float32):
    """xk1: (N,H,W,9*Cin) bf16, w1k: (9*Cin,C) bf16, w2k: (3,3C,C) bf16,
    s1/s2: (1,C) f32  ->  (N,H,W,C) fused double conv output."""
    N, H, W, K1 = xk1.shape
    C = w1k.shape[1]
    TH = _pick_tile_h(H)
    RC = _pick_chunk_rows(TH, W)
    nt = H // TH

    flops = 2 * N * H * W * (K1 * C + 9 * C * C)
    bytes_accessed = int(xk1.size * xk1.dtype.itemsize
                         + w1k.size * 2 + w2k.size * 2 + (s1.size + s2.size) * 4
                         + N * H * W * C * jnp.dtype(out_dtype).itemsize)

    kernel = functools.partial(_fused_inconv_kernel, RC)
    return pl.pallas_call(
        kernel,
        out_shape=jax.ShapeDtypeStruct((N, H, W, C), out_dtype),
        grid=(N, nt),
        in_specs=[
            # body row tile of the conv1 im2col input
            pl.BlockSpec((1, TH, W, K1), lambda n, t: (n, t, 0, 0)),
            # im2col row above the tile (clamped at top; masked in-kernel)
            pl.BlockSpec((1, 1, W, K1),
                         lambda n, t: (n, jnp.maximum(t * TH - 1, 0), 0, 0)),
            # im2col row below the tile (clamped at bottom; masked in-kernel)
            pl.BlockSpec((1, 1, W, K1),
                         lambda n, t: (n, jnp.minimum(t * TH + TH, H - 1), 0, 0)),
            # weights / shifts stay resident (constant index_map)
            pl.BlockSpec((K1, C), lambda n, t: (0, 0)),
            pl.BlockSpec((1, C), lambda n, t: (0, 0)),
            pl.BlockSpec((3, 3 * C, C), lambda n, t: (0, 0, 0)),
            pl.BlockSpec((1, C), lambda n, t: (0, 0)),
        ],
        out_specs=pl.BlockSpec((1, TH, W, C), lambda n, t: (n, t, 0, 0)),
        scratch_shapes=[pltpu.VMEM((TH + 2, W, 3 * C), jnp.bfloat16)],
        compiler_params=pltpu.CompilerParams(
            dimension_semantics=("parallel", "parallel"),
            vmem_limit_bytes=32 * 1024 * 1024),
        cost_estimate=pl.CostEstimate(flops=flops, transcendentals=0,
                                      bytes_accessed=bytes_accessed),
    )(xk1, xk1, xk1, w1k, s1, w2k, s2)


# ----------------------------------------------------------------------------
# Parameter preparation (BN fold into weights + lane padding)
# ----------------------------------------------------------------------------
def _fold_bn(gamma, beta, mean, var, conv_bias):
    # TODO(synk): training-mode BatchNorm (batch statistics) is not implemented;
    # inference-mode running stats are folded into (scale, shift).
    scale = gamma / jnp.sqrt(var + EPS)
    shift = beta + scale * (conv_bias - mean)
    return scale, shift


def _round_up(v, m):
    return (v + m - 1) // m * m


def _im2col3x3(x):
    """(N,H,W,C) -> (N,H,W,9*C), zero 'same' padding, tap index = ky*3+kx."""
    n, h, w, c = x.shape
    xp = jnp.pad(x, ((0, 0), (1, 1), (1, 1), (0, 0)))
    taps = [xp[:, ky:ky + h, kx:kx + w, :] for ky in range(3) for kx in range(3)]
    return jnp.concatenate(taps, axis=-1)


def _prep_conv1(w_oihw, bias, g, b, m, v, cop):
    """(Co,Ci,3,3) -> im2col weights (9*Ci, cop) bf16 with BN scale folded in."""
    co, ci = w_oihw.shape[0], w_oihw.shape[1]
    scale, shift = _fold_bn(g, b, m, v, bias)
    wk = jnp.transpose(w_oihw, (2, 3, 1, 0)).reshape(9 * ci, co) * scale[None, :]
    wk = jnp.pad(wk, ((0, 0), (0, cop - co))).astype(jnp.bfloat16)
    s = jnp.pad(shift, (0, cop - co)).reshape(1, cop).astype(jnp.float32)
    return wk, s


def _prep_conv2(w_oihw, bias, g, b, m, v, cop):
    """(Co,Ci,3,3) -> per-ky weights (3, 3*cop, cop) bf16, K = kx*cop + ci,
    with BN scale folded in."""
    co, ci = w_oihw.shape[0], w_oihw.shape[1]
    scale, shift = _fold_bn(g, b, m, v, bias)
    wt = jnp.transpose(w_oihw, (2, 3, 1, 0)) * scale[None, None, None, :]
    wt = jnp.pad(wt, ((0, 0), (0, 0), (0, cop - ci), (0, cop - co)))
    wk = wt.reshape(3, 3 * cop, cop).astype(jnp.bfloat16)
    s = jnp.pad(shift, (0, cop - co)).reshape(1, cop).astype(jnp.float32)
    return wk, s


# ----------------------------------------------------------------------------
# Full `inconv` forward pass (NCHW in / NCHW out, like PyTorch)
# ----------------------------------------------------------------------------
@jax.jit
def inconv_forward(x_nchw, params):
    out_ch = params["c1_w"].shape[0]
    cop = _round_up(out_ch, LANE)                     # lane-dense channel count

    x = jnp.transpose(x_nchw, (0, 2, 3, 1))           # NHWC
    xk1 = _im2col3x3(x).astype(jnp.bfloat16)          # conv1 im2col (tiny Ci -> K=9*Ci)

    w1k, s1 = _prep_conv1(params["c1_w"], params["c1_b"], params["bn1_g"],
                          params["bn1_b"], params["bn1_m"], params["bn1_v"], cop)
    w2k, s2 = _prep_conv2(params["c2_w"], params["c2_b"], params["bn2_g"],
                          params["bn2_b"], params["bn2_m"], params["bn2_v"], cop)

    y = fused_conv_bn_relu_x2(xk1, w1k, s1, w2k, s2, out_dtype=jnp.float32)

    # TODO(synk): in a full Pallas U-Net keep the lane-padded NHWC layout end-to-end;
    # the slice + transpose below exist only to match PyTorch's NCHW interface.
    y = y[..., :out_ch]
    return jnp.transpose(y, (0, 3, 1, 2))


# ----------------------------------------------------------------------------
# Pure-JAX reference (no Pallas) for correctness checks.
# ----------------------------------------------------------------------------
def inconv_forward_ref(x_nchw, params, match_kernel_dtypes=True):
    x = jnp.transpose(x_nchw, (0, 2, 3, 1))

    def conv_bn_relu(x, w_oihw, bias, g, b, m, v, out_dtype):
        scale, shift = _fold_bn(g, b, m, v, bias)
        w = jnp.transpose(w_oihw, (2, 3, 1, 0)) * scale[None, None, None, :]  # HWIO
        if match_kernel_dtypes:
            x = x.astype(jnp.bfloat16)
            w = w.astype(jnp.bfloat16)
        y = jax.lax.conv_general_dilated(
            x, w, window_strides=(1, 1), padding="SAME",
            dimension_numbers=("NHWC", "HWIO", "NHWC"),
            preferred_element_type=jnp.float32)
        y = jnp.maximum(y + shift, 0.0)
        return y.astype(out_dtype)

    mid_dtype = jnp.bfloat16 if match_kernel_dtypes else jnp.float32
    h = conv_bn_relu(x, params["c1_w"], params["c1_b"], params["bn1_g"],
                     params["bn1_b"], params["bn1_m"], params["bn1_v"], mid_dtype)
    y = conv_bn_relu(h, params["c2_w"], params["c2_b"], params["bn2_g"],
                     params["bn2_b"], params["bn2_m"], params["bn2_v"], jnp.float32)
    return jnp.transpose(y, (0, 3, 1, 2))


def init_params(key, in_ch, out_ch):
    ks = jax.random.split(key, 10)
    p = {}
    p["c1_w"] = 0.1 * jax.random.normal(ks[0], (out_ch, in_ch, 3, 3), jnp.float32)
    p["c1_b"] = 0.1 * jax.random.normal(ks[1], (out_ch,), jnp.float32)
    p["bn1_g"] = 1.0 + 0.1 * jax.random.normal(ks[2], (out_ch,), jnp.float32)
    p["bn1_b"] = 0.1 * jax.random.normal(ks[3], (out_ch,), jnp.float32)
    p["bn1_m"] = 0.05 * jax.random.normal(ks[4], (out_ch,), jnp.float32)
    p["bn1_v"] = 1.0 + 0.1 * jnp.abs(jax.random.normal(ks[5], (out_ch,), jnp.float32))
    p["c2_w"] = 0.1 * jax.random.normal(ks[6], (out_ch, out_ch, 3, 3), jnp.float32)
    p["c2_b"] = 0.1 * jax.random.normal(ks[7], (out_ch,), jnp.float32)
    p["bn2_g"] = 1.0 + 0.1 * jax.random.normal(ks[8], (out_ch,), jnp.float32)
    p["bn2_b"] = 0.1 * jax.random.normal(ks[9], (out_ch,), jnp.float32)
    p["bn2_m"] = jnp.linspace(-0.02, 0.02, out_ch, dtype=jnp.float32)
    p["bn2_v"] = jnp.linspace(0.95, 1.05, out_ch, dtype=jnp.float32)
    return p


if __name__ == "__main__":
    N, in_ch, out_ch = 2, 4, 8
    H = W = 16

    key = jax.random.PRNGKey(0)
    kx_, kp = jax.random.split(key)
    x = jax.random.normal(kx_, (N, in_ch, H, W), jnp.float32)    # NCHW, like PyTorch
    params = init_params(kp, in_ch, out_ch)

    out = jax.block_until_ready(inconv_forward(x, params))
    assert out.shape == (N, out_ch, H, W), out.shape

    # Reference that mirrors the kernel's bf16-MXU-input / f32-accumulate numerics
    # (tolerance covers bf16 rounding of the intermediate under a different f32
    # accumulation order).
    ref = jax.block_until_ready(inconv_forward_ref(x, params, match_kernel_dtypes=True))
    err = float(jnp.max(jnp.abs(out - ref)))
    assert err < 1e-2, f"mismatch vs bf16-matched reference: {err}"

    # Pure-f32 reference (exact inference semantics of the PyTorch module); the
    # loose tolerance only covers the intentional bf16 rounding of MXU inputs.
    ref32 = jax.block_until_ready(inconv_forward_ref(x, params, match_kernel_dtypes=False))
    err32 = float(jnp.max(jnp.abs(out - ref32)))
    assert err32 < 5e-2, f"mismatch vs f32 reference: {err32}"

    print("KERNEL_OK")
</pallas_src>

<mosaic_0001>
module attributes {stable_mosaic.version = 11 : i64} {
  func.func @_fused_inconv_kernel(%arg0: i32, %arg1: i32, %arg2: memref<1x16x16x36xbf16, #tpu.memory_space<vmem>>, %arg3: memref<1x1x16x36xbf16, #tpu.memory_space<vmem>>, %arg4: memref<1x1x16x36xbf16, #tpu.memory_space<vmem>>, %arg5: memref<36x128xbf16, #tpu.memory_space<vmem>>, %arg6: memref<1x128xf32, #tpu.memory_space<vmem>>, %arg7: memref<3x384x128xbf16, #tpu.memory_space<vmem>>, %arg8: memref<1x128xf32, #tpu.memory_space<vmem>>, %arg9: memref<1x16x16x128xf32, #tpu.memory_space<vmem>>, %arg10: memref<18x16x384xbf16, #tpu.memory_space<vmem>>) attributes {dimension_semantics = [#tpu.dimension_semantics<parallel>, #tpu.dimension_semantics<parallel>], iteration_bounds = array<i64: 2, 1>, scalar_prefetch = 0 : i64, scratch_operands = 1 : i64, tpu.core_type = #tpu.core_type<tc>, window_params = [{transform_indices = @transform_0, window_bounds = array<i64: 1, 16, 16, 36>}, {transform_indices = @transform_1, window_bounds = array<i64: 1, 1, 16, 36>}, {transform_indices = @transform_2, window_bounds = array<i64: 1, 1, 16, 36>}, {pipeline_mode = #tpu.pipeline_mode<synchronous>, transform_indices = @transform_3, window_bounds = array<i64: 36, 128>}, {pipeline_mode = #tpu.pipeline_mode<synchronous>, transform_indices = @transform_4, window_bounds = array<i64: 1, 128>}, {pipeline_mode = #tpu.pipeline_mode<synchronous>, transform_indices = @transform_5, window_bounds = array<i64: 3, 384, 128>}, {pipeline_mode = #tpu.pipeline_mode<synchronous>, transform_indices = @transform_6, window_bounds = array<i64: 1, 128>}, {transform_indices = @transform_7, window_bounds = array<i64: 1, 16, 16, 128>}]} {
    %c0 = arith.constant 0 : index
    %c0_0 = arith.constant 0 : index
    %0 = vector.load %arg6[%c0, %c0_0] : memref<1x128xf32, #tpu.memory_space<vmem>>, vector<1x128xf32>
    %c0_1 = arith.constant 0 : index
    %c0_2 = arith.constant 0 : index
    %1 = vector.load %arg8[%c0_1, %c0_2] : memref<1x128xf32, #tpu.memory_space<vmem>>, vector<1x128xf32>
    %c0_3 = arith.constant 0 : index
    %c0_4 = arith.constant 0 : index
    %c0_5 = arith.constant 0 : index
    %c0_6 = arith.constant 0 : index
    %2 = vector.load %arg3[%c0_3, %c0_4, %c0_5, %c0_6] : memref<1x1x16x36xbf16, #tpu.memory_space<vmem>>, vector<1x1x16x36xbf16>
    %3 = vector.shape_cast %2 : vector<1x1x16x36xbf16> to vector<1x16x36xbf16>
    %4 = vector.shape_cast %3 : vector<1x16x36xbf16> to vector<16x36xbf16>
    %c0_7 = arith.constant 0 : index
    %c0_8 = arith.constant 0 : index
    %5 = vector.load %arg5[%c0_7, %c0_8] : memref<36x128xbf16, #tpu.memory_space<vmem>>, vector<36x128xbf16>
    %cst = arith.constant dense<0.000000e+00> : vector<16x128xf32>
    %6 = tpu.matmul %4, %5, %cst {dimension_numbers = #tpu.dot_dimension_numbers<[1], [0], [0], [1], [0, 0, 1, 1], [], []>} : vector<16x36xbf16>, vector<36x128xbf16>, vector<16x128xf32> -> vector<16x128xf32>
    %7 = vector.broadcast %0 : vector<1x128xf32> to vector<16x128xf32>
    %8 = arith.addf %6, %7 : vector<16x128xf32>
    %cst_9 = arith.constant 0.000000e+00 : f32
    %9 = vector.broadcast %cst_9 : f32 to vector<16x128xf32>
    %10 = arith.maximumf %8, %9 : vector<16x128xf32>
    %11 = vector.shape_cast %10 : vector<16x128xf32> to vector<1x16x128xf32>
    %12 = arith.truncf %11 : vector<1x16x128xf32> to vector<1x16x128xbf16>
    %c0_i32 = arith.constant 0 : i32
    %13 = arith.cmpi sgt, %arg1, %c0_i32 : i32
    %cst_10 = arith.constant 0.000000e+00 : bf16
    %14 = vector.broadcast %cst_10 : bf16 to vector<1x16x128xbf16>
    %15 = arith.select %13, %12, %14 : vector<1x16x128xbf16>
    %cst_11 = arith.constant 0.000000e+00 : bf16
    %16 = vector.broadcast %cst_11 : bf16 to vector<1x1x128xbf16>
    %17 = vector.extract_strided_slice %15 {offsets = [0, 0, 0], sizes = [1, 15, 128], strides = [1, 1, 1]} : vector<1x16x128xbf16> to vector<1x15x128xbf16>
    %18 = tpu.concatenate %16, %17 in 1 : vector<1x1x128xbf16>, vector<1x15x128xbf16> -> vector<1x16x128xbf16>
    %c0_12 = arith.constant 0 : index
    %c0_13 = arith.constant 0 : index
    %c0_14 = arith.constant 0 : index
    %19 = vector.load %arg10[%c0_12, %c0_13, %c0_14] : memref<18x16x384xbf16, #tpu.memory_space<vmem>>, vector<1x16x128xbf16>
    tpu.vector_store %arg10[%c0_12, %c0_13, %c0_14], %18 {strides = array<i32>} : memref<18x16x384xbf16, #tpu.memory_space<vmem>>, vector<1x16x128xbf16>,
    %c0_15 = arith.constant 0 : index
    %c0_16 = arith.constant 0 : index
    %c128 = arith.constant 128 : index
    %20 = vector.load %arg10[%c0_15, %c0_16, %c128] : memref<18x16x384xbf16, #tpu.memory_space<vmem>>, vector<1x16x128xbf16>
    tpu.vector_store %arg10[%c0_15, %c0_16, %c128], %15 {strides = array<i32>} : memref<18x16x384xbf16, #tpu.memory_space<vmem>>, vector<1x16x128xbf16>,
    %21 = vector.extract_strided_slice %15 {offsets = [0, 1, 0], sizes = [1, 15, 128], strides = [1, 1, 1]} : vector<1x16x128xbf16> to vector<1x15x128xbf16>
    %22 = tpu.concatenate %21, %16 in 1 : vector<1x15x128xbf16>, vector<1x1x128xbf16> -> vector<1x16x128xbf16>
    %c0_17 = arith.constant 0 : index
    %c0_18 = arith.constant 0 : index
    %c256 = arith.constant 256 : index
    %23 = vector.load %arg10[%c0_17, %c0_18, %c256] : memref<18x16x384xbf16, #tpu.memory_space<vmem>>, vector<1x16x128xbf16>
    tpu.vector_store %arg10[%c0_17, %c0_18, %c256], %22 {strides = array<i32>} : memref<18x16x384xbf16, #tpu.memory_space<vmem>>, vector<1x16x128xbf16>,
    %c0_19 = arith.constant 0 : index
    %c0_20 = arith.constant 0 : index
    %c0_21 = arith.constant 0 : index
    %c0_22 = arith.constant 0 : index
    %24 = vector.load %arg2[%c0_19, %c0_20, %c0_21, %c0_22] : memref<1x16x16x36xbf16, #tpu.memory_space<vmem>>, vector<1x8x16x36xbf16>
    %25 = vector.shape_cast %24 : vector<1x8x16x36xbf16> to vector<8x16x36xbf16>
    %26 = vector.shape_cast %25 : vector<8x16x36xbf16> to vector<128x36xbf16>
    %c0_23 = arith.constant 0 : index
    %c0_24 = arith.constant 0 : index
    %27 = vector.load %arg5[%c0_23, %c0_24] : memref<36x128xbf16, #tpu.memory_space<vmem>>, vector<36x128xbf16>
    %cst_25 = arith.constant dense<0.000000e+00> : vector<128x128xf32>
    %28 = tpu.matmul %26, %27, %cst_25 {dimension_numbers = #tpu.dot_dimension_numbers<[1], [0], [0], [1], [0, 0, 1, 1], [], []>} : vector<128x36xbf16>, vector<36x128xbf16>, vector<128x128xf32> -> vector<128x128xf32>
    %29 = vector.broadcast %0 : vector<1x128xf32> to vector<128x128xf32>
    %30 = arith.addf %28, %29 : vector<128x128xf32>
    %cst_26 = arith.constant 0.000000e+00 : f32
    %31 = vector.broadcast %cst_26 : f32 to vector<128x128xf32>
    %32 = arith.maximumf %30, %31 : vector<128x128xf32>
    %33 = vector.shape_cast %32 : vector<128x128xf32> to vector<8x16x128xf32>
    %34 = arith.truncf %33 : vector<8x16x128xf32> to vector<8x16x128xbf16>
    %cst_27 = arith.constant 0.000000e+00 : bf16
    %35 = vector.broadcast %cst_27 : bf16 to vector<8x1x128xbf16>
    %36 = vector.extract_strided_slice %34 {offsets = [0, 0, 0], sizes = [8, 15, 128], strides = [1, 1, 1]} : vector<8x16x128xbf16> to vector<8x15x128xbf16>
    %37 = tpu.concatenate %35, %36 in 1 : vector<8x1x128xbf16>, vector<8x15x128xbf16> -> vector<8x16x128xbf16>
    %c1 = arith.constant 1 : index
    %c0_28 = arith.constant 0 : index
    %c0_29 = arith.constant 0 : index
    %38 = vector.load %arg10[%c1, %c0_28, %c0_29] : memref<18x16x384xbf16, #tpu.memory_space<vmem>>, vector<8x16x128xbf16>
    tpu.vector_store %arg10[%c1, %c0_28, %c0_29], %37 {strides = array<i32>} : memref<18x16x384xbf16, #tpu.memory_space<vmem>>, vector<8x16x128xbf16>,
    %c1_30 = arith.constant 1 : index
    %c0_31 = arith.constant 0 : index
    %c128_32 = arith.constant 128 : index
    %39 = vector.load %arg10[%c1_30, %c0_31, %c128_32] : memref<18x16x384xbf16, #tpu.memory_space<vmem>>, vector<8x16x128xbf16>
    tpu.vector_store %arg10[%c1_30, %c0_31, %c128_32], %34 {strides = array<i32>} : memref<18x16x384xbf16, #tpu.memory_space<vmem>>, vector<8x16x128xbf16>,
    %40 = vector.extract_strided_slice %34 {offsets = [0, 1, 0], sizes = [8, 15, 128], strides = [1, 1, 1]} : vector<8x16x128xbf16> to vector<8x15x128xbf16>
    %41 = tpu.concatenate %40, %35 in 1 : vector<8x15x128xbf16>, vector<8x1x128xbf16> -> vector<8x16x128xbf16>
    %c1_33 = arith.constant 1 : index
    %c0_34 = arith.constant 0 : index
    %c256_35 = arith.constant 256 : index
    %42 = vector.load %arg10[%c1_33, %c0_34, %c256_35] : memref<18x16x384xbf16, #tpu.memory_space<vmem>>, vector<8x16x128xbf16>
    tpu.vector_store %arg10[%c1_33, %c0_34, %c256_35], %41 {strides = array<i32>} : memref<18x16x384xbf16, #tpu.memory_space<vmem>>, vector<8x16x128xbf16>,
    %c0_36 = arith.constant 0 : index
    %c8 = arith.constant 8 : index
    %c0_37 = arith.constant 0 : index
    %c0_38 = arith.constant 0 : index
    %43 = vector.load %arg2[%c0_36, %c8, %c0_37, %c0_38] : memref<1x16x16x36xbf16, #tpu.memory_space<vmem>>, vector<1x8x16x36xbf16>
    %44 = vector.shape_cast %43 : vector<1x8x16x36xbf16> to vector<8x16x36xbf16>
    %45 = vector.shape_cast %44 : vector<8x16x36xbf16> to vector<128x36xbf16>
    %c0_39 = arith.constant 0 : index
    %c0_40 = arith.constant 0 : index
    %46 = vector.load %arg5[%c0_39, %c0_40] : memref<36x128xbf16, #tpu.memory_space<vmem>>, vector<36x128xbf16>
    %cst_41 = arith.constant dense<0.000000e+00> : vector<128x128xf32>
    %47 = tpu.matmul %45, %46, %cst_41 {dimension_numbers = #tpu.dot_dimension_numbers<[1], [0], [0], [1], [0, 0, 1, 1], [], []>} : vector<128x36xbf16>, vector<36x128xbf16>, vector<128x128xf32> -> vector<128x128xf32>
    %48 = vector.broadcast %0 : vector<1x128xf32> to vector<128x128xf32>
    %49 = arith.addf %47, %48 : vector<128x128xf32>
    %cst_42 = arith.constant 0.000000e+00 : f32
    %50 = vector.broadcast %cst_42 : f32 to vector<128x128xf32>
    %51 = arith.maximumf %49, %50 : vector<128x128xf32>
    %52 = vector.shape_cast %51 : vector<128x128xf32> to vector<8x16x128xf32>
    %53 = arith.truncf %52 : vector<8x16x128xf32> to vector<8x16x128xbf16>
    %cst_43 = arith.constant 0.000000e+00 : bf16
    %54 = vector.broadcast %cst_43 : bf16 to vector<8x1x128xbf16>
    %55 = vector.extract_strided_slice %53 {offsets = [0, 0, 0], sizes = [8, 15, 128], strides = [1, 1, 1]} : vector<8x16x128xbf16> to vector<8x15x128xbf16>
    %56 = tpu.concatenate %54, %55 in 1 : vector<8x1x128xbf16>, vector<8x15x128xbf16> -> vector<8x16x128xbf16>
    %c9 = arith.constant 9 : index
    %c0_44 = arith.constant 0 : index
    %c0_45 = arith.constant 0 : index
    %57 = vector.load %arg10[%c9, %c0_44, %c0_45] : memref<18x16x384xbf16, #tpu.memory_space<vmem>>, vector<8x16x128xbf16>
    tpu.vector_store %arg10[%c9, %c0_44, %c0_45], %56 {strides = array<i32>} : memref<18x16x384xbf16, #tpu.memory_space<vmem>>, vector<8x16x128xbf16>,
    %c9_46 = arith.constant 9 : index
    %c0_47 = arith.constant 0 : index
    %c128_48 = arith.constant 128 : index
    %58 = vector.load %arg10[%c9_46, %c0_47, %c128_48] : memref<18x16x384xbf16, #tpu.memory_space<vmem>>, vector<8x16x128xbf16>
    tpu.vector_store %arg10[%c9_46, %c0_47, %c128_48], %53 {strides = array<i32>} : memref<18x16x384xbf16, #tpu.memory_space<vmem>>, vector<8x16x128xbf16>,
    %59 = vector.extract_strided_slice %53 {offsets = [0, 1, 0], sizes = [8, 15, 128], strides = [1, 1, 1]} : vector<8x16x128xbf16> to vector<8x15x128xbf16>
    %60 = tpu.concatenate %59, %54 in 1 : vector<8x15x128xbf16>, vector<8x1x128xbf16> -> vector<8x16x128xbf16>
    %c9_49 = arith.constant 9 : index
    %c0_50 = arith.constant 0 : index
    %c256_51 = arith.constant 256 : index
    %61 = vector.load %arg10[%c9_49, %c0_50, %c256_51] : memref<18x16x384xbf16, #tpu.memory_space<vmem>>, vector<8x16x128xbf16>
    tpu.vector_store %arg10[%c9_49, %c0_50, %c256_51], %60 {strides = array<i32>} : memref<18x16x384xbf16, #tpu.memory_space<vmem>>, vector<8x16x128xbf16>,
    %c0_52 = arith.constant 0 : index
    %c0_53 = arith.constant 0 : index
    %c0_54 = arith.constant 0 : index
    %c0_55 = arith.constant 0 : index
    %62 = vector.load %arg4[%c0_52, %c0_53, %c0_54, %c0_55] : memref<1x1x16x36xbf16, #tpu.memory_space<vmem>>, vector<1x1x16x36xbf16>
    %63 = vector.shape_cast %62 : vector<1x1x16x36xbf16> to vector<1x16x36xbf16>
    %64 = vector.shape_cast %63 : vector<1x16x36xbf16> to vector<16x36xbf16>
    %c0_56 = arith.constant 0 : index
    %c0_57 = arith.constant 0 : index
    %65 = vector.load %arg5[%c0_56, %c0_57] : memref<36x128xbf16, #tpu.memory_space<vmem>>, vector<36x128xbf16>
    %cst_58 = arith.constant dense<0.000000e+00> : vector<16x128xf32>
    %66 = tpu.matmul %64, %65, %cst_58 {dimension_numbers = #tpu.dot_dimension_numbers<[1], [0], [0], [1], [0, 0, 1, 1], [], []>} : vector<16x36xbf16>, vector<36x128xbf16>, vector<16x128xf32> -> vector<16x128xf32>
    %67 = vector.broadcast %0 : vector<1x128xf32> to vector<16x128xf32>
    %68 = arith.addf %66, %67 : vector<16x128xf32>
    %cst_59 = arith.constant 0.000000e+00 : f32
    %69 = vector.broadcast %cst_59 : f32 to vector<16x128xf32>
    %70 = arith.maximumf %68, %69 : vector<16x128xf32>
    %71 = vector.shape_cast %70 : vector<16x128xf32> to vector<1x16x128xf32>
    %72 = arith.truncf %71 : vector<1x16x128xf32> to vector<1x16x128xbf16>
    %c0_i32_60 = arith.constant 0 : i32
    %73 = arith.cmpi slt, %arg1, %c0_i32_60 : i32
    %cst_61 = arith.constant 0.000000e+00 : bf16
    %74 = vector.broadcast %cst_61 : bf16 to vector<1x16x128xbf16>
    %75 = arith.select %73, %72, %74 : vector<1x16x128xbf16>
    %cst_62 = arith.constant 0.000000e+00 : bf16
    %76 = vector.broadcast %cst_62 : bf16 to vector<1x1x128xbf16>
    %77 = vector.extract_strided_slice %75 {offsets = [0, 0, 0], sizes = [1, 15, 128], strides = [1, 1, 1]} : vector<1x16x128xbf16> to vector<1x15x128xbf16>
    %78 = tpu.concatenate %76, %77 in 1 : vector<1x1x128xbf16>, vector<1x15x128xbf16> -> vector<1x16x128xbf16>
    %c17 = arith.constant 17 : index
    %c0_63 = arith.constant 0 : index
    %c0_64 = arith.constant 0 : index
    %79 = vector.load %arg10[%c17, %c0_63, %c0_64] : memref<18x16x384xbf16, #tpu.memory_space<vmem>>, vector<1x16x128xbf16>
    tpu.vector_store %arg10[%c17, %c0_63, %c0_64], %78 {strides = array<i32>} : memref<18x16x384xbf16, #tpu.memory_space<vmem>>, vector<1x16x128xbf16>,
    %c17_65 = arith.constant 17 : index
    %c0_66 = arith.constant 0 : index
    %c128_67 = arith.constant 128 : index
    %80 = vector.load %arg10[%c17_65, %c0_66, %c128_67] : memref<18x16x384xbf16, #tpu.memory_space<vmem>>, vector<1x16x128xbf16>
    tpu.vector_store %arg10[%c17_65, %c0_66, %c128_67], %75 {strides = array<i32>} : memref<18x16x384xbf16, #tpu.memory_space<vmem>>, vector<1x16x128xbf16>,
    %81 = vector.extract_strided_slice %75 {offsets = [0, 1, 0], sizes = [1, 15, 128], strides = [1, 1, 1]} : vector<1x16x128xbf16> to vector<1x15x128xbf16>
    %82 = tpu.concatenate %81, %76 in 1 : vector<1x15x128xbf16>, vector<1x1x128xbf16> -> vector<1x16x128xbf16>
    %c17_68 = arith.constant 17 : index
    %c0_69 = arith.constant 0 : index
    %c256_70 = arith.constant 256 : index
    %83 = vector.load %arg10[%c17_68, %c0_69, %c256_70] : memref<18x16x384xbf16, #tpu.memory_space<vmem>>, vector<1x16x128xbf16>
    tpu.vector_store %arg10[%c17_68, %c0_69, %c256_70], %82 {strides = array<i32>} : memref<18x16x384xbf16, #tpu.memory_space<vmem>>, vector<1x16x128xbf16>,
    %c0_71 = arith.constant 0 : index
    %c0_72 = arith.constant 0 : index
    %c0_73 = arith.constant 0 : index
    %84 = vector.load %arg10[%c0_71, %c0_72, %c0_73] : memref<18x16x384xbf16, #tpu.memory_space<vmem>>, vector<8x16x384xbf16>
    %85 = vector.shape_cast %84 : vector<8x16x384xbf16> to vector<128x384xbf16>
    %c0_74 = arith.constant 0 : index
    %c0_75 = arith.constant 0 : index
    %c0_76 = arith.constant 0 : index
    %86 = vector.load %arg7[%c0_74, %c0_75, %c0_76] : memref<3x384x128xbf16, #tpu.memory_space<vmem>>, vector<1x384x128xbf16>
    %87 = vector.shape_cast %86 : vector<1x384x128xbf16> to vector<384x128xbf16>
    %cst_77 = arith.constant dense<0.000000e+00> : vector<128x128xf32>
    %88 = tpu.matmul %85, %87, %cst_77 {dimension_numbers = #tpu.dot_dimension_numbers<[1], [0], [0], [1], [0, 0, 1, 1], [], []>} : vector<128x384xbf16>, vector<384x128xbf16>, vector<128x128xf32> -> vector<128x128xf32>
    %c1_78 = arith.constant 1 : index
    %c0_79 = arith.constant 0 : index
    %c0_80 = arith.constant 0 : index
    %89 = vector.load %arg10[%c1_78, %c0_79, %c0_80] : memref<18x16x384xbf16, #tpu.memory_space<vmem>>, vector<8x16x384xbf16>
    %90 = vector.shape_cast %89 : vector<8x16x384xbf16> to vector<128x384xbf16>
    %c1_81 = arith.constant 1 : index
    %c0_82 = arith.constant 0 : index
    %c0_83 = arith.constant 0 : index
    %91 = vector.load %arg7[%c1_81, %c0_82, %c0_83] : memref<3x384x128xbf16, #tpu.memory_space<vmem>>, vector<1x384x128xbf16>
    %92 = vector.shape_cast %91 : vector<1x384x128xbf16> to vector<384x128xbf16>
    %cst_84 = arith.constant dense<0.000000e+00> : vector<128x128xf32>
    %93 = tpu.matmul %90, %92, %cst_84 {dimension_numbers = #tpu.dot_dimension_numbers<[1], [0], [0], [1], [0, 0, 1, 1], [], []>} : vector<128x384xbf16>, vector<384x128xbf16>, vector<128x128xf32> -> vector<128x128xf32>
    %94 = arith.addf %88, %93 : vector<128x128xf32>
    %c2 = arith.constant 2 : index
    %c0_85 = arith.constant 0 : index
    %c0_86 = arith.constant 0 : index
    %95 = vector.load %arg10[%c2, %c0_85, %c0_86] : memref<18x16x384xbf16, #tpu.memory_space<vmem>>, vector<8x16x384xbf16>
    %96 = vector.shape_cast %95 : vector<8x16x384xbf16> to vector<128x384xbf16>
    %c2_87 = arith.constant 2 : index
    %c0_88 = arith.constant 0 : index
    %c0_89 = arith.constant 0 : index
    %97 = vector.load %arg7[%c2_87, %c0_88, %c0_89] : memref<3x384x128xbf16, #tpu.memory_space<vmem>>, vector<1x384x128xbf16>
    %98 = vector.shape_cast %97 : vector<1x384x128xbf16> to vector<384x128xbf16>
    %cst_90 = arith.constant dense<0.000000e+00> : vector<128x128xf32>
    %99 = tpu.matmul %96, %98, %cst_90 {dimension_numbers = #tpu.dot_dimension_numbers<[1], [0], [0], [1], [0, 0, 1, 1], [], []>} : vector<128x384xbf16>, vector<384x128xbf16>, vector<128x128xf32> -> vector<128x128xf32>
    %100 = arith.addf %94, %99 : vector<128x128xf32>
    %101 = vector.broadcast %1 : vector<1x128xf32> to vector<128x128xf32>
    %102 = arith.addf %100, %101 : vector<128x128xf32>
    %cst_91 = arith.constant 0.000000e+00 : f32
    %103 = vector.broadcast %cst_91 : f32 to vector<128x128xf32>
    %104 = arith.maximumf %102, %103 : vector<128x128xf32>
    %105 = vector.shape_cast %104 : vector<128x128xf32> to vector<8x16x128xf32>
    %c0_92 = arith.constant 0 : index
    %c0_93 = arith.constant 0 : index
    %c0_94 = arith.constant 0 : index
    %c0_95 = arith.constant 0 : index
    %106 = vector.load %arg9[%c0_92, %c0_93, %c0_94, %c0_95] : memref<1x16x16x128xf32, #tpu.memory_space<vmem>>, vector<1x8x16x128xf32>
    %107 = vector.shape_cast %106 : vector<1x8x16x128xf32> to vector<8x16x128xf32>
    %108 = vector.shape_cast %105 : vector<8x16x128xf32> to vector<1x8x16x128xf32>
    tpu.vector_store %arg9[%c0_92, %c0_93, %c0_94, %c0_95], %108 {strides = array<i32>} : memref<1x16x16x128xf32, #tpu.memory_space<vmem>>, vector<1x8x16x128xf32>,
    %c8_96 = arith.constant 8 : index
    %c0_97 = arith.constant 0 : index
    %c0_98 = arith.constant 0 : index
    %109 = vector.load %arg10[%c8_96, %c0_97, %c0_98] : memref<18x16x384xbf16, #tpu.memory_space<vmem>>, vector<8x16x384xbf16>
    %110 = vector.shape_cast %109 : vector<8x16x384xbf16> to vector<128x384xbf16>
    %c0_99 = arith.constant 0 : index
    %c0_100 = arith.constant 0 : index
    %c0_101 = arith.constant 0 : index
    %111 = vector.load %arg7[%c0_99, %c0_100, %c0_101] : memref<3x384x128xbf16, #tpu.memory_space<vmem>>, vector<1x384x128xbf16>
    %112 = vector.shape_cast %111 : vector<1x384x128xbf16> to vector<384x128xbf16>
    %cst_102 = arith.constant dense<0.000000e+00> : vector<128x128xf32>
    %113 = tpu.matmul %110, %112, %cst_102 {dimension_numbers = #tpu.dot_dimension_numbers<[1], [0], [0], [1], [0, 0, 1, 1], [], []>} : vector<128x384xbf16>, vector<384x128xbf16>, vector<128x128xf32> -> vector<128x128xf32>
    %c9_103 = arith.constant 9 : index
    %c0_104 = arith.constant 0 : index
    %c0_105 = arith.constant 0 : index
    %114 = vector.load %arg10[%c9_103, %c0_104, %c0_105] : memref<18x16x384xbf16, #tpu.memory_space<vmem>>, vector<8x16x384xbf16>
    %115 = vector.shape_cast %114 : vector<8x16x384xbf16> to vector<128x384xbf16>
    %c1_106 = arith.constant 1 : index
    %c0_107 = arith.constant 0 : index
    %c0_108 = arith.constant 0 : index
    %116 = vector.load %arg7[%c1_106, %c0_107, %c0_108] : memref<3x384x128xbf16, #tpu.memory_space<vmem>>, vector<1x384x128xbf16>
    %117 = vector.shape_cast %116 : vector<1x384x128xbf16> to vector<384x128xbf16>
    %cst_109 = arith.constant dense<0.000000e+00> : vector<128x128xf32>
    %118 = tpu.matmul %115, %117, %cst_109 {dimension_numbers = #tpu.dot_dimension_numbers<[1], [0], [0], [1], [0, 0, 1, 1], [], []>} : vector<128x384xbf16>, vector<384x128xbf16>, vector<128x128xf32> -> vector<128x128xf32>
    %119 = arith.addf %113, %118 : vector<128x128xf32>
    %c10 = arith.constant 10 : index
    %c0_110 = arith.constant 0 : index
    %c0_111 = arith.constant 0 : index
    %120 = vector.load %arg10[%c10, %c0_110, %c0_111] : memref<18x16x384xbf16, #tpu.memory_space<vmem>>, vector<8x16x384xbf16>
    %121 = vector.shape_cast %120 : vector<8x16x384xbf16> to vector<128x384xbf16>
    %c2_112 = arith.constant 2 : index
    %c0_113 = arith.constant 0 : index
    %c0_114 = arith.constant 0 : index
    %122 = vector.load %arg7[%c2_112, %c0_113, %c0_114] : memref<3x384x128xbf16, #tpu.memory_space<vmem>>, vector<1x384x128xbf16>
    %123 = vector.shape_cast %122 : vector<1x384x128xbf16> to vector<384x128xbf16>
    %cst_115 = arith.constant dense<0.000000e+00> : vector<128x128xf32>
    %124 = tpu.matmul %121, %123, %cst_115 {dimension_numbers = #tpu.dot_dimension_numbers<[1], [0], [0], [1], [0, 0, 1, 1], [], []>} : vector<128x384xbf16>, vector<384x128xbf16>, vector<128x128xf32> -> vector<128x128xf32>
    %125 = arith.addf %119, %124 : vector<128x128xf32>
    %126 = vector.broadcast %1 : vector<1x128xf32> to vector<128x128xf32>
    %127 = arith.addf %125, %126 : vector<128x128xf32>
    %cst_116 = arith.constant 0.000000e+00 : f32
    %128 = vector.broadcast %cst_116 : f32 to vector<128x128xf32>
    %129 = arith.maximumf %127, %128 : vector<128x128xf32>
    %130 = vector.shape_cast %129 : vector<128x128xf32> to vector<8x16x128xf32>
    %c0_117 = arith.constant 0 : index
    %c8_118 = arith.constant 8 : index
    %c0_119 = arith.constant 0 : index
    %c0_120 = arith.constant 0 : index
    %131 = vector.load %arg9[%c0_117, %c8_118, %c0_119, %c0_120] : memref<1x16x16x128xf32, #tpu.memory_space<vmem>>, vector<1x8x16x128xf32>
    %132 = vector.shape_cast %131 : vector<1x8x16x128xf32> to vector<8x16x128xf32>
    %133 = vector.shape_cast %130 : vector<8x16x128xf32> to vector<1x8x16x128xf32>
    tpu.vector_store %arg9[%c0_117, %c8_118, %c0_119, %c0_120], %133 {strides = array<i32>} : memref<1x16x16x128xf32, #tpu.memory_space<vmem>>, vector<1x8x16x128xf32>,
    return
  }
  func.func @transform_0(%arg0: i32, %arg1: i32) -> (i32, i32, i32, i32) {
    %c0_i32 = arith.constant 0 : i32
    %c0_i32_0 = arith.constant 0 : i32
    %c0_i32_1 = arith.constant 0 : i32
    return %arg0, %arg1, %c0_i32, %c0_i32_0 : i32, i32, i32, i32
  }
  func.func @transform_1(%arg0: i32, %arg1: i32) -> (i32, i32, i32, i32) {
    %c16_i32 = arith.constant 16 : i32
    %0 = arith.muli %arg1, %c16_i32 : i32
    %c1_i32 = arith.constant 1 : i32
    %1 = arith.subi %0, %c1_i32 : i32
    %c0_i32 = arith.constant 0 : i32
    %2 = arith.maxsi %1, %c0_i32 : i32
    %c0_i32_0 = arith.constant 0 : i32
    %c0_i32_1 = arith.constant 0 : i32
    %c0_i32_2 = arith.constant 0 : i32
    return %arg0, %2, %c0_i32_0, %c0_i32_1 : i32, i32, i32, i32
  }
  func.func @transform_2(%arg0: i32, %arg1: i32) -> (i32, i32, i32, i32) {
    %c16_i32 = arith.constant 16 : i32
    %0 = arith.muli %arg1, %c16_i32 : i32
    %c16_i32_0 = arith.constant 16 : i32
    %1 = arith.addi %0, %c16_i32_0 : i32
    %c15_i32 = arith.constant 15 : i32
    %2 = arith.minsi %1, %c15_i32 : i32
    %c0_i32 = arith.constant 0 : i32
    %c0_i32_1 = arith.constant 0 : i32
    %c0_i32_2 = arith.constant 0 : i32
    return %arg0, %2, %c0_i32, %c0_i32_1 : i32, i32, i32, i32
  }
  func.func @transform_3(%arg0: i32, %arg1: i32) -> (i32, i32) {
    %c0_i32 = arith.constant 0 : i32
    %c0_i32_0 = arith.constant 0 : i32
    %c0_i32_1 = arith.constant 0 : i32
    return %c0_i32, %c0_i32_0 : i32, i32
  }
  func.func @transform_4(%arg0: i32, %arg1: i32) -> (i32, i32) {
    %c0_i32 = arith.constant 0 : i32
    %c0_i32_0 = arith.constant 0 : i32
    %c0_i32_1 = arith.constant 0 : i32
    return %c0_i32, %c0_i32_0 : i32, i32
  }
  func.func @transform_5(%arg0: i32, %arg1: i32) -> (i32, i32, i32) {
    %c0_i32 = arith.constant 0 : i32
    %c0_i32_0 = arith.constant 0 : i32
    %c0_i32_1 = arith.constant 0 : i32
    %c0_i32_2 = arith.constant 0 : i32
    return %c0_i32, %c0_i32_0, %c0_i32_1 : i32, i32, i32
  }
  func.func @transform_6(%arg0: i32, %arg1: i32) -> (i32, i32) {
    %c0_i32 = arith.constant 0 : i32
    %c0_i32_0 = arith.constant 0 : i32
    %c0_i32_1 = arith.constant 0 : i32
    return %c0_i32, %c0_i32_0 : i32, i32
  }
  func.func @transform_7(%arg0: i32, %arg1: i32) -> (i32, i32, i32, i32) {
    %c0_i32 = arith.constant 0 : i32
    %c0_i32_0 = arith.constant 0 : i32
    %c0_i32_1 = arith.constant 0 : i32
    return %arg0, %arg1, %c0_i32, %c0_i32_0 : i32, i32, i32, i32
  }
}

</mosaic_0001>

<llo_original>
// kernel: inconv_forward.1
$region0: #{inconv_forward.1}
  #allocation0 [shape = 'u32[]', space=smem, size = 0x4, offset = 0x4, fixed_abs, tag = 'smem constant byte address 0x4 - core index']
  #allocation1 [shape = 'u32[144,128]{1,0:T(1,128)}', space=vmem, size = 0x12000, scoped, tag = 'internal scratch']
  #allocation2 [shape = 'bf16[18,16,384]{2,1,0:T(16,128)(2,1)}', space=vmem, size = 0x36000, scoped, tag = 'scratch operand']
  %s0 = inlined_call_operand.vmem [shape: bf16[2,16,16,36], index: 0, kind: input, shape index: {}, may-alias: {0,1,2}]
  %s1 = inlined_call_operand.vmem [shape: bf16[2,16,16,36], index: 1, kind: input, shape index: {}, may-alias: {0,1,2}]
  %s2 = inlined_call_operand.vmem [shape: bf16[2,16,16,36], index: 2, kind: input, shape index: {}, may-alias: {0,1,2}]
  %s3 = inlined_call_operand.vmem [shape: bf16[36,128], index: 3, kind: input, shape index: {}]
  %s4 = inlined_call_operand.vmem [shape: f32[1,128], index: 4, kind: input, shape index: {}]
  %s5 = inlined_call_operand.vmem [shape: bf16[3,384,128], index: 5, kind: input, shape index: {}]
  %s6 = inlined_call_operand.vmem [shape: f32[1,128], index: 6, kind: input, shape index: {}]
  %s7 = inlined_call_operand.vmem [shape: f32[2,16,16,128], index: 7, kind: output, shape index: {}]
  %s8 = sld [smem:[#allocation0]]
  $region61: #{inconv_forward.1} parent=0
    _
  %s10 = ssub.s32 1, %s8
  %s11 = scalar_select 0, %s10, %s8
  loop: start=0, step=1, limit=4
  $region2: #{inconv_forward.1} parent=0 // loop_pre_header
    _
  $region3: #{inconv_forward.1} parent=0 // loop_header
    %s13 = sphi 0, %s17
    %p14 = scmp.ge.s32.totalorder %s13, 4
    %s20 = sphi 0, %s32
    %s21 = sphi 0, %s28
    %s22 = sphi 0, %s20
    %s23 = sphi 0, %s21
    %s24 = sphi 0, %s22
    %s25 = sphi 0, %s23
    %s37 = sphi 0, %s39
    %s40 = sphi 0, %s37
    %s41 = sphi 0, %s40
    %s57 = sphi 0, %s41
    %s73 = sphi 0, %s75
    %s76 = sphi 0, %s73
    %s77 = sphi 0, %s76
    %s93 = sphi 0, %s77
    %s109 = sphi 0, %s111
    %s112 = sphi 0, %s109
    %s113 = sphi 0, %s112
    %s129 = sphi 0, %s113
    %s133 = sphi 0, %s133
    %s135 = sphi 0, %s133
    %s136 = sphi 0, %s135
    %s150 = sphi 0, %s136
    %s154 = sphi 0, %s154
    %s156 = sphi 0, %s154
    %s157 = sphi 0, %s156
    %s171 = sphi 0, %s157
    %s175 = sphi 0, %s175
    %s177 = sphi 0, %s175
    %s178 = sphi 0, %s177
    %s192 = sphi 0, %s178
    %s196 = sphi 0, %s196
    %s198 = sphi 0, %s196
    %s199 = sphi 0, %s198
    %s213 = sphi 0, %s199
    %s221 = sphi 0, %s223
    %s224 = sphi 0, %s221
    %s225 = sphi 0, %s224
    %s241 = sphi 0, %s225
  $region4: #{inconv_forward.1} parent=0 // loop_header_branch
    %16 = sbr.rel (%p14) target = $region8
  $region5: #{inconv_forward.1} parent=0 // loop_body
    %s18 = ssub.s32 %s13, 1
    %s19 = ssub.s32 %s13, 2
    %s26 = sadd.s32 1, %s21
    %p27 = scmp.ge.s32.totalorder %s26, 1
    %s28 = scalar_select %p27, 0, %s26
    %s29 = sadd.s32 1, %s20
    %s30 = scalar_select %p27, %s29, %s20
    %p31 = scmp.ge.s32.totalorder %s30, 2
    %s32 = scalar_select %p31, 0, %s30
    %s33 = ssub.s32 %s20, %s32
    %s34 = ssub.s32 %s21, %s28
    %s35 = sor.u32 %s33, %s34
    %p36 = scmp.eq.s32.totalorder %s35, 0
    %s38 = sadd.s32 %s37, 1
    %s39 = scalar_select %p36, %s37, %s38
    %p42 = pneg %p36
    %p43 = scmp.eq.s32.totalorder %s13, 1
    %p44 = por %p42, %p43
    %p45 = scmp.ne.s32.totalorder %s37, %s40
    %p46 = scmp.eq.s32.totalorder %s13, 0
    %p47 = por %p45, %p46
    %p48 = scmp.ne.s32.totalorder %s37, %s40
    %p49 = scmp.eq.s32.totalorder %s18, 1
    %p50 = por %p48, %p49
    %p51 = scmp.ne.s32.totalorder %s40, %s41
    %p52 = scmp.eq.s32.totalorder %s18, 0
    %p53 = por %p51, %p52
    %p54 = scmp.ne.s32.totalorder %s40, %s41
    %p55 = scmp.eq.s32.totalorder %s19, 1
    %p56 = por %p54, %p55
    %p58 = scmp.ne.s32.totalorder %s41, %s57
    %p59 = scmp.eq.s32.totalorder %s19, 0
    %p60 = por %p58, %p59
    %s61 = smul.u32 %s21, 16
    %s62 = ssub.s32 %s61, 1
    %p63 = scmp.gt.s32.totalorder %s62, 0
    %s64 = scalar_select %p63, %s62, 0
    %s65 = smul.u32 %s28, 16
    %s66 = ssub.s32 %s65, 1
    %p67 = scmp.gt.s32.totalorder %s66, 0
    %s68 = scalar_select %p67, %s66, 0
    %s69 = ssub.s32 %s20, %s32
    %s70 = ssub.s32 %s64, %s68
    %s71 = sor.u32 %s69, %s70
    %p72 = scmp.eq.s32.totalorder %s71, 0
    %s74 = sadd.s32 %s73, 1
    %s75 = scalar_select %p72, %s73, %s74
    %p78 = pneg %p72
    %p79 = scmp.eq.s32.totalorder %s13, 1
    %p80 = por %p78, %p79
    %p81 = scmp.ne.s32.totalorder %s73, %s76
    %p82 = scmp.eq.s32.totalorder %s13, 0
    %p83 = por %p81, %p82
    %p84 = scmp.ne.s32.totalorder %s73, %s76
    %p85 = scmp.eq.s32.totalorder %s18, 1
    %p86 = por %p84, %p85
    %p87 = scmp.ne.s32.totalorder %s76, %s77
    %p88 = scmp.eq.s32.totalorder %s18, 0
    %p89 = por %p87, %p88
    %p90 = scmp.ne.s32.totalorder %s76, %s77
    %p91 = scmp.eq.s32.totalorder %s19, 1
    %p92 = por %p90, %p91
    %p94 = scmp.ne.s32.totalorder %s77, %s93
    %p95 = scmp.eq.s32.totalorder %s19, 0
    %p96 = por %p94, %p95
    %s97 = smul.u32 %s21, 16
    %s98 = sadd.s32 %s97, 16
    %p99 = scmp.lt.s32.totalorder %s98, 15
    %s100 = scalar_select %p99, %s98, 15
    %s101 = smul.u32 %s28, 16
    %s102 = sadd.s32 %s101, 16
    %p103 = scmp.lt.s32.totalorder %s102, 15
    %s104 = scalar_select %p103, %s102, 15
    %s105 = ssub.s32 %s20, %s32
    %s106 = ssub.s32 %s100, %s104
    %s107 = sor.u32 %s105, %s106
    %p108 = scmp.eq.s32.totalorder %s107, 0
    %s110 = sadd.s32 %s109, 1
    %s111 = scalar_select %p108, %s109, %s110
    %p114 = pneg %p108
    %p115 = scmp.eq.s32.totalorder %s13, 1
    %p116 = por %p114, %p115
    %p117 = scmp.ne.s32.totalorder %s109, %s112
    %p118 = scmp.eq.s32.totalorder %s13, 0
    %p119 = por %p117, %p118
    %p120 = scmp.ne.s32.totalorder %s109, %s112
    %p121 = scmp.eq.s32.totalorder %s18, 1
    %p122 = por %p120, %p121
    %p123 = scmp.ne.s32.totalorder %s112, %s113
    %p124 = scmp.eq.s32.totalorder %s18, 0
    %p125 = por %p123, %p124
    %p126 = scmp.ne.s32.totalorder %s112, %s113
    %p127 = scmp.eq.s32.totalorder %s19, 1
    %p128 = por %p126, %p127
    %p130 = scmp.ne.s32.totalorder %s113, %s129
    %p131 = scmp.eq.s32.totalorder %s19, 0
    %p132 = por %p130, %p131
    %s134 = sadd.s32 %s133, 1
    %p137 = scmp.eq.s32.totalorder %s13, 1
    %p138 = scmp.ne.s32.totalorder %s133, %s135
    %p139 = scmp.eq.s32.totalorder %s13, 0
    %p140 = por %p138, %p139
    %p141 = scmp.ne.s32.totalorder %s133, %s135
    %p142 = scmp.eq.s32.totalorder %s18, 1
    %p143 = por %p141, %p142
    %p144 = scmp.ne.s32.totalorder %s135, %s136
    %p145 = scmp.eq.s32.totalorder %s18, 0
    %p146 = por %p144, %p145
    %p147 = scmp.ne.s32.totalorder %s135, %s136
    %p148 = scmp.eq.s32.totalorder %s19, 1
    %p149 = por %p147, %p148
    %p151 = scmp.ne.s32.totalorder %s136, %s150
    %p152 = scmp.eq.s32.totalorder %s19, 0
    %p153 = por %p151, %p152
    %s155 = sadd.s32 %s154, 1
    %p158 = scmp.eq.s32.totalorder %s13, 1
    %p159 = scmp.ne.s32.totalorder %s154, %s156
    %p160 = scmp.eq.s32.totalorder %s13, 0
    %p161 = por %p159, %p160
    %p162 = scmp.ne.s32.totalorder %s154, %s156
    %p163 = scmp.eq.s32.totalorder %s18, 1
    %p164 = por %p162, %p163
    %p165 = scmp.ne.s32.totalorder %s156, %s157
    %p166 = scmp.eq.s32.totalorder %s18, 0
    %p167 = por %p165, %p166
    %p168 = scmp.ne.s32.totalorder %s156, %s157
    %p169 = scmp.eq.s32.totalorder %s19, 1
    %p170 = por %p168, %p169
    %p172 = scmp.ne.s32.totalorder %s157, %s171
    %p173 = scmp.eq.s32.totalorder %s19, 0
    %p174 = por %p172, %p173
    %s176 = sadd.s32 %s175, 1
    %p179 = scmp.eq.s32.totalorder %s13, 1
    %p180 = scmp.ne.s32.totalorder %s175, %s177
    %p181 = scmp.eq.s32.totalorder %s13, 0
    %p182 = por %p180, %p181
    %p183 = scmp.ne.s32.totalorder %s175, %s177
    %p184 = scmp.eq.s32.totalorder %s18, 1
    %p185 = por %p183, %p184
    %p186 = scmp.ne.s32.totalorder %s177, %s178
    %p187 = scmp.eq.s32.totalorder %s18, 0
    %p188 = por %p186, %p187
    %p189 = scmp.ne.s32.totalorder %s177, %s178
    %p190 = scmp.eq.s32.totalorder %s19, 1
    %p191 = por %p189, %p190
    %p193 = scmp.ne.s32.totalorder %s178, %s192
    %p194 = scmp.eq.s32.totalorder %s19, 0
    %p195 = por %p193, %p194
    %s197 = sadd.s32 %s196, 1
    %p200 = scmp.eq.s32.totalorder %s13, 1
    %p201 = scmp.ne.s32.totalorder %s196, %s198
    %p202 = scmp.eq.s32.totalorder %s13, 0
    %p203 = por %p201, %p202
    %p204 = scmp.ne.s32.totalorder %s196, %s198
    %p205 = scmp.eq.s32.totalorder %s18, 1
    %p206 = por %p204, %p205
    %p207 = scmp.ne.s32.totalorder %s198, %s199
    %p208 = scmp.eq.s32.totalorder %s18, 0
    %p209 = por %p207, %p208
    %p210 = scmp.ne.s32.totalorder %s198, %s199
    %p211 = scmp.eq.s32.totalorder %s19, 1
    %p212 = por %p210, %p211
    %p214 = scmp.ne.s32.totalorder %s199, %s213
    %p215 = scmp.eq.s32.totalorder %s19, 0
    %p216 = por %p214, %p215
    %s217 = ssub.s32 %s20, %s32
    %s218 = ssub.s32 %s21, %s28
    %s219 = sor.u32 %s217, %s218
    %p220 = scmp.eq.s32.totalorder %s219, 0
    %s222 = sadd.s32 %s221, 1
    %s223 = scalar_select %p220, %s221, %s222
    %p226 = pneg %p220
    %p227 = scmp.eq.s32.totalorder %s13, 1
    %p228 = por %p226, %p227
    %p229 = scmp.ne.s32.totalorder %s221, %s224
    %p230 = scmp.eq.s32.totalorder %s13, 0
    %p231 = por %p229, %p230
    %p232 = scmp.ne.s32.totalorder %s221, %s224
    %p233 = scmp.eq.s32.totalorder %s18, 1
    %p234 = por %p232, %p233
    %p235 = scmp.ne.s32.totalorder %s224, %s225
    %p236 = scmp.eq.s32.totalorder %s18, 0
    %p237 = por %p235, %p236
    %p238 = scmp.ne.s32.totalorder %s224, %s225
    %p239 = scmp.eq.s32.totalorder %s19, 1
    %p240 = por %p238, %p239
    %p242 = scmp.ne.s32.totalorder %s225, %s241
    %p243 = scmp.eq.s32.totalorder %s19, 0
    %p244 = por %p242, %p243
    %p245 = scmp.le.s32.totalorder 1, %s13
    %p246 = scmp.lt.s32.totalorder %s13, 3
    %p247 = pnand %p245, %p246
    %p248 = pneg %p247
    // Predicated region
    $region9: #{inconv_forward.1} parent=5 // pred_check
      _
    $region10: #{inconv_forward.1} parent=5 // pred_check_branch
      %250 = sbr.rel (%p247) target = $region12
    $region11: #{inconv_forward.1} parent=5 // pred_region
      %s251 = ssub.s32 %s13, 1
      // Predicated region
      $region13: #{inconv_forward.1} parent=11 // pred_check
        %p252 = pneg %p146
      $region14: #{inconv_forward.1} parent=11 // pred_check_branch
        %254 = sbr.rel (%p252) target = $region16
      $region15: #{inconv_forward.1} parent=11 // pred_region
        _
      $region16: #{inconv_forward.1} parent=11 // pred_fallthru
        _
      // Predicated region
      $region17: #{inconv_forward.1} parent=11 // pred_check
        %p255 = pneg %p167
      $region18: #{inconv_forward.1} parent=11 // pred_check_branch
        %257 = sbr.rel (%p255) target = $region20
      $region19: #{inconv_forward.1} parent=11 // pred_region
        _
      $region20: #{inconv_forward.1} parent=11 // pred_fallthru
        _
      // Predicated region
      $region21: #{inconv_forward.1} parent=11 // pred_check
        %p258 = pneg %p188
      $region22: #{inconv_forward.1} parent=11 // pred_check_branch
        %260 = sbr.rel (%p258) target = $region24
      $region23: #{inconv_forward.1} parent=11 // pred_region
        _
      $region24: #{inconv_forward.1} parent=11 // pred_fallthru
        _
      // Predicated region
      $region25: #{inconv_forward.1} parent=11 // pred_check
        %p261 = pneg %p209
      $region26: #{inconv_forward.1} parent=11 // pred_check_branch
        %263 = sbr.rel (%p261) target = $region28
      $region27: #{inconv_forward.1} parent=11 // pred_region
        _
      $region28: #{inconv_forward.1} parent=11 // pred_fallthru
        _
    $region12: #{inconv_forward.1} parent=5 // pred_fallthru
      _
    %p264 = scmp.lt.s32.totalorder %s13, 2
    // Predicated region
    $region29: #{inconv_forward.1} parent=5 // pred_check
      %p265 = pneg %p264
    $region30: #{inconv_forward.1} parent=5 // pred_check_branch
      %267 = sbr.rel (%p265) target = $region32
    $region31: #{inconv_forward.1} parent=5 // pred_region
      // Predicated region
      $region33: #{inconv_forward.1} parent=31 // pred_check
        %p268 = pneg %p47
      $region34: #{inconv_forward.1} parent=31 // pred_check_branch
        %270 = sbr.rel (%p268) target = $region36
      $region35: #{inconv_forward.1} parent=31 // pred_region
        %s271 = smul.u32 16, %s21
        %p272 = scmp.lt.s32.totalorder %s20, 1
        %s273 = scalar_select %p272, %s20, 1
        %p274 = scmp.lt.s32.totalorder %s271, 15
        %s275 = scalar_select %p274, %s271, 15
        %s276 = smul.addr %s275, 2
        %s277 = smul.addr %s273, 32
        %s278 = sadd.s32 %s276, %s277
        %s279 = smul.addr %s278, 4
        %s280 = scalar_lea.vmem %s0, %s279
        %s281 = smul.u32 16, %s21
      $region36: #{inconv_forward.1} parent=31 // pred_fallthru
        _
      // Predicated region
      $region37: #{inconv_forward.1} parent=31 // pred_check
        %p282 = pneg %p83
      $region38: #{inconv_forward.1} parent=31 // pred_check_branch
        %284 = sbr.rel (%p282) target = $region40
      $region39: #{inconv_forward.1} parent=31 // pred_region
        %s285 = smul.u32 %s21, 16
        %s286 = ssub.s32 %s285, 1
        %p287 = scmp.gt.s32.totalorder %s286, 0
        %s288 = scalar_select %p287, %s286, 0
        %p289 = scmp.lt.s32.totalorder %s20, 1
        %s290 = scalar_select %p289, %s20, 1
        %p291 = scmp.lt.s32.totalorder %s288, 15
        %s292 = scalar_select %p291, %s288, 15
        %s293 = smul.addr %s292, 2
        %s294 = smul.addr %s290, 32
        %s295 = sadd.s32 %s293, %s294
        %s296 = smul.addr %s295, 4
        %s297 = scalar_lea.vmem %s1, %s296
        %s298 = smul.u32 %s21, 16
        %s299 = ssub.s32 %s298, 1
        %p300 = scmp.gt.s32.totalorder %s299, 0
        %s301 = scalar_select %p300, %s299, 0
      $region40: #{inconv_forward.1} parent=31 // pred_fallthru
        _
      // Predicated region
      $region41: #{inconv_forward.1} parent=31 // pred_check
        %p302 = pneg %p119
      $region42: #{inconv_forward.1} parent=31 // pred_check_branch
        %304 = sbr.rel (%p302) target = $region44
      $region43: #{inconv_forward.1} parent=31 // pred_region
        %s305 = smul.u32 %s21, 16
        %s306 = sadd.s32 %s305, 16
        %p307 = scmp.lt.s32.totalorder %s306, 15
        %s308 = scalar_select %p307, %s306, 15
        %p309 = scmp.lt.s32.totalorder %s20, 1
        %s310 = scalar_select %p309, %s20, 1
        %p311 = scmp.lt.s32.totalorder %s308, 15
        %s312 = scalar_select %p311, %s308, 15
        %s313 = smul.addr %s312, 2
        %s314 = smul.addr %s310, 32
        %s315 = sadd.s32 %s313, %s314
        %s316 = smul.addr %s315, 4
        %s317 = scalar_lea.vmem %s2, %s316
        %s318 = smul.u32 %s21, 16
        %s319 = sadd.s32 %s318, 16
        %p320 = scmp.lt.s32.totalorder %s319, 15
        %s321 = scalar_select %p320, %s319, 15
      $region44: #{inconv_forward.1} parent=31 // pred_fallthru
        _
    $region32: #{inconv_forward.1} parent=5 // pred_fallthru
      _
    %p322 = scmp.le.s32.totalorder 1, %s13
    %p323 = scmp.lt.s32.totalorder %s13, 3
    %p324 = pnand %p322, %p323
    %p325 = pneg %p324
    // Predicated region
    $region45: #{inconv_forward.1} parent=5 // pred_check
      _
    $region46: #{inconv_forward.1} parent=5 // pred_check_branch
      %327 = sbr.rel (%p324) target = $region48
    $region47: #{inconv_forward.1} parent=5 // pred_region
      %s328 = ssub.s32 %s13, 1
      %s329 = smul.u32 16, %s23
      %p330 = scmp.lt.s32.totalorder %s22, 1
      %s331 = scalar_select %p330, %s22, 1
      %p332 = scmp.lt.s32.totalorder %s329, 15
      %s333 = scalar_select %p332, %s329, 15
      %s334 = smul.addr %s333, 2
      %s335 = smul.addr %s331, 32
      %s336 = sadd.s32 %s334, %s335
      %s337 = smul.addr %s336, 4
      %s338 = scalar_lea.vmem %s0, %s337
      %p339 = pneg %p53
      %p340 = pneg %p50
      %s341 = smul.u32 %s23, 16
      %s342 = ssub.s32 %s341, 1
      %p343 = scmp.gt.s32.totalorder %s342, 0
      %s344 = scalar_select %p343, %s342, 0
      %p345 = scmp.lt.s32.totalorder %s22, 1
      %s346 = scalar_select %p345, %s22, 1
      %p347 = scmp.lt.s32.totalorder %s344, 15
      %s348 = scalar_select %p347, %s344, 15
      %s349 = smul.addr %s348, 2
      %s350 = smul.addr %s346, 32
      %s351 = sadd.s32 %s349, %s350
      %s352 = smul.addr %s351, 4
      %s353 = scalar_lea.vmem %s1, %s352
      %p354 = pneg %p89
      %p355 = pneg %p86
      %s356 = smul.u32 %s23, 16
      %s357 = sadd.s32 %s356, 16
      %p358 = scmp.lt.s32.totalorder %s357, 15
      %s359 = scalar_select %p358, %s357, 15
      %p360 = scmp.lt.s32.totalorder %s22, 1
      %s361 = scalar_select %p360, %s22, 1
      %p362 = scmp.lt.s32.totalorder %s359, 15
      %s363 = scalar_select %p362, %s359, 15
      %s364 = smul.addr %s363, 2
      %s365 = smul.addr %s361, 32
      %s366 = sadd.s32 %s364, %s365
      %s367 = smul.addr %s366, 4
      %s368 = scalar_lea.vmem %s2, %s367
      %p369 = pneg %p125
      %p370 = pneg %p122
      %p371 = pneg %p146
      %p372 = pneg %p143
      %p373 = pneg %p167
      %p374 = pneg %p164
      %p375 = pneg %p188
      %p376 = pneg %p185
      %p377 = pneg %p209
      %p378 = pneg %p206
      %p379 = pneg %p237
      %p380 = pneg %p234
      %s381 = smul.u32 16, %s23
      %p382 = scmp.lt.s32.totalorder %s22, 1
      %s383 = scalar_select %p382, %s22, 1
      %p384 = scmp.lt.s32.totalorder %s381, 15
      %s385 = scalar_select %p384, %s381, 15
      %s386 = smul.addr %s385, 2
      %s387 = smul.addr %s383, 32
      %s388 = sadd.s32 %s386, %s387
      %s389 = smul.addr %s388, 8
      %s390 = scalar_lea.vmem %s7, %s389
      %s391 = smul.u32 16, %s23
      %p392 = scmp.lt.s32.totalorder %s22, 1
      %s393 = scalar_select %p392, %s22, 1
      %p394 = scmp.lt.s32.totalorder %s391, 15
      %s395 = scalar_select %p394, %s391, 15
      %s396 = smul.addr %s395, 2
      %s397 = smul.addr %s393, 32
      %s398 = sadd.s32 %s396, %s397
      %s399 = smul.addr %s398, 4
      %s400 = scalar_lea.vmem %s0, %s399
      %s401 = smul.u32 16, %s23
      %s402 = smul.u32 %s23, 16
      %s403 = ssub.s32 %s402, 1
      %p404 = scmp.gt.s32.totalorder %s403, 0
      %s405 = scalar_select %p404, %s403, 0
      %p406 = scmp.lt.s32.totalorder %s22, 1
      %s407 = scalar_select %p406, %s22, 1
      %p408 = scmp.lt.s32.totalorder %s405, 15
      %s409 = scalar_select %p408, %s405, 15
      %s410 = smul.addr %s409, 2
      %s411 = smul.addr %s407, 32
      %s412 = sadd.s32 %s410, %s411
      %s413 = smul.addr %s412, 4
      %s414 = scalar_lea.vmem %s1, %s413
      %s415 = smul.u32 %s23, 16
      %s416 = ssub.s32 %s415, 1
      %p417 = scmp.gt.s32.totalorder %s416, 0
      %s418 = scalar_select %p417, %s416, 0
      %s419 = smul.u32 %s23, 16
      %s420 = sadd.s32 %s419, 16
      %p421 = scmp.lt.s32.totalorder %s420, 15
      %s422 = scalar_select %p421, %s420, 15
      %p423 = scmp.lt.s32.totalorder %s22, 1
      %s424 = scalar_select %p423, %s22, 1
      %p425 = scmp.lt.s32.totalorder %s422, 15
      %s426 = scalar_select %p425, %s422, 15
      %s427 = smul.addr %s426, 2
      %s428 = smul.addr %s424, 32
      %s429 = sadd.s32 %s427, %s428
      %s430 = smul.addr %s429, 4
      %s431 = scalar_lea.vmem %s2, %s430
      %s432 = smul.u32 %s23, 16
      %s433 = sadd.s32 %s432, 16
      %p434 = scmp.lt.s32.totalorder %s433, 15
      %s435 = scalar_select %p434, %s433, 15
      %s436 = smul.u32 16, %s23
      %p437 = scmp.lt.s32.totalorder %s22, 1
      %s438 = scalar_select %p437, %s22, 1
      %p439 = scmp.lt.s32.totalorder %s436, 15
      %s440 = scalar_select %p439, %s436, 15
      %s441 = smul.addr %s440, 2
      %s442 = smul.addr %s438, 32
      %s443 = sadd.s32 %s441, %s442
      %s444 = smul.addr %s443, 8
      %s445 = scalar_lea.vmem %s7, %s444
      %s446 = smul.u32 16, %s23
      %v448 = vld [vmem:[%s4] sm:$0x1]
      %v449 = vld [vmem:[%s6] sm:$0x1]
      %v450 = vld [vmem:[%s414] sm:$0xf]
      %v451 = vld [vmem:[%s414 + $0x4] sm:$0xf]
      %v452 = vld [vmem:[%s3] sm:$0xf]
      %v453 = vld [vmem:[%s3 + $0x4] sm:$0xf]
      %v454 = vld [vmem:[%s3 + $0x8] sm:$0xf]
      %v455 = vld [vmem:[%s3 + $0xc] sm:$0xf]
      %v456 = vld [vmem:[%s3 + $0x10] sm:$0x3]
      %v458 = vlaneseq
      %v459 = vshrl.u32 %v458, 7
      %v460 = vsub.s32 0, %v459
      %v461 = vrot.slane %v448, %v460
      %v465 = vunpack.c.l.b16 %v450
      %v466 = vunpack.c.l.b16 %v451
      %v467 = vpack.c.b16 %v466, %v465
      %v473 = vunpack.c.l.b16 %v452
      %v474 = vunpack.c.l.b16 %v453
      %v475 = vunpack.c.l.b16 %v454
      %v476 = vunpack.c.l.b16 %v455
      %v477 = vunpack.c.l.b16 %v456
      %v478 = vpack.c.b16 %v474, %v473
      %v479 = vpack.c.b16 %v476, %v475
      %v480 = vpack.c.b16 %v477, %v477
      %vm483 = vcmask 293888
      %v485 = vsel %vm483, %v467, 0
      %vm487 = vcmask 1041408
      %v489 = vsel %vm487, %v480, 0
      %491 = vmatprep.subr.bf16.mxu0 0
      %492 = vmatpush1.bf16.msra.mxu0 %v478
      %493 = vmatprep.subr.bf16.mxu0 0
      %494 = vmatpush1.bf16.msra.mxu0 %v479
      %495 = vmatprep.subr.bf16.mxu0 0
      %496 = vmatpush1.bf16.msra.mxu0 %v489
      %497 = vmatprep.subr.bf16.mxu0 0
      %498 = vmatpush1.bf16.msra.mxu0 0
      %499 = vmatprep.subr.bf16.mxu0 0
      %500 = vmatpush1.bf16.msra.mxu0 0
      %501 = vmatprep.subr.bf16.mxu0 0
      %502 = vmatpush1.bf16.msra.mxu0 0
      %503 = vmatprep.subr.bf16.mxu0 0
      %504 = vmatpush1.bf16.msra.mxu0 0
      %505 = vmatprep.subr.bf16.mxu0 0
      %506 = vmatpush1.bf16.msra.mxu0 0
      %507 = vmatprep.subr.bf16.mxu0 0
      %508 = vmatpush1.bf16.msra.mxu0 0
      %509 = vmatprep.subr.bf16.mxu0 0
      %510 = vmatpush1.bf16.msra.mxu0 0
      %511 = vmatprep.subr.bf16.mxu0 0
      %512 = vmatpush1.bf16.msra.mxu0 0
      %513 = vmatprep.subr.bf16.mxu0 0
      %514 = vmatpush1.bf16.msra.mxu0 0
      %515 = vmatprep.subr.bf16.mxu0 0
      %516 = vmatpush1.bf16.msra.mxu0 0
      %517 = vmatprep.subr.bf16.mxu0 0
      %518 = vmatpush1.bf16.msra.mxu0 0
      %519 = vmatprep.subr.bf16.mxu0 0
      %520 = vmatpush1.bf16.msra.mxu0 0
      %521 = vmatprep.subr.bf16.mxu0 0
      %522 = vmatpush1.bf16.msra.mxu0 0
      %523 = vmatprep.mubr.bf16.mxu0 0
      %524 = vmatmul.mubr.bf16.gmra.mrb[0].mxu0 %v485
      %v525 = vpop.f32.mrb[0].mxu0
      %v526 = vadd.f32 %v461, %v525
      %v527 = vpop.f32.mrb[0].mxu0
      %v528 = vpop.f32.mrb[0].mxu0
      %v529 = vadd.f32 %v461, %v528
      %v530 = vpop.f32.mrb[0].mxu0
      %531 = vdwg.mxu0
      %v532 = vmax.f32 %v526, 0.0
      %v533 = vmax.f32 %v529, 0.0
      %v534 = vpack.c.bf16 %v533, %v532
      %p535 = scmp.gt.s32.totalorder %s23, 0
      %s536 = scalar_select %p535, 1, 0
      %v537 = vstv %s536
      %vm538 = vcmp.eq.s32.totalorder %v537, 1
      %v539 = vsel %vm538, %v534, 0
      %v541 = vshrl.u32 %v539, 16
      %v543 = vrot.slane %v541, 7
      %v544 = vshll.u32 %v539, 16
      %v546 = vor.u32 %v543, %v544
      %vm548 = vcmask 1040384
      %vm549 = vsmask.f32 256
      %vm550 = vmand %vm548, %vm549
      %v551 = vsel %vm550, 0, %v546
      %552 = vst [vmem:[#allocation2] sm:$0xff] %v551
      %553 = vst [vmem:[#allocation2 + $0x8] sm:$0xff] %v539
      %v554 = vrot.slane %v544, 1
      %v555 = vor.u32 %v541, %v554
      %vm557 = vcmask 1047552
      %vm558 = vsmask.f32 7424
      %vm559 = vmand %vm557, %vm558
      %v560 = vsel %vm559, %v555, 0
      %561 = vst [vmem:[#allocation2 + $0x10] sm:$0xff] %v560
      %v562 = vld [vmem:[%s400] sm:$0xf]
      %v563 = vld [vmem:[%s400 + $0x4] sm:$0xf]
      %v564 = vld [vmem:[%s400 + $0x8] sm:$0xf]
      %v565 = vld [vmem:[%s400 + $0xc] sm:$0xf]
      %v566 = vld [vmem:[%s400 + $0x10] sm:$0xf]
      %v567 = vld [vmem:[%s400 + $0x14] sm:$0xf]
      %v568 = vld [vmem:[%s400 + $0x18] sm:$0xf]
      %v569 = vld [vmem:[%s400 + $0x1c] sm:$0xf]
      %v570 = vld [vmem:[%s400 + $0x20] sm:$0xf]
      %v571 = vld [vmem:[%s400 + $0x24] sm:$0xf]
      %v572 = vld [vmem:[%s400 + $0x28] sm:$0xf]
      %v573 = vld [vmem:[%s400 + $0x2c] sm:$0xf]
      %v574 = vld [vmem:[%s400 + $0x30] sm:$0xf]
      %v575 = vld [vmem:[%s400 + $0x34] sm:$0xf]
      %v576 = vld [vmem:[%s400 + $0x38] sm:$0xf]
      %v577 = vld [vmem:[%s400 + $0x3c] sm:$0xf]
      %v578 = vld [vmem:[%s3] sm:$0xf]
      %v579 = vld [vmem:[%s3 + $0x4] sm:$0xf]
      %v580 = vld [vmem:[%s3 + $0x8] sm:$0xf]
      %v581 = vld [vmem:[%s3 + $0xc] sm:$0xf]
      %v582 = vld [vmem:[%s3 + $0x10] sm:$0x3]
      %v599 = vunpack.c.l.b16 %v562
      %v600 = vunpack.c.l.b16 %v563
      %v601 = vunpack.c.l.b16 %v564
      %v602 = vunpack.c.l.b16 %v565
      %v603 = vunpack.c.l.b16 %v566
      %v604 = vunpack.c.l.b16 %v567
      %v605 = vunpack.c.l.b16 %v568
      %v606 = vunpack.c.l.b16 %v569
      %v607 = vunpack.c.l.b16 %v570
      %v608 = vunpack.c.l.b16 %v571
      %v609 = vunpack.c.l.b16 %v572
      %v610 = vunpack.c.l.b16 %v573
      %v611 = vunpack.c.l.b16 %v574
      %v612 = vunpack.c.l.b16 %v575
      %v613 = vunpack.c.l.b16 %v576
      %v614 = vunpack.c.l.b16 %v577
      %v615 = vpack.c.b16 %v600, %v599
      %v616 = vpack.c.b16 %v602, %v601
      %v617 = vpack.c.b16 %v604, %v603
      %v618 = vpack.c.b16 %v606, %v605
      %v619 = vpack.c.b16 %v608, %v607
      %v620 = vpack.c.b16 %v610, %v609
      %v621 = vpack.c.b16 %v612, %v611
      %v622 = vpack.c.b16 %v614, %v613
      %v628 = vunpack.c.l.b16 %v578
      %v629 = vunpack.c.l.b16 %v579
      %v630 = vunpack.c.l.b16 %v580
      %v631 = vunpack.c.l.b16 %v581
      %v632 = vunpack.c.l.b16 %v582
      %v633 = vpack.c.b16 %v629, %v628
      %v634 = vpack.c.b16 %v631, %v630
      %v635 = vpack.c.b16 %v632, %v632
      %v639 = vsel %vm483, %v615, 0
      %v642 = vsel %vm483, %v616, 0
      %v645 = vsel %vm483, %v617, 0
      %v648 = vsel %vm483, %v618, 0
      %v651 = vsel %vm483, %v619, 0
      %v654 = vsel %vm483, %v620, 0
      %v657 = vsel %vm483, %v621, 0
      %v660 = vsel %vm483, %v622, 0
      %v663 = vsel %vm487, %v635, 0
      %665 = vmatprep.subr.bf16.mxu0 0
      %666 = vmatpush1.bf16.msra.mxu0 %v633
      %667 = vmatprep.subr.bf16.mxu0 0
      %668 = vmatpush1.bf16.msra.mxu0 %v634
      %669 = vmatprep.subr.bf16.mxu0 0
      %670 = vmatpush1.bf16.msra.mxu0 %v663
      %671 = vmatprep.subr.bf16.mxu0 0
      %672 = vmatpush1.bf16.msra.mxu0 0
      %673 = vmatprep.subr.bf16.mxu0 0
      %674 = vmatpush1.bf16.msra.mxu0 0
      %675 = vmatprep.subr.bf16.mxu0 0
      %676 = vmatpush1.bf16.msra.mxu0 0
      %677 = vmatprep.subr.bf16.mxu0 0
      %678 = vmatpush1.bf16.msra.mxu0 0
      %679 = vmatprep.subr.bf16.mxu0 0
      %680 = vmatpush1.bf16.msra.mxu0 0
      %681 = vmatprep.subr.bf16.mxu0 0
      %682 = vmatpush1.bf16.msra.mxu0 0
      %683 = vmatprep.subr.bf16.mxu0 0
      %684 = vmatpush1.bf16.msra.mxu0 0
      %685 = vmatprep.subr.bf16.mxu0 0
      %686 = vmatpush1.bf16.msra.mxu0 0
      %687 = vmatprep.subr.bf16.mxu0 0
      %688 = vmatpush1.bf16.msra.mxu0 0
      %689 = vmatprep.subr.bf16.mxu0 0
      %690 = vmatpush1.bf16.msra.mxu0 0
      %691 = vmatprep.subr.bf16.mxu0 0
      %692 = vmatpush1.bf16.msra.mxu0 0
      %693 = vmatprep.subr.bf16.mxu0 0
      %694 = vmatpush1.bf16.msra.mxu0 0
      %695 = vmatprep.subr.bf16.mxu0 0
      %696 = vmatpush1.bf16.msra.mxu0 0
      %697 = vmatprep.mubr.bf16.mxu0 0
      %698 = vmatmul.mubr.bf16.gmra.mrb[0].mxu0 %v639
      %v699 = vpop.f32.mrb[0].mxu0
      %v700 = vadd.f32 %v461, %v699
      %v701 = vpop.f32.mrb[0].mxu0
      %v702 = vpop.f32.mrb[0].mxu0
      %v703 = vadd.f32 %v461, %v702
      %v704 = vpop.f32.mrb[0].mxu0
      %705 = vmatprep.mubr.bf16.mxu0 0
      %706 = vmatmul.mubr.bf16.gmra.mrb[0].mxu0 %v642
      %v707 = vpop.f32.mrb[0].mxu0
      %v708 = vadd.f32 %v461, %v707
      %v709 = vpop.f32.mrb[0].mxu0
      %v710 = vpop.f32.mrb[0].mxu0
      %v711 = vadd.f32 %v461, %v710
      %v712 = vpop.f32.mrb[0].mxu0
      %713 = vmatprep.mubr.bf16.mxu0 0
      %714 = vmatmul.mubr.bf16.gmra.mrb[0].mxu0 %v645
      %v715 = vpop.f32.mrb[0].mxu0
      %v716 = vadd.f32 %v461, %v715
      %v717 = vpop.f32.mrb[0].mxu0
      %v718 = vpop.f32.mrb[0].mxu0
      %v719 = vadd.f32 %v461, %v718
      %v720 = vpop.f32.mrb[0].mxu0
      %721 = vmatprep.mubr.bf16.mxu0 0
      %722 = vmatmul.mubr.bf16.gmra.mrb[0].mxu0 %v648
      %v723 = vpop.f32.mrb[0].mxu0
      %v724 = vadd.f32 %v461, %v723
      %v725 = vpop.f32.mrb[0].mxu0
      %v726 = vpop.f32.mrb[0].mxu0
      %v727 = vadd.f32 %v461, %v726
      %v728 = vpop.f32.mrb[0].mxu0
      %729 = vmatprep.mubr.bf16.mxu0 0
      %730 = vmatmul.mubr.bf16.gmra.mrb[0].mxu0 %v651
      %v731 = vpop.f32.mrb[0].mxu0
      %v732 = vadd.f32 %v461, %v731
      %v733 = vpop.f32.mrb[0].mxu0
      %v734 = vpop.f32.mrb[0].mxu0
      %v735 = vadd.f32 %v461, %v734
      %v736 = vpop.f32.mrb[0].mxu0
      %737 = vmatprep.mubr.bf16.mxu0 0
      %738 = vmatmul.mubr.bf16.gmra.mrb[0].mxu0 %v654
      %v739 = vpop.f32.mrb[0].mxu0
      %v740 = vadd.f32 %v461, %v739
      %v741 = vpop.f32.mrb[0].mxu0
      %v742 = vpop.f32.mrb[0].mxu0
      %v743 = vadd.f32 %v461, %v742
      %v744 = vpop.f32.mrb[0].mxu0
      %745 = vmatprep.mubr.bf16.mxu0 0
      %746 = vmatmul.mubr.bf16.gmra.mrb[0].mxu0 %v657
      %v747 = vpop.f32.mrb[0].mxu0
      %v748 = vadd.f32 %v461, %v747
      %v749 = vpop.f32.mrb[0].mxu0
      %v750 = vpop.f32.mrb[0].mxu0
      %v751 = vadd.f32 %v461, %v750
      %v752 = vpop.f32.mrb[0].mxu0
      %753 = vmatprep.mubr.bf16.mxu0 0
      %754 = vmatmul.mubr.bf16.gmra.mrb[0].mxu0 %v660
      %v755 = vpop.f32.mrb[0].mxu0
      %v756 = vadd.f32 %v461, %v755
      %v757 = vpop.f32.mrb[0].mxu0
      %v758 = vpop.f32.mrb[0].mxu0
      %v759 = vadd.f32 %v461, %v758
      %v760 = vpop.f32.mrb[0].mxu0
      %761 = vdwg.mxu0
      %v762 = vmax.f32 %v700, 0.0
      %v763 = vmax.f32 %v703, 0.0
      %v764 = vmax.f32 %v708, 0.0
      %v765 = vmax.f32 %v711, 0.0
      %v766 = vmax.f32 %v716, 0.0
      %v767 = vmax.f32 %v719, 0.0
      %v768 = vmax.f32 %v724, 0.0
      %v769 = vmax.f32 %v727, 0.0
      %v770 = vmax.f32 %v732, 0.0
      %v771 = vmax.f32 %v735, 0.0
      %v772 = vmax.f32 %v740, 0.0
      %v773 = vmax.f32 %v743, 0.0
      %v774 = vmax.f32 %v748, 0.0
      %v775 = vmax.f32 %v751, 0.0
      %v776 = vmax.f32 %v756, 0.0
      %v777 = vmax.f32 %v759, 0.0
      %v778 = vpack.c.bf16 %v763, %v762
      %v779 = vpack.c.bf16 %v765, %v764
      %v780 = vpack.c.bf16 %v767, %v766
      %v781 = vpack.c.bf16 %v769, %v768
      %v782 = vpack.c.bf16 %v771, %v770
      %v783 = vpack.c.bf16 %v773, %v772
      %v784 = vpack.c.bf16 %v775, %v774
      %v785 = vpack.c.bf16 %v777, %v776
      %v787 = vshrl.u32 %v778, 16
      %v789 = vrot.slane %v787, 7
      %v790 = vshll.u32 %v778, 16
      %v792 = vor.u32 %v789, %v790
      %v794 = vshrl.u32 %v779, 16
      %v796 = vrot.slane %v794, 7
      %v797 = vshll.u32 %v779, 16
      %v799 = vor.u32 %v796, %v797
      %v801 = vshrl.u32 %v780, 16
      %v803 = vrot.slane %v801, 7
      %v804 = vshll.u32 %v780, 16
      %v806 = vor.u32 %v803, %v804
      %v808 = vshrl.u32 %v781, 16
      %v810 = vrot.slane %v808, 7
      %v811 = vshll.u32 %v781, 16
      %v813 = vor.u32 %v810, %v811
      %v815 = vshrl.u32 %v782, 16
      %v817 = vrot.slane %v815, 7
      %v818 = vshll.u32 %v782, 16
      %v820 = vor.u32 %v817, %v818
      %v822 = vshrl.u32 %v783, 16
      %v824 = vrot.slane %v822, 7
      %v825 = vshll.u32 %v783, 16
      %v827 = vor.u32 %v824, %v825
      %v829 = vshrl.u32 %v784, 16
      %v831 = vrot.slane %v829, 7
      %v832 = vshll.u32 %v784, 16
      %v834 = vor.u32 %v831, %v832
      %v836 = vshrl.u32 %v785, 16
      %v838 = vrot.slane %v836, 7
      %v839 = vshll.u32 %v785, 16
      %v841 = vor.u32 %v838, %v839
      %v850 = vsel %vm550, 0, %v792
      %v851 = vsel %vm550, 0, %v799
      %v852 = vsel %vm550, 0, %v806
      %v853 = vsel %vm550, 0, %v813
      %v854 = vsel %vm550, 0, %v820
      %v855 = vsel %vm550, 0, %v827
      %v856 = vsel %vm550, 0, %v834
      %v857 = vsel %vm550, 0, %v841
      %s858 = scalar_lea.vmem [#allocation2], 24
      %859 = vst [vmem:[%s858] sm:$0xff] %v850
      %860 = vst [vmem:[%s858 + $0x18] sm:$0xff] %v851
      %861 = vst [vmem:[%s858 + $0x30] sm:$0xff] %v852
      %862 = vst [vmem:[%s858 + $0x48] sm:$0xff] %v853
      %863 = vst [vmem:[%s858 + $0x60] sm:$0xff] %v854
      %864 = vst [vmem:[%s858 + $0x78] sm:$0xff] %v855
      %865 = vst [vmem:[%s858 + $0x90] sm:$0xff] %v856
      %866 = vst [vmem:[%s858 + $0xa8] sm:$0xff] %v857
      %867 = vst [vmem:[%s858 + $0x8] sm:$0xff] %v778
      %868 = vst [vmem:[%s858 + $0x20] sm:$0xff] %v779
      %869 = vst [vmem:[%s858 + $0x38] sm:$0xff] %v780
      %870 = vst [vmem:[%s858 + $0x50] sm:$0xff] %v781
      %871 = vst [vmem:[%s858 + $0x68] sm:$0xff] %v782
      %872 = vst [vmem:[%s858 + $0x80] sm:$0xff] %v783
      %873 = vst [vmem:[%s858 + $0x98] sm:$0xff] %v784
      %874 = vst [vmem:[%s858 + $0xb0] sm:$0xff] %v785
      %v875 = vrot.slane %v790, 1
      %v876 = vor.u32 %v787, %v875
      %v877 = vrot.slane %v797, 1
      %v878 = vor.u32 %v794, %v877
      %v879 = vrot.slane %v804, 1
      %v880 = vor.u32 %v801, %v879
      %v881 = vrot.slane %v811, 1
      %v882 = vor.u32 %v808, %v881
      %v883 = vrot.slane %v818, 1
      %v884 = vor.u32 %v815, %v883
      %v885 = vrot.slane %v825, 1
      %v886 = vor.u32 %v822, %v885
      %v887 = vrot.slane %v832, 1
      %v888 = vor.u32 %v829, %v887
      %v889 = vrot.slane %v839, 1
      %v890 = vor.u32 %v836, %v889
      %v899 = vsel %vm559, %v876, 0
      %v900 = vsel %vm559, %v878, 0
      %v901 = vsel %vm559, %v880, 0
      %v902 = vsel %vm559, %v882, 0
      %v903 = vsel %vm559, %v884, 0
      %v904 = vsel %vm559, %v886, 0
      %v905 = vsel %vm559, %v888, 0
      %v906 = vsel %vm559, %v890, 0
      %907 = vst [vmem:[%s858 + $0x10] sm:$0xff] %v899
      %908 = vst [vmem:[%s858 + $0x28] sm:$0xff] %v900
      %909 = vst [vmem:[%s858 + $0x40] sm:$0xff] %v901
      %910 = vst [vmem:[%s858 + $0x58] sm:$0xff] %v902
      %911 = vst [vmem:[%s858 + $0x70] sm:$0xff] %v903
      %912 = vst [vmem:[%s858 + $0x88] sm:$0xff] %v904
      %913 = vst [vmem:[%s858 + $0xa0] sm:$0xff] %v905
      %914 = vst [vmem:[%s858 + $0xb8] sm:$0xff] %v906
      %s915 = scalar_lea.vmem %s400, 64
      %v916 = vld [vmem:[%s915] sm:$0xf]
      %v917 = vld [vmem:[%s915 + $0x4] sm:$0xf]
      %v918 = vld [vmem:[%s915 + $0x8] sm:$0xf]
      %v919 = vld [vmem:[%s915 + $0xc] sm:$0xf]
      %v920 = vld [vmem:[%s915 + $0x10] sm:$0xf]
      %v921 = vld [vmem:[%s915 + $0x14] sm:$0xf]
      %v922 = vld [vmem:[%s915 + $0x18] sm:$0xf]
      %v923 = vld [vmem:[%s915 + $0x1c] sm:$0xf]
      %v924 = vld [vmem:[%s915 + $0x20] sm:$0xf]
      %v925 = vld [vmem:[%s915 + $0x24] sm:$0xf]
      %v926 = vld [vmem:[%s915 + $0x28] sm:$0xf]
      %v927 = vld [vmem:[%s915 + $0x2c] sm:$0xf]
      %v928 = vld [vmem:[%s915 + $0x30] sm:$0xf]
      %v929 = vld [vmem:[%s915 + $0x34] sm:$0xf]
      %v930 = vld [vmem:[%s915 + $0x38] sm:$0xf]
      %v931 = vld [vmem:[%s915 + $0x3c] sm:$0xf]
      %v932 = vld [vmem:[%s3] sm:$0xf]
      %v933 = vld [vmem:[%s3 + $0x4] sm:$0xf]
      %v934 = vld [vmem:[%s3 + $0x8] sm:$0xf]
      %v935 = vld [vmem:[%s3 + $0xc] sm:$0xf]
      %v936 = vld [vmem:[%s3 + $0x10] sm:$0x3]
      %v953 = vunpack.c.l.b16 %v916
      %v954 = vunpack.c.l.b16 %v917
      %v955 = vunpack.c.l.b16 %v918
      %v956 = vunpack.c.l.b16 %v919
      %v957 = vunpack.c.l.b16 %v920
      %v958 = vunpack.c.l.b16 %v921
      %v959 = vunpack.c.l.b16 %v922
      %v960 = vunpack.c.l.b16 %v923
      %v961 = vunpack.c.l.b16 %v924
      %v962 = vunpack.c.l.b16 %v925
      %v963 = vunpack.c.l.b16 %v926
      %v964 = vunpack.c.l.b16 %v927
      %v965 = vunpack.c.l.b16 %v928
      %v966 = vunpack.c.l.b16 %v929
      %v967 = vunpack.c.l.b16 %v930
      %v968 = vunpack.c.l.b16 %v931
      %v969 = vpack.c.b16 %v954, %v953
      %v970 = vpack.c.b16 %v956, %v955
      %v971 = vpack.c.b16 %v958, %v957
      %v972 = vpack.c.b16 %v960, %v959
      %v973 = vpack.c.b16 %v962, %v961
      %v974 = vpack.c.b16 %v964, %v963
      %v975 = vpack.c.b16 %v966, %v965
      %v976 = vpack.c.b16 %v968, %v967
      %v982 = vunpack.c.l.b16 %v932
      %v983 = vunpack.c.l.b16 %v933
      %v984 = vunpack.c.l.b16 %v934
      %v985 = vunpack.c.l.b16 %v935
      %v986 = vunpack.c.l.b16 %v936
      %v987 = vpack.c.b16 %v983, %v982
      %v988 = vpack.c.b16 %v985, %v984
      %v989 = vpack.c.b16 %v986, %v986
      %v993 = vsel %vm483, %v969, 0
      %v996 = vsel %vm483, %v970, 0
      %v999 = vsel %vm483, %v971, 0
      %v1002 = vsel %vm483, %v972, 0
      %v1005 = vsel %vm483, %v973, 0
      %v1008 = vsel %vm483, %v974, 0
      %v1011 = vsel %vm483, %v975, 0
      %v1014 = vsel %vm483, %v976, 0
      %v1017 = vsel %vm487, %v989, 0
      %1019 = vmatprep.subr.bf16.mxu0 0
      %1020 = vmatpush1.bf16.msra.mxu0 %v987
      %1021 = vmatprep.subr.bf16.mxu0 0
      %1022 = vmatpush1.bf16.msra.mxu0 %v988
      %1023 = vmatprep.subr.bf16.mxu0 0
      %1024 = vmatpush1.bf16.msra.mxu0 %v1017
      %1025 = vmatprep.subr.bf16.mxu0 0
      %1026 = vmatpush1.bf16.msra.mxu0 0
      %1027 = vmatprep.subr.bf16.mxu0 0
      %1028 = vmatpush1.bf16.msra.mxu0 0
      %1029 = vmatprep.subr.bf16.mxu0 0
      %1030 = vmatpush1.bf16.msra.mxu0 0
      %1031 = vmatprep.subr.bf16.mxu0 0
      %1032 = vmatpush1.bf16.msra.mxu0 0
      %1033 = vmatprep.subr.bf16.mxu0 0
      %1034 = vmatpush1.bf16.msra.mxu0 0
      %1035 = vmatprep.subr.bf16.mxu0 0
      %1036 = vmatpush1.bf16.msra.mxu0 0
      %1037 = vmatprep.subr.bf16.mxu0 0
      %1038 = vmatpush1.bf16.msra.mxu0 0
      %1039 = vmatprep.subr.bf16.mxu0 0
      %1040 = vmatpush1.bf16.msra.mxu0 0
      %1041 = vmatprep.subr.bf16.mxu0 0
      %1042 = vmatpush1.bf16.msra.mxu0 0
      %1043 = vmatprep.subr.bf16.mxu0 0
      %1044 = vmatpush1.bf16.msra.mxu0 0
      %1045 = vmatprep.subr.bf16.mxu0 0
      %1046 = vmatpush1.bf16.msra.mxu0 0
      %1047 = vmatprep.subr.bf16.mxu0 0
      %1048 = vmatpush1.bf16.msra.mxu0 0
      %1049 = vmatprep.subr.bf16.mxu0 0
      %1050 = vmatpush1.bf16.msra.mxu0 0
      %1051 = vmatprep.mubr.bf16.mxu0 0
      %1052 = vmatmul.mubr.bf16.gmra.mrb[0].mxu0 %v993
      %v1053 = vpop.f32.mrb[0].mxu0
      %v1054 = vadd.f32 %v461, %v1053
      %v1055 = vpop.f32.mrb[0].mxu0
      %v1056 = vpop.f32.mrb[0].mxu0
      %v1057 = vadd.f32 %v461, %v1056
      %v1058 = vpop.f32.mrb[0].mxu0
      %1059 = vmatprep.mubr.bf16.mxu0 0
      %1060 = vmatmul.mubr.bf16.gmra.mrb[0].mxu0 %v996
      %v1061 = vpop.f32.mrb[0].mxu0
      %v1062 = vadd.f32 %v461, %v1061
      %v1063 = vpop.f32.mrb[0].mxu0
      %v1064 = vpop.f32.mrb[0].mxu0
      %v1065 = vadd.f32 %v461, %v1064
      %v1066 = vpop.f32.mrb[0].mxu0
      %1067 = vmatprep.mubr.bf16.mxu0 0
      %1068 = vmatmul.mubr.bf16.gmra.mrb[0].mxu0 %v999
      %v1069 = vpop.f32.mrb[0].mxu0
      %v1070 = vadd.f32 %v461, %v1069
      %v1071 = vpop.f32.mrb[0].mxu0
      %v1072 = vpop.f32.mrb[0].mxu0
      %v1073 = vadd.f32 %v461, %v1072
      %v1074 = vpop.f32.mrb[0].mxu0
      %1075 = vmatprep.mubr.bf16.mxu0 0
      %1076 = vmatmul.mubr.bf16.gmra.mrb[0].mxu0 %v1002
      %v1077 = vpop.f32.mrb[0].mxu0
      %v1078 = vadd.f32 %v461, %v1077
      %v1079 = vpop.f32.mrb[0].mxu0
      %v1080 = vpop.f32.mrb[0].mxu0
      %v1081 = vadd.f32 %v461, %v1080
      %v1082 = vpop.f32.mrb[0].mxu0
      %1083 = vmatprep.mubr.bf16.mxu0 0
      %1084 = vmatmul.mubr.bf16.gmra.mrb[0].mxu0 %v1005
      %v1085 = vpop.f32.mrb[0].mxu0
      %v1086 = vadd.f32 %v461, %v1085
      %v1087 = vpop.f32.mrb[0].mxu0
      %v1088 = vpop.f32.mrb[0].mxu0
      %v1089 = vadd.f32 %v461, %v1088
      %v1090 = vpop.f32.mrb[0].mxu0
      %1091 = vmatprep.mubr.bf16.mxu0 0
      %1092 = vmatmul.mubr.bf16.gmra.mrb[0].mxu0 %v1008
      %v1093 = vpop.f32.mrb[0].mxu0
      %v1094 = vadd.f32 %v461, %v1093
      %v1095 = vpop.f32.mrb[0].mxu0
      %v1096 = vpop.f32.mrb[0].mxu0
      %v1097 = vadd.f32 %v461, %v1096
      %v1098 = vpop.f32.mrb[0].mxu0
      %1099 = vmatprep.mubr.bf16.mxu0 0
      %1100 = vmatmul.mubr.bf16.gmra.mrb[0].mxu0 %v1011
      %v1101 = vpop.f32.mrb[0].mxu0
      %v1102 = vadd.f32 %v461, %v1101
      %v1103 = vpop.f32.mrb[0].mxu0
      %v1104 = vpop.f32.mrb[0].mxu0
      %v1105 = vadd.f32 %v461, %v1104
      %v1106 = vpop.f32.mrb[0].mxu0
      %1107 = vmatprep.mubr.bf16.mxu0 0
      %1108 = vmatmul.mubr.bf16.gmra.mrb[0].mxu0 %v1014
      %v1109 = vpop.f32.mrb[0].mxu0
      %v1110 = vadd.f32 %v461, %v1109
      %v1111 = vpop.f32.mrb[0].mxu0
      %v1112 = vpop.f32.mrb[0].mxu0
      %v1113 = vadd.f32 %v461, %v1112
      %v1114 = vpop.f32.mrb[0].mxu0
      %1115 = vdwg.mxu0
      %v1116 = vmax.f32 %v1054, 0.0
      %v1117 = vmax.f32 %v1057, 0.0
      %v1118 = vmax.f32 %v1062, 0.0
      %v1119 = vmax.f32 %v1065, 0.0
      %v1120 = vmax.f32 %v1070, 0.0
      %v1121 = vmax.f32 %v1073, 0.0
      %v1122 = vmax.f32 %v1078, 0.0
      %v1123 = vmax.f32 %v1081, 0.0
      %v1124 = vmax.f32 %v1086, 0.0
      %v1125 = vmax.f32 %v1089, 0.0
      %v1126 = vmax.f32 %v1094, 0.0
      %v1127 = vmax.f32 %v1097, 0.0
      %v1128 = vmax.f32 %v1102, 0.0
      %v1129 = vmax.f32 %v1105, 0.0
      %v1130 = vmax.f32 %v1110, 0.0
      %v1131 = vmax.f32 %v1113, 0.0
      %v1132 = vpack.c.bf16 %v1117, %v1116
      %v1133 = vpack.c.bf16 %v1119, %v1118
      %v1134 = vpack.c.bf16 %v1121, %v1120
      %v1135 = vpack.c.bf16 %v1123, %v1122
      %v1136 = vpack.c.bf16 %v1125, %v1124
      %v1137 = vpack.c.bf16 %v1127, %v1126
      %v1138 = vpack.c.bf16 %v1129, %v1128
      %v1139 = vpack.c.bf16 %v1131, %v1130
      %v1141 = vshrl.u32 %v1132, 16
      %v1143 = vrot.slane %v1141, 7
      %v1144 = vshll.u32 %v1132, 16
      %v1146 = vor.u32 %v1143, %v1144
      %v1148 = vshrl.u32 %v1133, 16
      %v1150 = vrot.slane %v1148, 7
      %v1151 = vshll.u32 %v1133, 16
      %v1153 = vor.u32 %v1150, %v1151
      %v1155 = vshrl.u32 %v1134, 16
      %v1157 = vrot.slane %v1155, 7
      %v1158 = vshll.u32 %v1134, 16
      %v1160 = vor.u32 %v1157, %v1158
      %v1162 = vshrl.u32 %v1135, 16
      %v1164 = vrot.slane %v1162, 7
      %v1165 = vshll.u32 %v1135, 16
      %v1167 = vor.u32 %v1164, %v1165
      %v1169 = vshrl.u32 %v1136, 16
      %v1171 = vrot.slane %v1169, 7
      %v1172 = vshll.u32 %v1136, 16
      %v1174 = vor.u32 %v1171, %v1172
      %v1176 = vshrl.u32 %v1137, 16
      %v1178 = vrot.slane %v1176, 7
      %v1179 = vshll.u32 %v1137, 16
      %v1181 = vor.u32 %v1178, %v1179
      %v1183 = vshrl.u32 %v1138, 16
      %v1185 = vrot.slane %v1183, 7
      %v1186 = vshll.u32 %v1138, 16
      %v1188 = vor.u32 %v1185, %v1186
      %v1190 = vshrl.u32 %v1139, 16
      %v1192 = vrot.slane %v1190, 7
      %v1193 = vshll.u32 %v1139, 16
      %v1195 = vor.u32 %v1192, %v1193
      %v1204 = vsel %vm550, 0, %v1146
      %v1205 = vsel %vm550, 0, %v1153
      %v1206 = vsel %vm550, 0, %v1160
      %v1207 = vsel %vm550, 0, %v1167
      %v1208 = vsel %vm550, 0, %v1174
      %v1209 = vsel %vm550, 0, %v1181
      %v1210 = vsel %vm550, 0, %v1188
      %v1211 = vsel %vm550, 0, %v1195
      %s1212 = scalar_lea.vmem [#allocation2], 216
      %1213 = vst [vmem:[%s1212] sm:$0xff] %v1204
      %1214 = vst [vmem:[%s1212 + $0x18] sm:$0xff] %v1205
      %1215 = vst [vmem:[%s1212 + $0x30] sm:$0xff] %v1206
      %1216 = vst [vmem:[%s1212 + $0x48] sm:$0xff] %v1207
      %1217 = vst [vmem:[%s1212 + $0x60] sm:$0xff] %v1208
      %1218 = vst [vmem:[%s1212 + $0x78] sm:$0xff] %v1209
      %1219 = vst [vmem:[%s1212 + $0x90] sm:$0xff] %v1210
      %1220 = vst [vmem:[%s1212 + $0xa8] sm:$0xff] %v1211
      %1221 = vst [vmem:[%s1212 + $0x8] sm:$0xff] %v1132
      %1222 = vst [vmem:[%s1212 + $0x20] sm:$0xff] %v1133
      %1223 = vst [vmem:[%s1212 + $0x38] sm:$0xff] %v1134
      %1224 = vst [vmem:[%s1212 + $0x50] sm:$0xff] %v1135
      %1225 = vst [vmem:[%s1212 + $0x68] sm:$0xff] %v1136
      %1226 = vst [vmem:[%s1212 + $0x80] sm:$0xff] %v1137
      %1227 = vst [vmem:[%s1212 + $0x98] sm:$0xff] %v1138
      %1228 = vst [vmem:[%s1212 + $0xb0] sm:$0xff] %v1139
      %v1229 = vrot.slane %v1144, 1
      %v1230 = vor.u32 %v1141, %v1229
      %v1231 = vrot.slane %v1151, 1
      %v1232 = vor.u32 %v1148, %v1231
      %v1233 = vrot.slane %v1158, 1
      %v1234 = vor.u32 %v1155, %v1233
      %v1235 = vrot.slane %v1165, 1
      %v1236 = vor.u32 %v1162, %v1235
      %v1237 = vrot.slane %v1172, 1
      %v1238 = vor.u32 %v1169, %v1237
      %v1239 = vrot.slane %v1179, 1
      %v1240 = vor.u32 %v1176, %v1239
      %v1241 = vrot.slane %v1186, 1
      %v1242 = vor.u32 %v1183, %v1241
      %v1243 = vrot.slane %v1193, 1
      %v1244 = vor.u32 %v1190, %v1243
      %v1253 = vsel %vm559, %v1230, 0
      %v1254 = vsel %vm559, %v1232, 0
      %v1255 = vsel %vm559, %v1234, 0
      %v1256 = vsel %vm559, %v1236, 0
      %v1257 = vsel %vm559, %v1238, 0
      %v1258 = vsel %vm559, %v1240, 0
      %v1259 = vsel %vm559, %v1242, 0
      %v1260 = vsel %vm559, %v1244, 0
      %1261 = vst [vmem:[%s1212 + $0x10] sm:$0xff] %v1253
      %1262 = vst [vmem:[%s1212 + $0x28] sm:$0xff] %v1254
      %1263 = vst [vmem:[%s1212 + $0x40] sm:$0xff] %v1255
      %1264 = vst [vmem:[%s1212 + $0x58] sm:$0xff] %v1256
      %1265 = vst [vmem:[%s1212 + $0x70] sm:$0xff] %v1257
      %1266 = vst [vmem:[%s1212 + $0x88] sm:$0xff] %v1258
      %1267 = vst [vmem:[%s1212 + $0xa0] sm:$0xff] %v1259
      %1268 = vst [vmem:[%s1212 + $0xb8] sm:$0xff] %v1260
      %v1269 = vld [vmem:[%s431] sm:$0xf]
      %v1270 = vld [vmem:[%s431 + $0x4] sm:$0xf]
      %v1271 = vld [vmem:[%s3] sm:$0xf]
      %v1272 = vld [vmem:[%s3 + $0x4] sm:$0xf]
      %v1273 = vld [vmem:[%s3 + $0x8] sm:$0xf]
      %v1274 = vld [vmem:[%s3 + $0xc] sm:$0xf]
      %v1275 = vld [vmem:[%s3 + $0x10] sm:$0x3]
      %v1278 = vunpack.c.l.b16 %v1269
      %v1279 = vunpack.c.l.b16 %v1270
      %v1280 = vpack.c.b16 %v1279, %v1278
      %v1286 = vunpack.c.l.b16 %v1271
      %v1287 = vunpack.c.l.b16 %v1272
      %v1288 = vunpack.c.l.b16 %v1273
      %v1289 = vunpack.c.l.b16 %v1274
      %v1290 = vunpack.c.l.b16 %v1275
      %v1291 = vpack.c.b16 %v1287, %v1286
      %v1292 = vpack.c.b16 %v1289, %v1288
      %v1293 = vpack.c.b16 %v1290, %v1290
      %v1297 = vsel %vm483, %v1280, 0
      %v1300 = vsel %vm487, %v1293, 0
      %1302 = vmatprep.subr.bf16.mxu0 0
      %1303 = vmatpush1.bf16.msra.mxu0 %v1291
      %1304 = vmatprep.subr.bf16.mxu0 0
      %1305 = vmatpush1.bf16.msra.mxu0 %v1292
      %1306 = vmatprep.subr.bf16.mxu0 0
      %1307 = vmatpush1.bf16.msra.mxu0 %v1300
      %1308 = vmatprep.subr.bf16.mxu0 0
      %1309 = vmatpush1.bf16.msra.mxu0 0
      %1310 = vmatprep.subr.bf16.mxu0 0
      %1311 = vmatpush1.bf16.msra.mxu0 0
      %1312 = vmatprep.subr.bf16.mxu0 0
      %1313 = vmatpush1.bf16.msra.mxu0 0
      %1314 = vmatprep.subr.bf16.mxu0 0
      %1315 = vmatpush1.bf16.msra.mxu0 0
      %1316 = vmatprep.subr.bf16.mxu0 0
      %1317 = vmatpush1.bf16.msra.mxu0 0
      %1318 = vmatprep.subr.bf16.mxu0 0
      %1319 = vmatpush1.bf16.msra.mxu0 0
      %1320 = vmatprep.subr.bf16.mxu0 0
      %1321 = vmatpush1.bf16.msra.mxu0 0
      %1322 = vmatprep.subr.bf16.mxu0 0
      %1323 = vmatpush1.bf16.msra.mxu0 0
      %1324 = vmatprep.subr.bf16.mxu0 0
      %1325 = vmatpush1.bf16.msra.mxu0 0
      %1326 = vmatprep.subr.bf16.mxu0 0
      %1327 = vmatpush1.bf16.msra.mxu0 0
      %1328 = vmatprep.subr.bf16.mxu0 0
      %1329 = vmatpush1.bf16.msra.mxu0 0
      %1330 = vmatprep.subr.bf16.mxu0 0
      %1331 = vmatpush1.bf16.msra.mxu0 0
      %1332 = vmatprep.subr.bf16.mxu0 0
      %1333 = vmatpush1.bf16.msra.mxu0 0
      %1334 = vmatprep.mubr.bf16.mxu0 0
      %1335 = vmatmul.mubr.bf16.gmra.mrb[0].mxu0 %v1297
      %v1336 = vpop.f32.mrb[0].mxu0
      %v1337 = vadd.f32 %v461, %v1336
      %v1338 = vpop.f32.mrb[0].mxu0
      %v1339 = vpop.f32.mrb[0].mxu0
      %v1340 = vadd.f32 %v461, %v1339
      %v1341 = vpop.f32.mrb[0].mxu0
      %1342 = vdwg.mxu0
      %v1343 = vmax.f32 %v1337, 0.0
      %v1344 = vmax.f32 %v1340, 0.0
      %v1345 = vpack.c.bf16 %v1344, %v1343
      %p1346 = scmp.lt.s32.totalorder %s23, 0
      %s1347 = scalar_select %p1346, 1, 0
      %v1348 = vstv %s1347
      %vm1349 = vcmp.eq.s32.totalorder %v1348, 1
      %v1350 = vsel %vm1349, %v1345, 0
      %v1352 = vshrl.u32 %v1350, 16
      %v1354 = vrot.slane %v1352, 7
      %v1355 = vshll.u32 %v1350, 16
      %v1357 = vor.u32 %v1354, %v1355
      %v1359 = vsel %vm550, 0, %v1357
      %s1360 = scalar_lea.vmem [#allocation2], 408
      %1361 = vst [vmem:[%s1360] sm:$0xff] %v1359
      %1362 = vst [vmem:[%s1360 + $0x8] sm:$0xff] %v1350
      %v1363 = vrot.slane %v1355, 1
      %v1364 = vor.u32 %v1352, %v1363
      %v1366 = vsel %vm559, %v1364, 0
      %1367 = vst [vmem:[%s1360 + $0x10] sm:$0xff] %v1366
      %v1368 = vld [vmem:[#allocation2] sm:$0xff]
      %v1369 = vld [vmem:[#allocation2 + $0x8] sm:$0xff]
      %v1370 = vld [vmem:[#allocation2 + $0x10] sm:$0xff]
      %v1371 = vld [vmem:[#allocation2 + $0x18] sm:$0xff]
      %v1372 = vld [vmem:[#allocation2 + $0x20] sm:$0xff]
      %v1373 = vld [vmem:[#allocation2 + $0x28] sm:$0xff]
      %v1374 = vld [vmem:[#allocation2 + $0x30] sm:$0xff]
      %v1375 = vld [vmem:[#allocation2 + $0x38] sm:$0xff]
      %v1376 = vld [vmem:[#allocation2 + $0x40] sm:$0xff]
      %v1377 = vld [vmem:[#allocation2 + $0x48] sm:$0xff]
      %v1378 = vld [vmem:[#allocation2 + $0x50] sm:$0xff]
      %v1379 = vld [vmem:[#allocation2 + $0x58] sm:$0xff]
      %v1380 = vld [vmem:[#allocation2 + $0x60] sm:$0xff]
      %v1381 = vld [vmem:[#allocation2 + $0x68] sm:$0xff]
      %v1382 = vld [vmem:[#allocation2 + $0x70] sm:$0xff]
      %v1383 = vld [vmem:[#allocation2 + $0x78] sm:$0xff]
      %v1384 = vld [vmem:[#allocation2 + $0x80] sm:$0xff]
      %v1385 = vld [vmem:[#allocation2 + $0x88] sm:$0xff]
      %v1386 = vld [vmem:[#allocation2 + $0x90] sm:$0xff]
      %v1387 = vld [vmem:[#allocation2 + $0x98] sm:$0xff]
      %v1388 = vld [vmem:[#allocation2 + $0xa0] sm:$0xff]
      %v1389 = vld [vmem:[#allocation2 + $0xa8] sm:$0xff]
      %v1390 = vld [vmem:[#allocation2 + $0xb0] sm:$0xff]
      %v1391 = vld [vmem:[#allocation2 + $0xb8] sm:$0xff]
      %v1392 = vld [vmem:[%s5] sm:$0xf]
      %v1393 = vld [vmem:[%s5 + $0x4] sm:$0xf]
      %v1394 = vld [vmem:[%s5 + $0x8] sm:$0xf]
      %v1395 = vld [vmem:[%s5 + $0xc] sm:$0xf]
      %v1396 = vld [vmem:[%s5 + $0x10] sm:$0xf]
      %v1397 = vld [vmem:[%s5 + $0x14] sm:$0xf]
      %v1398 = vld [vmem:[%s5 + $0x18] sm:$0xf]
      %v1399 = vld [vmem:[%s5 + $0x1c] sm:$0xf]
      %v1400 = vld [vmem:[%s5 + $0x20] sm:$0xf]
      %v1401 = vld [vmem:[%s5 + $0x24] sm:$0xf]
      %v1402 = vld [vmem:[%s5 + $0x28] sm:$0xf]
      %v1403 = vld [vmem:[%s5 + $0x2c] sm:$0xf]
      %v1404 = vld [vmem:[%s5 + $0x30] sm:$0xf]
      %v1405 = vld [vmem:[%s5 + $0x34] sm:$0xf]
      %v1406 = vld [vmem:[%s5 + $0x38] sm:$0xf]
      %v1407 = vld [vmem:[%s5 + $0x3c] sm:$0xf]
      %v1408 = vld [vmem:[%s5 + $0x40] sm:$0xf]
      %v1409 = vld [vmem:[%s5 + $0x44] sm:$0xf]
      %v1410 = vld [vmem:[%s5 + $0x48] sm:$0xf]
      %v1411 = vld [vmem:[%s5 + $0x4c] sm:$0xf]
      %v1412 = vld [vmem:[%s5 + $0x50] sm:$0xf]
      %v1413 = vld [vmem:[%s5 + $0x54] sm:$0xf]
      %v1414 = vld [vmem:[%s5 + $0x58] sm:$0xf]
      %v1415 = vld [vmem:[%s5 + $0x5c] sm:$0xf]
      %v1416 = vld [vmem:[%s5 + $0x60] sm:$0xf]
      %v1417 = vld [vmem:[%s5 + $0x64] sm:$0xf]
      %v1418 = vld [vmem:[%s5 + $0x68] sm:$0xf]
      %v1419 = vld [vmem:[%s5 + $0x6c] sm:$0xf]
      %v1420 = vld [vmem:[%s5 + $0x70] sm:$0xf]
      %v1421 = vld [vmem:[%s5 + $0x74] sm:$0xf]
      %v1422 = vld [vmem:[%s5 + $0x78] sm:$0xf]
      %v1423 = vld [vmem:[%s5 + $0x7c] sm:$0xf]
      %v1424 = vld [vmem:[%s5 + $0x80] sm:$0xf]
      %v1425 = vld [vmem:[%s5 + $0x84] sm:$0xf]
      %v1426 = vld [vmem:[%s5 + $0x88] sm:$0xf]
      %v1427 = vld [vmem:[%s5 + $0x8c] sm:$0xf]
      %v1428 = vld [vmem:[%s5 + $0x90] sm:$0xf]
      %v1429 = vld [vmem:[%s5 + $0x94] sm:$0xf]
      %v1430 = vld [vmem:[%s5 + $0x98] sm:$0xf]
      %v1431 = vld [vmem:[%s5 + $0x9c] sm:$0xf]
      %v1432 = vld [vmem:[%s5 + $0xa0] sm:$0xf]
      %v1433 = vld [vmem:[%s5 + $0xa4] sm:$0xf]
      %v1434 = vld [vmem:[%s5 + $0xa8] sm:$0xf]
      %v1435 = vld [vmem:[%s5 + $0xac] sm:$0xf]
      %v1436 = vld [vmem:[%s5 + $0xb0] sm:$0xf]
      %v1437 = vld [vmem:[%s5 + $0xb4] sm:$0xf]
      %v1438 = vld [vmem:[%s5 + $0xb8] sm:$0xf]
      %v1439 = vld [vmem:[%s5 + $0xbc] sm:$0xf]
      %v1440 = vld [vmem:[%s858] sm:$0xff]
      %v1441 = vld [vmem:[%s858 + $0x8] sm:$0xff]
      %v1442 = vld [vmem:[%s858 + $0x10] sm:$0xff]
      %v1443 = vld [vmem:[%s858 + $0x18] sm:$0xff]
      %v1444 = vld [vmem:[%s858 + $0x20] sm:$0xff]
      %v1445 = vld [vmem:[%s858 + $0x28] sm:$0xff]
      %v1446 = vld [vmem:[%s858 + $0x30] sm:$0xff]
      %v1447 = vld [vmem:[%s858 + $0x38] sm:$0xff]
      %v1448 = vld [vmem:[%s858 + $0x40] sm:$0xff]
      %v1449 = vld [vmem:[%s858 + $0x48] sm:$0xff]
      %v1450 = vld [vmem:[%s858 + $0x50] sm:$0xff]
      %v1451 = vld [vmem:[%s858 + $0x58] sm:$0xff]
      %v1452 = vld [vmem:[%s858 + $0x60] sm:$0xff]
      %v1453 = vld [vmem:[%s858 + $0x68] sm:$0xff]
      %v1454 = vld [vmem:[%s858 + $0x70] sm:$0xff]
      %v1455 = vld [vmem:[%s858 + $0x78] sm:$0xff]
      %v1456 = vld [vmem:[%s858 + $0x80] sm:$0xff]
      %v1457 = vld [vmem:[%s858 + $0x88] sm:$0xff]
      %v1458 = vld [vmem:[%s858 + $0x90] sm:$0xff]
      %v1459 = vld [vmem:[%s858 + $0x98] sm:$0xff]
      %v1460 = vld [vmem:[%s858 + $0xa0] sm:$0xff]
      %v1461 = vld [vmem:[%s858 + $0xa8] sm:$0xff]
      %v1462 = vld [vmem:[%s858 + $0xb0] sm:$0xff]
      %v1463 = vld [vmem:[%s858 + $0xb8] sm:$0xff]
      %s1464 = scalar_lea.vmem %s5, 192
      %v1465 = vld [vmem:[%s1464] sm:$0xf]
      %v1466 = vld [vmem:[%s1464 + $0x4] sm:$0xf]
      %v1467 = vld [vmem:[%s1464 + $0x8] sm:$0xf]
      %v1468 = vld [vmem:[%s1464 + $0xc] sm:$0xf]
      %v1469 = vld [vmem:[%s1464 + $0x10] sm:$0xf]
      %v1470 = vld [vmem:[%s1464 + $0x14] sm:$0xf]
      %v1471 = vld [vmem:[%s1464 + $0x18] sm:$0xf]
      %v1472 = vld [vmem:[%s1464 + $0x1c] sm:$0xf]
      %v1473 = vld [vmem:[%s1464 + $0x20] sm:$0xf]
      %v1474 = vld [vmem:[%s1464 + $0x24] sm:$0xf]
      %v1475 = vld [vmem:[%s1464 + $0x28] sm:$0xf]
      %v1476 = vld [vmem:[%s1464 + $0x2c] sm:$0xf]
      %v1477 = vld [vmem:[%s1464 + $0x30] sm:$0xf]
      %v1478 = vld [vmem:[%s1464 + $0x34] sm:$0xf]
      %v1479 = vld [vmem:[%s1464 + $0x38] sm:$0xf]
      %v1480 = vld [vmem:[%s1464 + $0x3c] sm:$0xf]
      %v1481 = vld [vmem:[%s1464 + $0x40] sm:$0xf]
      %v1482 = vld [vmem:[%s1464 + $0x44] sm:$0xf]
      %v1483 = vld [vmem:[%s1464 + $0x48] sm:$0xf]
      %v1484 = vld [vmem:[%s1464 + $0x4c] sm:$0xf]
      %v1485 = vld [vmem:[%s1464 + $0x50] sm:$0xf]
      %v1486 = vld [vmem:[%s1464 + $0x54] sm:$0xf]
      %v1487 = vld [vmem:[%s1464 + $0x58] sm:$0xf]
      %v1488 = vld [vmem:[%s1464 + $0x5c] sm:$0xf]
      %v1489 = vld [vmem:[%s1464 + $0x60] sm:$0xf]
      %v1490 = vld [vmem:[%s1464 + $0x64] sm:$0xf]
      %v1491 = vld [vmem:[%s1464 + $0x68] sm:$0xf]
      %v1492 = vld [vmem:[%s1464 + $0x6c] sm:$0xf]
      %v1493 = vld [vmem:[%s1464 + $0x70] sm:$0xf]
      %v1494 = vld [vmem:[%s1464 + $0x74] sm:$0xf]
      %v1495 = vld [vmem:[%s1464 + $0x78] sm:$0xf]
      %v1496 = vld [vmem:[%s1464 + $0x7c] sm:$0xf]
      %v1497 = vld [vmem:[%s1464 + $0x80] sm:$0xf]
      %v1498 = vld [vmem:[%s1464 + $0x84] sm:$0xf]
      %v1499 = vld [vmem:[%s1464 + $0x88] sm:$0xf]
      %v1500 = vld [vmem:[%s1464 + $0x8c] sm:$0xf]
      %v1501 = vld [vmem:[%s1464 + $0x90] sm:$0xf]
      %v1502 = vld [vmem:[%s1464 + $0x94] sm:$0xf]
      %v1503 = vld [vmem:[%s1464 + $0x98] sm:$0xf]
      %v1504 = vld [vmem:[%s1464 + $0x9c] sm:$0xf]
      %v1505 = vld [vmem:[%s1464 + $0xa0] sm:$0xf]
      %v1506 = vld [vmem:[%s1464 + $0xa4] sm:$0xf]
      %v1507 = vld [vmem:[%s1464 + $0xa8] sm:$0xf]
      %v1508 = vld [vmem:[%s1464 + $0xac] sm:$0xf]
      %v1509 = vld [vmem:[%s1464 + $0xb0] sm:$0xf]
      %v1510 = vld [vmem:[%s1464 + $0xb4] sm:$0xf]
      %v1511 = vld [vmem:[%s1464 + $0xb8] sm:$0xf]
      %v1512 = vld [vmem:[%s1464 + $0xbc] sm:$0xf]
      %v1561 = vunpack.c.l.b16 %v1465
      %v1562 = vunpack.c.l.b16 %v1466
      %v1563 = vunpack.c.l.b16 %v1467
      %v1564 = vunpack.c.l.b16 %v1468
      %v1565 = vunpack.c.l.b16 %v1469
      %v1566 = vunpack.c.l.b16 %v1470
      %v1567 = vunpack.c.l.b16 %v1471
      %v1568 = vunpack.c.l.b16 %v1472
      %v1569 = vunpack.c.l.b16 %v1473
      %v1570 = vunpack.c.l.b16 %v1474
      %v1571 = vunpack.c.l.b16 %v1475
      %v1572 = vunpack.c.l.b16 %v1476
      %v1573 = vunpack.c.l.b16 %v1477
      %v1574 = vunpack.c.l.b16 %v1478
      %v1575 = vunpack.c.l.b16 %v1479
      %v1576 = vunpack.c.l.b16 %v1480
      %v1577 = vunpack.c.l.b16 %v1481
      %v1578 = vunpack.c.l.b16 %v1482
      %v1579 = vunpack.c.l.b16 %v1483
      %v1580 = vunpack.c.l.b16 %v1484
      %v1581 = vunpack.c.l.b16 %v1485
      %v1582 = vunpack.c.l.b16 %v1486
      %v1583 = vunpack.c.l.b16 %v1487
      %v1584 = vunpack.c.l.b16 %v1488
      %v1585 = vunpack.c.l.b16 %v1489
      %v1586 = vunpack.c.l.b16 %v1490
      %v1587 = vunpack.c.l.b16 %v1491
      %v1588 = vunpack.c.l.b16 %v1492
      %v1589 = vunpack.c.l.b16 %v1493
      %v1590 = vunpack.c.l.b16 %v1494
      %v1591 = vunpack.c.l.b16 %v1495
      %v1592 = vunpack.c.l.b16 %v1496
      %v1593 = vunpack.c.l.b16 %v1497
      %v1594 = vunpack.c.l.b16 %v1498
      %v1595 = vunpack.c.l.b16 %v1499
      %v1596 = vunpack.c.l.b16 %v1500
      %v1597 = vunpack.c.l.b16 %v1501
      %v1598 = vunpack.c.l.b16 %v1502
      %v1599 = vunpack.c.l.b16 %v1503
      %v1600 = vunpack.c.l.b16 %v1504
      %v1601 = vunpack.c.l.b16 %v1505
      %v1602 = vunpack.c.l.b16 %v1506
      %v1603 = vunpack.c.l.b16 %v1507
      %v1604 = vunpack.c.l.b16 %v1508
      %v1605 = vunpack.c.l.b16 %v1509
      %v1606 = vunpack.c.l.b16 %v1510
      %v1607 = vunpack.c.l.b16 %v1511
      %v1608 = vunpack.c.l.b16 %v1512
      %v1609 = vpack.c.b16 %v1562, %v1561
      %v1610 = vpack.c.b16 %v1564, %v1563
      %v1611 = vpack.c.b16 %v1566, %v1565
      %v1612 = vpack.c.b16 %v1568, %v1567
      %v1613 = vpack.c.b16 %v1570, %v1569
      %v1614 = vpack.c.b16 %v1572, %v1571
      %v1615 = vpack.c.b16 %v1574, %v1573
      %v1616 = vpack.c.b16 %v1576, %v1575
      %v1617 = vpack.c.b16 %v1578, %v1577
      %v1618 = vpack.c.b16 %v1580, %v1579
      %v1619 = vpack.c.b16 %v1582, %v1581
      %v1620 = vpack.c.b16 %v1584, %v1583
      %v1621 = vpack.c.b16 %v1586, %v1585
      %v1622 = vpack.c.b16 %v1588, %v1587
      %v1623 = vpack.c.b16 %v1590, %v1589
      %v1624 = vpack.c.b16 %v1592, %v1591
      %v1625 = vpack.c.b16 %v1594, %v1593
      %v1626 = vpack.c.b16 %v1596, %v1595
      %v1627 = vpack.c.b16 %v1598, %v1597
      %v1628 = vpack.c.b16 %v1600, %v1599
      %v1629 = vpack.c.b16 %v1602, %v1601
      %v1630 = vpack.c.b16 %v1604, %v1603
      %v1631 = vpack.c.b16 %v1606, %v1605
      %v1632 = vpack.c.b16 %v1608, %v1607
      %1657 = vmatprep.subr.bf16.mxu0 0
      %1658 = vmatpush1.bf16.msra.mxu0 %v1609
      %1659 = vmatprep.subr.bf16.mxu0 0
      %1660 = vmatpush1.bf16.msra.mxu0 %v1610
      %1661 = vmatprep.subr.bf16.mxu0 0
      %1662 = vmatpush1.bf16.msra.mxu0 %v1611
      %1663 = vmatprep.subr.bf16.mxu0 0
      %1664 = vmatpush1.bf16.msra.mxu0 %v1612
      %1665 = vmatprep.subr.bf16.mxu0 0
      %1666 = vmatpush1.bf16.msra.mxu0 %v1613
      %1667 = vmatprep.subr.bf16.mxu0 0
      %1668 = vmatpush1.bf16.msra.mxu0 %v1614
      %1669 = vmatprep.subr.bf16.mxu0 0
      %1670 = vmatpush1.bf16.msra.mxu0 %v1615
      %1671 = vmatprep.subr.bf16.mxu0 0
      %1672 = vmatpush1.bf16.msra.mxu0 %v1616
      %1673 = vmatprep.subr.bf16.mxu0 0
      %1674 = vmatpush1.bf16.msra.mxu0 %v1617
      %1675 = vmatprep.subr.bf16.mxu0 0
      %1676 = vmatpush1.bf16.msra.mxu0 %v1618
      %1677 = vmatprep.subr.bf16.mxu0 0
      %1678 = vmatpush1.bf16.msra.mxu0 %v1619
      %1679 = vmatprep.subr.bf16.mxu0 0
      %1680 = vmatpush1.bf16.msra.mxu0 %v1620
      %1681 = vmatprep.subr.bf16.mxu0 0
      %1682 = vmatpush1.bf16.msra.mxu0 %v1621
      %1683 = vmatprep.subr.bf16.mxu0 0
      %1684 = vmatpush1.bf16.msra.mxu0 %v1622
      %1685 = vmatprep.subr.bf16.mxu0 0
      %1686 = vmatpush1.bf16.msra.mxu0 %v1623
      %1687 = vmatprep.subr.bf16.mxu0 0
      %1688 = vmatpush1.bf16.msra.mxu0 %v1624
      %1689 = vmatprep.mubr.bf16.mxu0 %v1441
      %1690 = vmatmul.mubr.bf16.gmra.mrb[0].mxu0 %v1440
      %v1691 = vpop.f32.mrb[0].mxu0
      %v1692 = vadd.f32 0.0, %v1691
      %v1693 = vpop.f32.mrb[0].mxu0
      %v1694 = vpop.f32.mrb[0].mxu0
      %v1695 = vadd.f32 0.0, %v1694
      %v1696 = vpop.f32.mrb[0].mxu0
      %1697 = vmatprep.mubr.bf16.mxu0 %v1444
      %1698 = vmatmul.mubr.bf16.gmra.mrb[0].mxu0 %v1443
      %v1699 = vpop.f32.mrb[0].mxu0
      %v1700 = vadd.f32 0.0, %v1699
      %v1701 = vpop.f32.mrb[0].mxu0
      %v1702 = vpop.f32.mrb[0].mxu0
      %v1703 = vadd.f32 0.0, %v1702
      %v1704 = vpop.f32.mrb[0].mxu0
      %1705 = vmatprep.mubr.bf16.mxu0 %v1447
      %1706 = vmatmul.mubr.bf16.gmra.mrb[0].mxu0 %v1446
      %v1707 = vpop.f32.mrb[0].mxu0
      %v1708 = vadd.f32 0.0, %v1707
      %v1709 = vpop.f32.mrb[0].mxu0
      %v1710 = vpop.f32.mrb[0].mxu0
      %v1711 = vadd.f32 0.0, %v1710
      %v1712 = vpop.f32.mrb[0].mxu0
      %1713 = vmatprep.mubr.bf16.mxu0 %v1450
      %1714 = vmatmul.mubr.bf16.gmra.mrb[0].mxu0 %v1449
      %v1715 = vpop.f32.mrb[0].mxu0
      %v1716 = vadd.f32 0.0, %v1715
      %v1717 = vpop.f32.mrb[0].mxu0
      %v1718 = vpop.f32.mrb[0].mxu0
      %v1719 = vadd.f32 0.0, %v1718
      %v1720 = vpop.f32.mrb[0].mxu0
      %1721 = vmatprep.mubr.bf16.mxu0 %v1453
      %1722 = vmatmul.mubr.bf16.gmra.mrb[0].mxu0 %v1452
      %v1723 = vpop.f32.mrb[0].mxu0
      %v1724 = vadd.f32 0.0, %v1723
      %v1725 = vpop.f32.mrb[0].mxu0
      %v1726 = vpop.f32.mrb[0].mxu0
      %v1727 = vadd.f32 0.0, %v1726
      %v1728 = vpop.f32.mrb[0].mxu0
      %1729 = vmatprep.mubr.bf16.mxu0 %v1456
      %1730 = vmatmul.mubr.bf16.gmra.mrb[0].mxu0 %v1455
      %v1731 = vpop.f32.mrb[0].mxu0
      %v1732 = vadd.f32 0.0, %v1731
      %v1733 = vpop.f32.mrb[0].mxu0
      %v1734 = vpop.f32.mrb[0].mxu0
      %v1735 = vadd.f32 0.0, %v1734
      %v1736 = vpop.f32.mrb[0].mxu0
      %1737 = vmatprep.mubr.bf16.mxu0 %v1459
      %1738 = vmatmul.mubr.bf16.gmra.mrb[0].mxu0 %v1458
      %v1739 = vpop.f32.mrb[0].mxu0
      %v1740 = vadd.f32 0.0, %v1739
      %v1741 = vpop.f32.mrb[0].mxu0
      %v1742 = vpop.f32.mrb[0].mxu0
      %v1743 = vadd.f32 0.0, %v1742
      %v1744 = vpop.f32.mrb[0].mxu0
      %1745 = vmatprep.mubr.bf16.mxu0 %v1462
      %1746 = vmatmul.mubr.bf16.gmra.mrb[0].mxu0 %v1461
      %v1747 = vpop.f32.mrb[0].mxu0
      %v1748 = vadd.f32 0.0, %v1747
      %v1749 = vpop.f32.mrb[0].mxu0
      %v1750 = vpop.f32.mrb[0].mxu0
      %v1751 = vadd.f32 0.0, %v1750
      %v1752 = vpop.f32.mrb[0].mxu0
      %1753 = vdwg.mxu0
      %1754 = vmatprep.subr.bf16.mxu0 0
      %1755 = vmatpush1.bf16.msra.mxu0 %v1625
      %1756 = vmatprep.subr.bf16.mxu0 0
      %1757 = vmatpush1.bf16.msra.mxu0 %v1626
      %1758 = vmatprep.subr.bf16.mxu0 0
      %1759 = vmatpush1.bf16.msra.mxu0 %v1627
      %1760 = vmatprep.subr.bf16.mxu0 0
      %1761 = vmatpush1.bf16.msra.mxu0 %v1628
      %1762 = vmatprep.subr.bf16.mxu0 0
      %1763 = vmatpush1.bf16.msra.mxu0 %v1629
      %1764 = vmatprep.subr.bf16.mxu0 0
      %1765 = vmatpush1.bf16.msra.mxu0 %v1630
      %1766 = vmatprep.subr.bf16.mxu0 0
      %1767 = vmatpush1.bf16.msra.mxu0 %v1631
      %1768 = vmatprep.subr.bf16.mxu0 0
      %1769 = vmatpush1.bf16.msra.mxu0 %v1632
      %1770 = vmatprep.subr.bf16.mxu0 0
      %1771 = vmatpush1.bf16.msra.mxu0 0
      %1772 = vmatprep.subr.bf16.mxu0 0
      %1773 = vmatpush1.bf16.msra.mxu0 0
      %1774 = vmatprep.subr.bf16.mxu0 0
      %1775 = vmatpush1.bf16.msra.mxu0 0
      %1776 = vmatprep.subr.bf16.mxu0 0
      %1777 = vmatpush1.bf16.msra.mxu0 0
      %1778 = vmatprep.subr.bf16.mxu0 0
      %1779 = vmatpush1.bf16.msra.mxu0 0
      %1780 = vmatprep.subr.bf16.mxu0 0
      %1781 = vmatpush1.bf16.msra.mxu0 0
      %1782 = vmatprep.subr.bf16.mxu0 0
      %1783 = vmatpush1.bf16.msra.mxu0 0
      %1784 = vmatprep.subr.bf16.mxu0 0
      %1785 = vmatpush1.bf16.msra.mxu0 0
      %1786 = vmatprep.mubr.bf16.mxu0 0
      %1787 = vmatmul.mubr.bf16.gmra.mrb[0].mxu0 %v1442
      %v1788 = vpop.f32.mrb[0].mxu0
      %v1789 = vadd.f32 %v1692, %v1788
      %v1790 = vpop.f32.mrb[0].mxu0
      %v1791 = vpop.f32.mrb[0].mxu0
      %v1792 = vadd.f32 %v1695, %v1791
      %v1793 = vpop.f32.mrb[0].mxu0
      %1794 = vmatprep.mubr.bf16.mxu0 0
      %1795 = vmatmul.mubr.bf16.gmra.mrb[0].mxu0 %v1445
      %v1796 = vpop.f32.mrb[0].mxu0
      %v1797 = vadd.f32 %v1700, %v1796
      %v1798 = vpop.f32.mrb[0].mxu0
      %v1799 = vpop.f32.mrb[0].mxu0
      %v1800 = vadd.f32 %v1703, %v1799
      %v1801 = vpop.f32.mrb[0].mxu0
      %1802 = vmatprep.mubr.bf16.mxu0 0
      %1803 = vmatmul.mubr.bf16.gmra.mrb[0].mxu0 %v1448
      %v1804 = vpop.f32.mrb[0].mxu0
      %v1805 = vadd.f32 %v1708, %v1804
      %v1806 = vpop.f32.mrb[0].mxu0
      %v1807 = vpop.f32.mrb[0].mxu0
      %v1808 = vadd.f32 %v1711, %v1807
      %v1809 = vpop.f32.mrb[0].mxu0
      %1810 = vmatprep.mubr.bf16.mxu0 0
      %1811 = vmatmul.mubr.bf16.gmra.mrb[0].mxu0 %v1451
      %v1812 = vpop.f32.mrb[0].mxu0
      %v1813 = vadd.f32 %v1716, %v1812
      %v1814 = vpop.f32.mrb[0].mxu0
      %v1815 = vpop.f32.mrb[0].mxu0
      %v1816 = vadd.f32 %v1719, %v1815
      %v1817 = vpop.f32.mrb[0].mxu0
      %1818 = vmatprep.mubr.bf16.mxu0 0
      %1819 = vmatmul.mubr.bf16.gmra.mrb[0].mxu0 %v1454
      %v1820 = vpop.f32.mrb[0].mxu0
      %v1821 = vadd.f32 %v1724, %v1820
      %v1822 = vpop.f32.mrb[0].mxu0
      %v1823 = vpop.f32.mrb[0].mxu0
      %v1824 = vadd.f32 %v1727, %v1823
      %v1825 = vpop.f32.mrb[0].mxu0
      %1826 = vmatprep.mubr.bf16.mxu0 0
      %1827 = vmatmul.mubr.bf16.gmra.mrb[0].mxu0 %v1457
      %v1828 = vpop.f32.mrb[0].mxu0
      %v1829 = vadd.f32 %v1732, %v1828
      %v1830 = vpop.f32.mrb[0].mxu0
      %v1831 = vpop.f32.mrb[0].mxu0
      %v1832 = vadd.f32 %v1735, %v1831
      %v1833 = vpop.f32.mrb[0].mxu0
      %1834 = vmatprep.mubr.bf16.mxu0 0
      %1835 = vmatmul.mubr.bf16.gmra.mrb[0].mxu0 %v1460
      %v1836 = vpop.f32.mrb[0].mxu0
      %v1837 = vadd.f32 %v1740, %v1836
      %v1838 = vpop.f32.mrb[0].mxu0
      %v1839 = vpop.f32.mrb[0].mxu0
      %v1840 = vadd.f32 %v1743, %v1839
      %v1841 = vpop.f32.mrb[0].mxu0
      %1842 = vmatprep.mubr.bf16.mxu0 0
      %1843 = vmatmul.mubr.bf16.gmra.mrb[0].mxu0 %v1463
      %v1844 = vpop.f32.mrb[0].mxu0
      %v1845 = vadd.f32 %v1748, %v1844
      %v1846 = vpop.f32.mrb[0].mxu0
      %v1847 = vpop.f32.mrb[0].mxu0
      %v1848 = vadd.f32 %v1751, %v1847
      %v1849 = vpop.f32.mrb[0].mxu0
      %1850 = vdwg.mxu0
      %v1899 = vunpack.c.l.b16 %v1392
      %v1900 = vunpack.c.l.b16 %v1393
      %v1901 = vunpack.c.l.b16 %v1394
      %v1902 = vunpack.c.l.b16 %v1395
      %v1903 = vunpack.c.l.b16 %v1396
      %v1904 = vunpack.c.l.b16 %v1397
      %v1905 = vunpack.c.l.b16 %v1398
      %v1906 = vunpack.c.l.b16 %v1399
      %v1907 = vunpack.c.l.b16 %v1400
      %v1908 = vunpack.c.l.b16 %v1401
      %v1909 = vunpack.c.l.b16 %v1402
      %v1910 = vunpack.c.l.b16 %v1403
      %v1911 = vunpack.c.l.b16 %v1404
      %v1912 = vunpack.c.l.b16 %v1405
      %v1913 = vunpack.c.l.b16 %v1406
      %v1914 = vunpack.c.l.b16 %v1407
      %v1915 = vunpack.c.l.b16 %v1408
      %v1916 = vunpack.c.l.b16 %v1409
      %v1917 = vunpack.c.l.b16 %v1410
      %v1918 = vunpack.c.l.b16 %v1411
      %v1919 = vunpack.c.l.b16 %v1412
      %v1920 = vunpack.c.l.b16 %v1413
      %v1921 = vunpack.c.l.b16 %v1414
      %v1922 = vunpack.c.l.b16 %v1415
      %v1923 = vunpack.c.l.b16 %v1416
      %v1924 = vunpack.c.l.b16 %v1417
      %v1925 = vunpack.c.l.b16 %v1418
      %v1926 = vunpack.c.l.b16 %v1419
      %v1927 = vunpack.c.l.b16 %v1420
      %v1928 = vunpack.c.l.b16 %v1421
      %v1929 = vunpack.c.l.b16 %v1422
      %v1930 = vunpack.c.l.b16 %v1423
      %v1931 = vunpack.c.l.b16 %v1424
      %v1932 = vunpack.c.l.b16 %v1425
      %v1933 = vunpack.c.l.b16 %v1426
      %v1934 = vunpack.c.l.b16 %v1427
      %v1935 = vunpack.c.l.b16 %v1428
      %v1936 = vunpack.c.l.b16 %v1429
      %v1937 = vunpack.c.l.b16 %v1430
      %v1938 = vunpack.c.l.b16 %v1431
      %v1939 = vunpack.c.l.b16 %v1432
      %v1940 = vunpack.c.l.b16 %v1433
      %v1941 = vunpack.c.l.b16 %v1434
      %v1942 = vunpack.c.l.b16 %v1435
      %v1943 = vunpack.c.l.b16 %v1436
      %v1944 = vunpack.c.l.b16 %v1437
      %v1945 = vunpack.c.l.b16 %v1438
      %v1946 = vunpack.c.l.b16 %v1439
      %v1947 = vpack.c.b16 %v1900, %v1899
      %v1948 = vpack.c.b16 %v1902, %v1901
      %v1949 = vpack.c.b16 %v1904, %v1903
      %v1950 = vpack.c.b16 %v1906, %v1905
      %v1951 = vpack.c.b16 %v1908, %v1907
      %v1952 = vpack.c.b16 %v1910, %v1909
      %v1953 = vpack.c.b16 %v1912, %v1911
      %v1954 = vpack.c.b16 %v1914, %v1913
      %v1955 = vpack.c.b16 %v1916, %v1915
      %v1956 = vpack.c.b16 %v1918, %v1917
      %v1957 = vpack.c.b16 %v1920, %v1919
      %v1958 = vpack.c.b16 %v1922, %v1921
      %v1959 = vpack.c.b16 %v1924, %v1923
      %v1960 = vpack.c.b16 %v1926, %v1925
      %v1961 = vpack.c.b16 %v1928, %v1927
      %v1962 = vpack.c.b16 %v1930, %v1929
      %v1963 = vpack.c.b16 %v1932, %v1931
      %v1964 = vpack.c.b16 %v1934, %v1933
      %v1965 = vpack.c.b16 %v1936, %v1935
      %v1966 = vpack.c.b16 %v1938, %v1937
      %v1967 = vpack.c.b16 %v1940, %v1939
      %v1968 = vpack.c.b16 %v1942, %v1941
      %v1969 = vpack.c.b16 %v1944, %v1943
      %v1970 = vpack.c.b16 %v1946, %v1945
      %1995 = vmatprep.subr.bf16.mxu0 0
      %1996 = vmatpush1.bf16.msra.mxu0 %v1947
      %1997 = vmatprep.subr.bf16.mxu0 0
      %1998 = vmatpush1.bf16.msra.mxu0 %v1948
      %1999 = vmatprep.subr.bf16.mxu0 0
      %2000 = vmatpush1.bf16.msra.mxu0 %v1949
      %2001 = vmatprep.subr.bf16.mxu0 0
      %2002 = vmatpush1.bf16.msra.mxu0 %v1950
      %2003 = vmatprep.subr.bf16.mxu0 0
      %2004 = vmatpush1.bf16.msra.mxu0 %v1951
      %2005 = vmatprep.subr.bf16.mxu0 0
      %2006 = vmatpush1.bf16.msra.mxu0 %v1952
      %2007 = vmatprep.subr.bf16.mxu0 0
      %2008 = vmatpush1.bf16.msra.mxu0 %v1953
      %2009 = vmatprep.subr.bf16.mxu0 0
      %2010 = vmatpush1.bf16.msra.mxu0 %v1954
      %2011 = vmatprep.subr.bf16.mxu0 0
      %2012 = vmatpush1.bf16.msra.mxu0 %v1955
      %2013 = vmatprep.subr.bf16.mxu0 0
      %2014 = vmatpush1.bf16.msra.mxu0 %v1956
      %2015 = vmatprep.subr.bf16.mxu0 0
      %2016 = vmatpush1.bf16.msra.mxu0 %v1957
      %2017 = vmatprep.subr.bf16.mxu0 0
      %2018 = vmatpush1.bf16.msra.mxu0 %v1958
      %2019 = vmatprep.subr.bf16.mxu0 0
      %2020 = vmatpush1.bf16.msra.mxu0 %v1959
      %2021 = vmatprep.subr.bf16.mxu0 0
      %2022 = vmatpush1.bf16.msra.mxu0 %v1960
      %2023 = vmatprep.subr.bf16.mxu0 0
      %2024 = vmatpush1.bf16.msra.mxu0 %v1961
      %2025 = vmatprep.subr.bf16.mxu0 0
      %2026 = vmatpush1.bf16.msra.mxu0 %v1962
      %2027 = vmatprep.mubr.bf16.mxu0 %v1369
      %2028 = vmatmul.mubr.bf16.gmra.mrb[0].mxu0 %v1368
      %v2029 = vpop.f32.mrb[0].mxu0
      %v2030 = vadd.f32 %v1789, %v2029
      %v2031 = vpop.f32.mrb[0].mxu0
      %v2032 = vpop.f32.mrb[0].mxu0
      %v2033 = vadd.f32 %v1792, %v2032
      %v2034 = vpop.f32.mrb[0].mxu0
      %2035 = vmatprep.mubr.bf16.mxu0 %v1372
      %2036 = vmatmul.mubr.bf16.gmra.mrb[0].mxu0 %v1371
      %v2037 = vpop.f32.mrb[0].mxu0
      %v2038 = vadd.f32 %v1797, %v2037
      %v2039 = vpop.f32.mrb[0].mxu0
      %v2040 = vpop.f32.mrb[0].mxu0
      %v2041 = vadd.f32 %v1800, %v2040
      %v2042 = vpop.f32.mrb[0].mxu0
      %2043 = vmatprep.mubr.bf16.mxu0 %v1375
      %2044 = vmatmul.mubr.bf16.gmra.mrb[0].mxu0 %v1374
      %v2045 = vpop.f32.mrb[0].mxu0
      %v2046 = vadd.f32 %v1805, %v2045
      %v2047 = vpop.f32.mrb[0].mxu0
      %v2048 = vpop.f32.mrb[0].mxu0
      %v2049 = vadd.f32 %v1808, %v2048
      %v2050 = vpop.f32.mrb[0].mxu0
      %2051 = vmatprep.mubr.bf16.mxu0 %v1378
      %2052 = vmatmul.mubr.bf16.gmra.mrb[0].mxu0 %v1377
      %v2053 = vpop.f32.mrb[0].mxu0
      %v2054 = vadd.f32 %v1813, %v2053
      %v2055 = vpop.f32.mrb[0].mxu0
      %v2056 = vpop.f32.mrb[0].mxu0
      %v2057 = vadd.f32 %v1816, %v2056
      %v2058 = vpop.f32.mrb[0].mxu0
      %2059 = vmatprep.mubr.bf16.mxu0 %v1381
      %2060 = vmatmul.mubr.bf16.gmra.mrb[0].mxu0 %v1380
      %v2061 = vpop.f32.mrb[0].mxu0
      %v2062 = vadd.f32 %v1821, %v2061
      %v2063 = vpop.f32.mrb[0].mxu0
      %v2064 = vpop.f32.mrb[0].mxu0
      %v2065 = vadd.f32 %v1824, %v2064
      %v2066 = vpop.f32.mrb[0].mxu0
      %2067 = vmatprep.mubr.bf16.mxu0 %v1384
      %2068 = vmatmul.mubr.bf16.gmra.mrb[0].mxu0 %v1383
      %v2069 = vpop.f32.mrb[0].mxu0
      %v2070 = vadd.f32 %v1829, %v2069
      %v2071 = vpop.f32.mrb[0].mxu0
      %v2072 = vpop.f32.mrb[0].mxu0
      %v2073 = vadd.f32 %v1832, %v2072
      %v2074 = vpop.f32.mrb[0].mxu0
      %2075 = vmatprep.mubr.bf16.mxu0 %v1387
      %2076 = vmatmul.mubr.bf16.gmra.mrb[0].mxu0 %v1386
      %v2077 = vpop.f32.mrb[0].mxu0
      %v2078 = vadd.f32 %v1837, %v2077
      %v2079 = vpop.f32.mrb[0].mxu0
      %v2080 = vpop.f32.mrb[0].mxu0
      %v2081 = vadd.f32 %v1840, %v2080
      %v2082 = vpop.f32.mrb[0].mxu0
      %2083 = vmatprep.mubr.bf16.mxu0 %v1390
      %2084 = vmatmul.mubr.bf16.gmra.mrb[0].mxu0 %v1389
      %v2085 = vpop.f32.mrb[0].mxu0
      %v2086 = vadd.f32 %v1845, %v2085
      %v2087 = vpop.f32.mrb[0].mxu0
      %v2088 = vpop.f32.mrb[0].mxu0
      %v2089 = vadd.f32 %v1848, %v2088
      %v2090 = vpop.f32.mrb[0].mxu0
      %2091 = vdwg.mxu0
      %2092 = vmatprep.subr.bf16.mxu0 0
      %2093 = vmatpush1.bf16.msra.mxu0 %v1963
      %2094 = vmatprep.subr.bf16.mxu0 0
      %2095 = vmatpush1.bf16.msra.mxu0 %v1964
      %2096 = vmatprep.subr.bf16.mxu0 0
      %2097 = vmatpush1.bf16.msra.mxu0 %v1965
      %2098 = vmatprep.subr.bf16.mxu0 0
      %2099 = vmatpush1.bf16.msra.mxu0 %v1966
      %2100 = vmatprep.subr.bf16.mxu0 0
      %2101 = vmatpush1.bf16.msra.mxu0 %v1967
      %2102 = vmatprep.subr.bf16.mxu0 0
      %2103 = vmatpush1.bf16.msra.mxu0 %v1968
      %2104 = vmatprep.subr.bf16.mxu0 0
      %2105 = vmatpush1.bf16.msra.mxu0 %v1969
      %2106 = vmatprep.subr.bf16.mxu0 0
      %2107 = vmatpush1.bf16.msra.mxu0 %v1970
      %2108 = vmatprep.subr.bf16.mxu0 0
      %2109 = vmatpush1.bf16.msra.mxu0 0
      %2110 = vmatprep.subr.bf16.mxu0 0
      %2111 = vmatpush1.bf16.msra.mxu0 0
      %2112 = vmatprep.subr.bf16.mxu0 0
      %2113 = vmatpush1.bf16.msra.mxu0 0
      %2114 = vmatprep.subr.bf16.mxu0 0
      %2115 = vmatpush1.bf16.msra.mxu0 0
      %2116 = vmatprep.subr.bf16.mxu0 0
      %2117 = vmatpush1.bf16.msra.mxu0 0
      %2118 = vmatprep.subr.bf16.mxu0 0
      %2119 = vmatpush1.bf16.msra.mxu0 0
      %2120 = vmatprep.subr.bf16.mxu0 0
      %2121 = vmatpush1.bf16.msra.mxu0 0
      %2122 = vmatprep.subr.bf16.mxu0 0
      %2123 = vmatpush1.bf16.msra.mxu0 0
      %2124 = vmatprep.mubr.bf16.mxu0 0
      %2125 = vmatmul.mubr.bf16.gmra.mrb[0].mxu0 %v1370
      %v2126 = vpop.f32.mrb[0].mxu0
      %v2127 = vadd.f32 %v2030, %v2126
      %v2128 = vpop.f32.mrb[0].mxu0
      %v2129 = vpop.f32.mrb[0].mxu0
      %v2130 = vadd.f32 %v2033, %v2129
      %v2131 = vpop.f32.mrb[0].mxu0
      %2132 = vmatprep.mubr.bf16.mxu0 0
      %2133 = vmatmul.mubr.bf16.gmra.mrb[0].mxu0 %v1373
      %v2134 = vpop.f32.mrb[0].mxu0
      %v2135 = vadd.f32 %v2038, %v2134
      %v2136 = vpop.f32.mrb[0].mxu0
      %v2137 = vpop.f32.mrb[0].mxu0
      %v2138 = vadd.f32 %v2041, %v2137
      %v2139 = vpop.f32.mrb[0].mxu0
      %2140 = vmatprep.mubr.bf16.mxu0 0
      %2141 = vmatmul.mubr.bf16.gmra.mrb[0].mxu0 %v1376
      %v2142 = vpop.f32.mrb[0].mxu0
      %v2143 = vadd.f32 %v2046, %v2142
      %v2144 = vpop.f32.mrb[0].mxu0
      %v2145 = vpop.f32.mrb[0].mxu0
      %v2146 = vadd.f32 %v2049, %v2145
      %v2147 = vpop.f32.mrb[0].mxu0
      %2148 = vmatprep.mubr.bf16.mxu0 0
      %2149 = vmatmul.mubr.bf16.gmra.mrb[0].mxu0 %v1379
      %v2150 = vpop.f32.mrb[0].mxu0
      %v2151 = vadd.f32 %v2054, %v2150
      %v2152 = vpop.f32.mrb[0].mxu0
      %v2153 = vpop.f32.mrb[0].mxu0
      %v2154 = vadd.f32 %v2057, %v2153
      %v2155 = vpop.f32.mrb[0].mxu0
      %2156 = vmatprep.mubr.bf16.mxu0 0
      %2157 = vmatmul.mubr.bf16.gmra.mrb[0].mxu0 %v1382
      %v2158 = vpop.f32.mrb[0].mxu0
      %v2159 = vadd.f32 %v2062, %v2158
      %v2160 = vpop.f32.mrb[0].mxu0
      %v2161 = vpop.f32.mrb[0].mxu0
      %v2162 = vadd.f32 %v2065, %v2161
      %v2163 = vpop.f32.mrb[0].mxu0
      %2164 = vmatprep.mubr.bf16.mxu0 0
      %2165 = vmatmul.mubr.bf16.gmra.mrb[0].mxu0 %v1385
      %v2166 = vpop.f32.mrb[0].mxu0
      %v2167 = vadd.f32 %v2070, %v2166
      %v2168 = vpop.f32.mrb[0].mxu0
      %v2169 = vpop.f32.mrb[0].mxu0
      %v2170 = vadd.f32 %v2073, %v2169
      %v2171 = vpop.f32.mrb[0].mxu0
      %2172 = vmatprep.mubr.bf16.mxu0 0
      %2173 = vmatmul.mubr.bf16.gmra.mrb[0].mxu0 %v1388
      %v2174 = vpop.f32.mrb[0].mxu0
      %v2175 = vadd.f32 %v2078, %v2174
      %v2176 = vpop.f32.mrb[0].mxu0
      %v2177 = vpop.f32.mrb[0].mxu0
      %v2178 = vadd.f32 %v2081, %v2177
      %v2179 = vpop.f32.mrb[0].mxu0
      %2180 = vmatprep.mubr.bf16.mxu0 0
      %2181 = vmatmul.mubr.bf16.gmra.mrb[0].mxu0 %v1391
      %v2182 = vpop.f32.mrb[0].mxu0
      %v2183 = vadd.f32 %v2086, %v2182
      %v2184 = vpop.f32.mrb[0].mxu0
      %v2185 = vpop.f32.mrb[0].mxu0
      %v2186 = vadd.f32 %v2089, %v2185
      %v2187 = vpop.f32.mrb[0].mxu0
      %2188 = vdwg.mxu0
      %s2189 = scalar_lea.vmem [#allocation2], 48
      %v2190 = vld [vmem:[%s2189] sm:$0xff]
      %v2191 = vld [vmem:[%s2189 + $0x8] sm:$0xff]
      %v2192 = vld [vmem:[%s2189 + $0x10] sm:$0xff]
      %v2193 = vld [vmem:[%s2189 + $0x18] sm:$0xff]
      %v2194 = vld [vmem:[%s2189 + $0x20] sm:$0xff]
      %v2195 = vld [vmem:[%s2189 + $0x28] sm:$0xff]
      %v2196 = vld [vmem:[%s2189 + $0x30] sm:$0xff]
      %v2197 = vld [vmem:[%s2189 + $0x38] sm:$0xff]
      %v2198 = vld [vmem:[%s2189 + $0x40] sm:$0xff]
      %v2199 = vld [vmem:[%s2189 + $0x48] sm:$0xff]
      %v2200 = vld [vmem:[%s2189 + $0x50] sm:$0xff]
      %v2201 = vld [vmem:[%s2189 + $0x58] sm:$0xff]
      %v2202 = vld [vmem:[%s2189 + $0x60] sm:$0xff]
      %v2203 = vld [vmem:[%s2189 + $0x68] sm:$0xff]
      %v2204 = vld [vmem:[%s2189 + $0x70] sm:$0xff]
      %v2205 = vld [vmem:[%s2189 + $0x78] sm:$0xff]
      %v2206 = vld [vmem:[%s2189 + $0x80] sm:$0xff]
      %v2207 = vld [vmem:[%s2189 + $0x88] sm:$0xff]
      %v2208 = vld [vmem:[%s2189 + $0x90] sm:$0xff]
      %v2209 = vld [vmem:[%s2189 + $0x98] sm:$0xff]
      %v2210 = vld [vmem:[%s2189 + $0xa0] sm:$0xff]
      %v2211 = vld [vmem:[%s2189 + $0xa8] sm:$0xff]
      %v2212 = vld [vmem:[%s2189 + $0xb0] sm:$0xff]
      %v2213 = vld [vmem:[%s2189 + $0xb8] sm:$0xff]
      %s2214 = scalar_lea.vmem %s5, 384
      %v2215 = vld [vmem:[%s2214] sm:$0xf]
      %v2216 = vld [vmem:[%s2214 + $0x4] sm:$0xf]
      %v2217 = vld [vmem:[%s2214 + $0x8] sm:$0xf]
      %v2218 = vld [vmem:[%s2214 + $0xc] sm:$0xf]
      %v2219 = vld [vmem:[%s2214 + $0x10] sm:$0xf]
      %v2220 = vld [vmem:[%s2214 + $0x14] sm:$0xf]
      %v2221 = vld [vmem:[%s2214 + $0x18] sm:$0xf]
      %v2222 = vld [vmem:[%s2214 + $0x1c] sm:$0xf]
      %v2223 = vld [vmem:[%s2214 + $0x20] sm:$0xf]
      %v2224 = vld [vmem:[%s2214 + $0x24] sm:$0xf]
      %v2225 = vld [vmem:[%s2214 + $0x28] sm:$0xf]
      %v2226 = vld [vmem:[%s2214 + $0x2c] sm:$0xf]
      %v2227 = vld [vmem:[%s2214 + $0x30] sm:$0xf]
      %v2228 = vld [vmem:[%s2214 + $0x34] sm:$0xf]
      %v2229 = vld [vmem:[%s2214 + $0x38] sm:$0xf]
      %v2230 = vld [vmem:[%s2214 + $0x3c] sm:$0xf]
      %v2231 = vld [vmem:[%s2214 + $0x40] sm:$0xf]
      %v2232 = vld [vmem:[%s2214 + $0x44] sm:$0xf]
      %v2233 = vld [vmem:[%s2214 + $0x48] sm:$0xf]
      %v2234 = vld [vmem:[%s2214 + $0x4c] sm:$0xf]
      %v2235 = vld [vmem:[%s2214 + $0x50] sm:$0xf]
      %v2236 = vld [vmem:[%s2214 + $0x54] sm:$0xf]
      %v2237 = vld [vmem:[%s2214 + $0x58] sm:$0xf]
      %v2238 = vld [vmem:[%s2214 + $0x5c] sm:$0xf]
      %v2239 = vld [vmem:[%s2214 + $0x60] sm:$0xf]
      %v2240 = vld [vmem:[%s2214 + $0x64] sm:$0xf]
      %v2241 = vld [vmem:[%s2214 + $0x68] sm:$0xf]
      %v2242 = vld [vmem:[%s2214 + $0x6c] sm:$0xf]
      %v2243 = vld [vmem:[%s2214 + $0x70] sm:$0xf]
      %v2244 = vld [vmem:[%s2214 + $0x74] sm:$0xf]
      %v2245 = vld [vmem:[%s2214 + $0x78] sm:$0xf]
      %v2246 = vld [vmem:[%s2214 + $0x7c] sm:$0xf]
      %v2247 = vld [vmem:[%s2214 + $0x80] sm:$0xf]
      %v2248 = vld [vmem:[%s2214 + $0x84] sm:$0xf]
      %v2249 = vld [vmem:[%s2214 + $0x88] sm:$0xf]
      %v2250 = vld [vmem:[%s2214 + $0x8c] sm:$0xf]
      %v2251 = vld [vmem:[%s2214 + $0x90] sm:$0xf]
      %v2252 = vld [vmem:[%s2214 + $0x94] sm:$0xf]
      %v2253 = vld [vmem:[%s2214 + $0x98] sm:$0xf]
      %v2254 = vld [vmem:[%s2214 + $0x9c] sm:$0xf]
      %v2255 = vld [vmem:[%s2214 + $0xa0] sm:$0xf]
      %v2256 = vld [vmem:[%s2214 + $0xa4] sm:$0xf]
      %v2257 = vld [vmem:[%s2214 + $0xa8] sm:$0xf]
      %v2258 = vld [vmem:[%s2214 + $0xac] sm:$0xf]
      %v2259 = vld [vmem:[%s2214 + $0xb0] sm:$0xf]
      %v2260 = vld [vmem:[%s2214 + $0xb4] sm:$0xf]
      %v2261 = vld [vmem:[%s2214 + $0xb8] sm:$0xf]
      %v2262 = vld [vmem:[%s2214 + $0xbc] sm:$0xf]
      %v2311 = vunpack.c.l.b16 %v2215
      %v2312 = vunpack.c.l.b16 %v2216
      %v2313 = vunpack.c.l.b16 %v2217
      %v2314 = vunpack.c.l.b16 %v2218
      %v2315 = vunpack.c.l.b16 %v2219
      %v2316 = vunpack.c.l.b16 %v2220
      %v2317 = vunpack.c.l.b16 %v2221
      %v2318 = vunpack.c.l.b16 %v2222
      %v2319 = vunpack.c.l.b16 %v2223
      %v2320 = vunpack.c.l.b16 %v2224
      %v2321 = vunpack.c.l.b16 %v2225
      %v2322 = vunpack.c.l.b16 %v2226
      %v2323 = vunpack.c.l.b16 %v2227
      %v2324 = vunpack.c.l.b16 %v2228
      %v2325 = vunpack.c.l.b16 %v2229
      %v2326 = vunpack.c.l.b16 %v2230
      %v2327 = vunpack.c.l.b16 %v2231
      %v2328 = vunpack.c.l.b16 %v2232
      %v2329 = vunpack.c.l.b16 %v2233
      %v2330 = vunpack.c.l.b16 %v2234
      %v2331 = vunpack.c.l.b16 %v2235
      %v2332 = vunpack.c.l.b16 %v2236
      %v2333 = vunpack.c.l.b16 %v2237
      %v2334 = vunpack.c.l.b16 %v2238
      %v2335 = vunpack.c.l.b16 %v2239
      %v2336 = vunpack.c.l.b16 %v2240
      %v2337 = vunpack.c.l.b16 %v2241
      %v2338 = vunpack.c.l.b16 %v2242
      %v2339 = vunpack.c.l.b16 %v2243
      %v2340 = vunpack.c.l.b16 %v2244
      %v2341 = vunpack.c.l.b16 %v2245
      %v2342 = vunpack.c.l.b16 %v2246
      %v2343 = vunpack.c.l.b16 %v2247
      %v2344 = vunpack.c.l.b16 %v2248
      %v2345 = vunpack.c.l.b16 %v2249
      %v2346 = vunpack.c.l.b16 %v2250
      %v2347 = vunpack.c.l.b16 %v2251
      %v2348 = vunpack.c.l.b16 %v2252
      %v2349 = vunpack.c.l.b16 %v2253
      %v2350 = vunpack.c.l.b16 %v2254
      %v2351 = vunpack.c.l.b16 %v2255
      %v2352 = vunpack.c.l.b16 %v2256
      %v2353 = vunpack.c.l.b16 %v2257
      %v2354 = vunpack.c.l.b16 %v2258
      %v2355 = vunpack.c.l.b16 %v2259
      %v2356 = vunpack.c.l.b16 %v2260
      %v2357 = vunpack.c.l.b16 %v2261
      %v2358 = vunpack.c.l.b16 %v2262
      %v2359 = vpack.c.b16 %v2312, %v2311
      %v2360 = vpack.c.b16 %v2314, %v2313
      %v2361 = vpack.c.b16 %v2316, %v2315
      %v2362 = vpack.c.b16 %v2318, %v2317
      %v2363 = vpack.c.b16 %v2320, %v2319
      %v2364 = vpack.c.b16 %v2322, %v2321
      %v2365 = vpack.c.b16 %v2324, %v2323
      %v2366 = vpack.c.b16 %v2326, %v2325
      %v2367 = vpack.c.b16 %v2328, %v2327
      %v2368 = vpack.c.b16 %v2330, %v2329
      %v2369 = vpack.c.b16 %v2332, %v2331
      %v2370 = vpack.c.b16 %v2334, %v2333
      %v2371 = vpack.c.b16 %v2336, %v2335
      %v2372 = vpack.c.b16 %v2338, %v2337
      %v2373 = vpack.c.b16 %v2340, %v2339
      %v2374 = vpack.c.b16 %v2342, %v2341
      %v2375 = vpack.c.b16 %v2344, %v2343
      %v2376 = vpack.c.b16 %v2346, %v2345
      %v2377 = vpack.c.b16 %v2348, %v2347
      %v2378 = vpack.c.b16 %v2350, %v2349
      %v2379 = vpack.c.b16 %v2352, %v2351
      %v2380 = vpack.c.b16 %v2354, %v2353
      %v2381 = vpack.c.b16 %v2356, %v2355
      %v2382 = vpack.c.b16 %v2358, %v2357
      %2407 = vmatprep.subr.bf16.mxu0 0
      %2408 = vmatpush1.bf16.msra.mxu0 %v2359
      %2409 = vmatprep.subr.bf16.mxu0 0
      %2410 = vmatpush1.bf16.msra.mxu0 %v2360
      %2411 = vmatprep.subr.bf16.mxu0 0
      %2412 = vmatpush1.bf16.msra.mxu0 %v2361
      %2413 = vmatprep.subr.bf16.mxu0 0
      %2414 = vmatpush1.bf16.msra.mxu0 %v2362
      %2415 = vmatprep.subr.bf16.mxu0 0
      %2416 = vmatpush1.bf16.msra.mxu0 %v2363
      %2417 = vmatprep.subr.bf16.mxu0 0
      %2418 = vmatpush1.bf16.msra.mxu0 %v2364
      %2419 = vmatprep.subr.bf16.mxu0 0
      %2420 = vmatpush1.bf16.msra.mxu0 %v2365
      %2421 = vmatprep.subr.bf16.mxu0 0
      %2422 = vmatpush1.bf16.msra.mxu0 %v2366
      %2423 = vmatprep.subr.bf16.mxu0 0
      %2424 = vmatpush1.bf16.msra.mxu0 %v2367
      %2425 = vmatprep.subr.bf16.mxu0 0
      %2426 = vmatpush1.bf16.msra.mxu0 %v2368
      %2427 = vmatprep.subr.bf16.mxu0 0
      %2428 = vmatpush1.bf16.msra.mxu0 %v2369
      %2429 = vmatprep.subr.bf16.mxu0 0
      %2430 = vmatpush1.bf16.msra.mxu0 %v2370
      %2431 = vmatprep.subr.bf16.mxu0 0
      %2432 = vmatpush1.bf16.msra.mxu0 %v2371
      %2433 = vmatprep.subr.bf16.mxu0 0
      %2434 = vmatpush1.bf16.msra.mxu0 %v2372
      %2435 = vmatprep.subr.bf16.mxu0 0
      %2436 = vmatpush1.bf16.msra.mxu0 %v2373
      %2437 = vmatprep.subr.bf16.mxu0 0
      %2438 = vmatpush1.bf16.msra.mxu0 %v2374
      %2439 = vmatprep.mubr.bf16.mxu0 %v2191
      %2440 = vmatmul.mubr.bf16.gmra.mrb[0].mxu0 %v2190
      %v2441 = vpop.f32.mrb[0].mxu0
      %v2442 = vadd.f32 0.0, %v2441
      %v2443 = vpop.f32.mrb[0].mxu0
      %v2444 = vpop.f32.mrb[0].mxu0
      %v2445 = vadd.f32 0.0, %v2444
      %v2446 = vpop.f32.mrb[0].mxu0
      %2447 = vmatprep.mubr.bf16.mxu0 %v2194
      %2448 = vmatmul.mubr.bf16.gmra.mrb[0].mxu0 %v2193
      %v2449 = vpop.f32.mrb[0].mxu0
      %v2450 = vadd.f32 0.0, %v2449
      %v2451 = vpop.f32.mrb[0].mxu0
      %v2452 = vpop.f32.mrb[0].mxu0
      %v2453 = vadd.f32 0.0, %v2452
      %v2454 = vpop.f32.mrb[0].mxu0
      %2455 = vmatprep.mubr.bf16.mxu0 %v2197
      %2456 = vmatmul.mubr.bf16.gmra.mrb[0].mxu0 %v2196
      %v2457 = vpop.f32.mrb[0].mxu0
      %v2458 = vadd.f32 0.0, %v2457
      %v2459 = vpop.f32.mrb[0].mxu0
      %v2460 = vpop.f32.mrb[0].mxu0
      %v2461 = vadd.f32 0.0, %v2460
      %v2462 = vpop.f32.mrb[0].mxu0
      %2463 = vmatprep.mubr.bf16.mxu0 %v2200
      %2464 = vmatmul.mubr.bf16.gmra.mrb[0].mxu0 %v2199
      %v2465 = vpop.f32.mrb[0].mxu0
      %v2466 = vadd.f32 0.0, %v2465
      %v2467 = vpop.f32.mrb[0].mxu0
      %v2468 = vpop.f32.mrb[0].mxu0
      %v2469 = vadd.f32 0.0, %v2468
      %v2470 = vpop.f32.mrb[0].mxu0
      %2471 = vmatprep.mubr.bf16.mxu0 %v2203
      %2472 = vmatmul.mubr.bf16.gmra.mrb[0].mxu0 %v2202
      %v2473 = vpop.f32.mrb[0].mxu0
      %v2474 = vadd.f32 0.0, %v2473
      %v2475 = vpop.f32.mrb[0].mxu0
      %v2476 = vpop.f32.mrb[0].mxu0
      %v2477 = vadd.f32 0.0, %v2476
      %v2478 = vpop.f32.mrb[0].mxu0
      %2479 = vmatprep.mubr.bf16.mxu0 %v2206
      %2480 = vmatmul.mubr.bf16.gmra.mrb[0].mxu0 %v2205
      %v2481 = vpop.f32.mrb[0].mxu0
      %v2482 = vadd.f32 0.0, %v2481
      %v2483 = vpop.f32.mrb[0].mxu0
      %v2484 = vpop.f32.mrb[0].mxu0
      %v2485 = vadd.f32 0.0, %v2484
      %v2486 = vpop.f32.mrb[0].mxu0
      %2487 = vmatprep.mubr.bf16.mxu0 %v2209
      %2488 = vmatmul.mubr.bf16.gmra.mrb[0].mxu0 %v2208
      %v2489 = vpop.f32.mrb[0].mxu0
      %v2490 = vadd.f32 0.0, %v2489
      %v2491 = vpop.f32.mrb[0].mxu0
      %v2492 = vpop.f32.mrb[0].mxu0
      %v2493 = vadd.f32 0.0, %v2492
      %v2494 = vpop.f32.mrb[0].mxu0
      %2495 = vmatprep.mubr.bf16.mxu0 %v2212
      %2496 = vmatmul.mubr.bf16.gmra.mrb[0].mxu0 %v2211
      %v2497 = vpop.f32.mrb[0].mxu0
      %v2498 = vadd.f32 0.0, %v2497
      %v2499 = vpop.f32.mrb[0].mxu0
      %v2500 = vpop.f32.mrb[0].mxu0
      %v2501 = vadd.f32 0.0, %v2500
      %v2502 = vpop.f32.mrb[0].mxu0
      %2503 = vdwg.mxu0
      %2504 = vmatprep.subr.bf16.mxu0 0
      %2505 = vmatpush1.bf16.msra.mxu0 %v2375
      %2506 = vmatprep.subr.bf16.mxu0 0
      %2507 = vmatpush1.bf16.msra.mxu0 %v2376
      %2508 = vmatprep.subr.bf16.mxu0 0
      %2509 = vmatpush1.bf16.msra.mxu0 %v2377
      %2510 = vmatprep.subr.bf16.mxu0 0
      %2511 = vmatpush1.bf16.msra.mxu0 %v2378
      %2512 = vmatprep.subr.bf16.mxu0 0
      %2513 = vmatpush1.bf16.msra.mxu0 %v2379
      %2514 = vmatprep.subr.bf16.mxu0 0
      %2515 = vmatpush1.bf16.msra.mxu0 %v2380
      %2516 = vmatprep.subr.bf16.mxu0 0
      %2517 = vmatpush1.bf16.msra.mxu0 %v2381
      %2518 = vmatprep.subr.bf16.mxu0 0
      %2519 = vmatpush1.bf16.msra.mxu0 %v2382
      %2520 = vmatprep.subr.bf16.mxu0 0
      %2521 = vmatpush1.bf16.msra.mxu0 0
      %2522 = vmatprep.subr.bf16.mxu0 0
      %2523 = vmatpush1.bf16.msra.mxu0 0
      %2524 = vmatprep.subr.bf16.mxu0 0
      %2525 = vmatpush1.bf16.msra.mxu0 0
      %2526 = vmatprep.subr.bf16.mxu0 0
      %2527 = vmatpush1.bf16.msra.mxu0 0
      %2528 = vmatprep.subr.bf16.mxu0 0
      %2529 = vmatpush1.bf16.msra.mxu0 0
      %2530 = vmatprep.subr.bf16.mxu0 0
      %2531 = vmatpush1.bf16.msra.mxu0 0
      %2532 = vmatprep.subr.bf16.mxu0 0
      %2533 = vmatpush1.bf16.msra.mxu0 0
      %2534 = vmatprep.subr.bf16.mxu0 0
      %2535 = vmatpush1.bf16.msra.mxu0 0
      %2536 = vmatprep.mubr.bf16.mxu0 0
      %2537 = vmatmul.mubr.bf16.gmra.mrb[0].mxu0 %v2192
      %v2538 = vpop.f32.mrb[0].mxu0
      %v2539 = vadd.f32 %v2442, %v2538
      %v2540 = vpop.f32.mrb[0].mxu0
      %v2541 = vpop.f32.mrb[0].mxu0
      %v2542 = vadd.f32 %v2445, %v2541
      %v2543 = vpop.f32.mrb[0].mxu0
      %2544 = vmatprep.mubr.bf16.mxu0 0
      %2545 = vmatmul.mubr.bf16.gmra.mrb[0].mxu0 %v2195
      %v2546 = vpop.f32.mrb[0].mxu0
      %v2547 = vadd.f32 %v2450, %v2546
      %v2548 = vpop.f32.mrb[0].mxu0
      %v2549 = vpop.f32.mrb[0].mxu0
      %v2550 = vadd.f32 %v2453, %v2549
      %v2551 = vpop.f32.mrb[0].mxu0
      %2552 = vmatprep.mubr.bf16.mxu0 0
      %2553 = vmatmul.mubr.bf16.gmra.mrb[0].mxu0 %v2198
      %v2554 = vpop.f32.mrb[0].mxu0
      %v2555 = vadd.f32 %v2458, %v2554
      %v2556 = vpop.f32.mrb[0].mxu0
      %v2557 = vpop.f32.mrb[0].mxu0
      %v2558 = vadd.f32 %v2461, %v2557
      %v2559 = vpop.f32.mrb[0].mxu0
      %2560 = vmatprep.mubr.bf16.mxu0 0
      %2561 = vmatmul.mubr.bf16.gmra.mrb[0].mxu0 %v2201
      %v2562 = vpop.f32.mrb[0].mxu0
      %v2563 = vadd.f32 %v2466, %v2562
      %v2564 = vpop.f32.mrb[0].mxu0
      %v2565 = vpop.f32.mrb[0].mxu0
      %v2566 = vadd.f32 %v2469, %v2565
      %v2567 = vpop.f32.mrb[0].mxu0
      %2568 = vmatprep.mubr.bf16.mxu0 0
      %2569 = vmatmul.mubr.bf16.gmra.mrb[0].mxu0 %v2204
      %v2570 = vpop.f32.mrb[0].mxu0
      %v2571 = vadd.f32 %v2474, %v2570
      %v2572 = vpop.f32.mrb[0].mxu0
      %v2573 = vpop.f32.mrb[0].mxu0
      %v2574 = vadd.f32 %v2477, %v2573
      %v2575 = vpop.f32.mrb[0].mxu0
      %2576 = vmatprep.mubr.bf16.mxu0 0
      %2577 = vmatmul.mubr.bf16.gmra.mrb[0].mxu0 %v2207
      %v2578 = vpop.f32.mrb[0].mxu0
      %v2579 = vadd.f32 %v2482, %v2578
      %v2580 = vpop.f32.mrb[0].mxu0
      %v2581 = vpop.f32.mrb[0].mxu0
      %v2582 = vadd.f32 %v2485, %v2581
      %v2583 = vpop.f32.mrb[0].mxu0
      %2584 = vmatprep.mubr.bf16.mxu0 0
      %2585 = vmatmul.mubr.bf16.gmra.mrb[0].mxu0 %v2210
      %v2586 = vpop.f32.mrb[0].mxu0
      %v2587 = vadd.f32 %v2490, %v2586
      %v2588 = vpop.f32.mrb[0].mxu0
      %v2589 = vpop.f32.mrb[0].mxu0
      %v2590 = vadd.f32 %v2493, %v2589
      %v2591 = vpop.f32.mrb[0].mxu0
      %2592 = vmatprep.mubr.bf16.mxu0 0
      %2593 = vmatmul.mubr.bf16.gmra.mrb[0].mxu0 %v2213
      %v2594 = vpop.f32.mrb[0].mxu0
      %v2595 = vadd.f32 %v2498, %v2594
      %v2596 = vpop.f32.mrb[0].mxu0
      %v2597 = vpop.f32.mrb[0].mxu0
      %v2598 = vadd.f32 %v2501, %v2597
      %v2599 = vpop.f32.mrb[0].mxu0
      %2600 = vdwg.mxu0
      %v2601 = vadd.f32 %v2127, %v2539
      %v2602 = vadd.f32 %v2130, %v2542
      %v2603 = vadd.f32 %v2135, %v2547
      %v2604 = vadd.f32 %v2138, %v2550
      %v2605 = vadd.f32 %v2143, %v2555
      %v2606 = vadd.f32 %v2146, %v2558
      %v2607 = vadd.f32 %v2151, %v2563
      %v2608 = vadd.f32 %v2154, %v2566
      %v2609 = vadd.f32 %v2159, %v2571
      %v2610 = vadd.f32 %v2162, %v2574
      %v2611 = vadd.f32 %v2167, %v2579
      %v2612 = vadd.f32 %v2170, %v2582
      %v2613 = vadd.f32 %v2175, %v2587
      %v2614 = vadd.f32 %v2178, %v2590
      %v2615 = vadd.f32 %v2183, %v2595
      %v2616 = vadd.f32 %v2186, %v2598
      %v2618 = vlaneseq
      %v2619 = vshrl.u32 %v2618, 7
      %v2620 = vsub.s32 0, %v2619
      %v2621 = vrot.slane %v449, %v2620
      %v2623 = vadd.f32 %v2601, %v2621
      %v2624 = vadd.f32 %v2602, %v2621
      %v2625 = vadd.f32 %v2603, %v2621
      %v2626 = vadd.f32 %v2604, %v2621
      %v2627 = vadd.f32 %v2605, %v2621
      %v2628 = vadd.f32 %v2606, %v2621
      %v2629 = vadd.f32 %v2607, %v2621
      %v2630 = vadd.f32 %v2608, %v2621
      %v2631 = vadd.f32 %v2609, %v2621
      %v2632 = vadd.f32 %v2610, %v2621
      %v2633 = vadd.f32 %v2611, %v2621
      %v2634 = vadd.f32 %v2612, %v2621
      %v2635 = vadd.f32 %v2613, %v2621
      %v2636 = vadd.f32 %v2614, %v2621
      %v2637 = vadd.f32 %v2615, %v2621
      %v2638 = vadd.f32 %v2616, %v2621
      %v2639 = vmax.f32 %v2623, 0.0
      %v2640 = vmax.f32 %v2624, 0.0
      %v2641 = vmax.f32 %v2625, 0.0
      %v2642 = vmax.f32 %v2626, 0.0
      %v2643 = vmax.f32 %v2627, 0.0
      %v2644 = vmax.f32 %v2628, 0.0
      %v2645 = vmax.f32 %v2629, 0.0
      %v2646 = vmax.f32 %v2630, 0.0
      %v2647 = vmax.f32 %v2631, 0.0
      %v2648 = vmax.f32 %v2632, 0.0
      %v2649 = vmax.f32 %v2633, 0.0
      %v2650 = vmax.f32 %v2634, 0.0
      %v2651 = vmax.f32 %v2635, 0.0
      %v2652 = vmax.f32 %v2636, 0.0
      %v2653 = vmax.f32 %v2637, 0.0
      %v2654 = vmax.f32 %v2638, 0.0
      %2655 = vst [vmem:[%s445] sm:$0xff] %v2639
      %2656 = vst [vmem:[%s445 + $0x8] sm:$0xff] %v2640
      %2657 = vst [vmem:[%s445 + $0x10] sm:$0xff] %v2641
      %2658 = vst [vmem:[%s445 + $0x18] sm:$0xff] %v2642
      %2659 = vst [vmem:[%s445 + $0x20] sm:$0xff] %v2643
      %2660 = vst [vmem:[%s445 + $0x28] sm:$0xff] %v2644
      %2661 = vst [vmem:[%s445 + $0x30] sm:$0xff] %v2645
      %2662 = vst [vmem:[%s445 + $0x38] sm:$0xff] %v2646
      %2663 = vst [vmem:[%s445 + $0x40] sm:$0xff] %v2647
      %2664 = vst [vmem:[%s445 + $0x48] sm:$0xff] %v2648
      %2665 = vst [vmem:[%s445 + $0x50] sm:$0xff] %v2649
      %2666 = vst [vmem:[%s445 + $0x58] sm:$0xff] %v2650
      %2667 = vst [vmem:[%s445 + $0x60] sm:$0xff] %v2651
      %2668 = vst [vmem:[%s445 + $0x68] sm:$0xff] %v2652
      %2669 = vst [vmem:[%s445 + $0x70] sm:$0xff] %v2653
      %2670 = vst [vmem:[%s445 + $0x78] sm:$0xff] %v2654
      %s2671 = scalar_lea.vmem [#allocation2], 192
      %v2672 = vld [vmem:[%s2671] sm:$0xff]
      %v2673 = vld [vmem:[%s2671 + $0x8] sm:$0xff]
      %v2674 = vld [vmem:[%s2671 + $0x10] sm:$0xff]
      %v2675 = vld [vmem:[%s2671 + $0x18] sm:$0xff]
      %v2676 = vld [vmem:[%s2671 + $0x20] sm:$0xff]
      %v2677 = vld [vmem:[%s2671 + $0x28] sm:$0xff]
      %v2678 = vld [vmem:[%s2671 + $0x30] sm:$0xff]
      %v2679 = vld [vmem:[%s2671 + $0x38] sm:$0xff]
      %v2680 = vld [vmem:[%s2671 + $0x40] sm:$0xff]
      %v2681 = vld [vmem:[%s2671 + $0x48] sm:$0xff]
      %v2682 = vld [vmem:[%s2671 + $0x50] sm:$0xff]
      %v2683 = vld [vmem:[%s2671 + $0x58] sm:$0xff]
      %v2684 = vld [vmem:[%s2671 + $0x60] sm:$0xff]
      %v2685 = vld [vmem:[%s2671 + $0x68] sm:$0xff]
      %v2686 = vld [vmem:[%s2671 + $0x70] sm:$0xff]
      %v2687 = vld [vmem:[%s2671 + $0x78] sm:$0xff]
      %v2688 = vld [vmem:[%s2671 + $0x80] sm:$0xff]
      %v2689 = vld [vmem:[%s2671 + $0x88] sm:$0xff]
      %v2690 = vld [vmem:[%s2671 + $0x90] sm:$0xff]
      %v2691 = vld [vmem:[%s2671 + $0x98] sm:$0xff]
      %v2692 = vld [vmem:[%s2671 + $0xa0] sm:$0xff]
      %v2693 = vld [vmem:[%s2671 + $0xa8] sm:$0xff]
      %v2694 = vld [vmem:[%s2671 + $0xb0] sm:$0xff]
      %v2695 = vld [vmem:[%s2671 + $0xb8] sm:$0xff]
      %v2696 = vld [vmem:[%s5] sm:$0xf]
      %v2697 = vld [vmem:[%s5 + $0x4] sm:$0xf]
      %v2698 = vld [vmem:[%s5 + $0x8] sm:$0xf]
      %v2699 = vld [vmem:[%s5 + $0xc] sm:$0xf]
      %v2700 = vld [vmem:[%s5 + $0x10] sm:$0xf]
      %v2701 = vld [vmem:[%s5 + $0x14] sm:$0xf]
      %v2702 = vld [vmem:[%s5 + $0x18] sm:$0xf]
      %v2703 = vld [vmem:[%s5 + $0x1c] sm:$0xf]
      %v2704 = vld [vmem:[%s5 + $0x20] sm:$0xf]
      %v2705 = vld [vmem:[%s5 + $0x24] sm:$0xf]
      %v2706 = vld [vmem:[%s5 + $0x28] sm:$0xf]
      %v2707 = vld [vmem:[%s5 + $0x2c] sm:$0xf]
      %v2708 = vld [vmem:[%s5 + $0x30] sm:$0xf]
      %v2709 = vld [vmem:[%s5 + $0x34] sm:$0xf]
      %v2710 = vld [vmem:[%s5 + $0x38] sm:$0xf]
      %v2711 = vld [vmem:[%s5 + $0x3c] sm:$0xf]
      %v2712 = vld [vmem:[%s5 + $0x40] sm:$0xf]
      %v2713 = vld [vmem:[%s5 + $0x44] sm:$0xf]
      %v2714 = vld [vmem:[%s5 + $0x48] sm:$0xf]
      %v2715 = vld [vmem:[%s5 + $0x4c] sm:$0xf]
      %v2716 = vld [vmem:[%s5 + $0x50] sm:$0xf]
      %v2717 = vld [vmem:[%s5 + $0x54] sm:$0xf]
      %v2718 = vld [vmem:[%s5 + $0x58] sm:$0xf]
      %v2719 = vld [vmem:[%s5 + $0x5c] sm:$0xf]
      %v2720 = vld [vmem:[%s5 + $0x60] sm:$0xf]
      %v2721 = vld [vmem:[%s5 + $0x64] sm:$0xf]
      %v2722 = vld [vmem:[%s5 + $0x68] sm:$0xf]
      %v2723 = vld [vmem:[%s5 + $0x6c] sm:$0xf]
      %v2724 = vld [vmem:[%s5 + $0x70] sm:$0xf]
      %v2725 = vld [vmem:[%s5 + $0x74] sm:$0xf]
      %v2726 = vld [vmem:[%s5 + $0x78] sm:$0xf]
      %v2727 = vld [vmem:[%s5 + $0x7c] sm:$0xf]
      %v2728 = vld [vmem:[%s5 + $0x80] sm:$0xf]
      %v2729 = vld [vmem:[%s5 + $0x84] sm:$0xf]
      %v2730 = vld [vmem:[%s5 + $0x88] sm:$0xf]
      %v2731 = vld [vmem:[%s5 + $0x8c] sm:$0xf]
      %v2732 = vld [vmem:[%s5 + $0x90] sm:$0xf]
      %v2733 = vld [vmem:[%s5 + $0x94] sm:$0xf]
      %v2734 = vld [vmem:[%s5 + $0x98] sm:$0xf]
      %v2735 = vld [vmem:[%s5 + $0x9c] sm:$0xf]
      %v2736 = vld [vmem:[%s5 + $0xa0] sm:$0xf]
      %v2737 = vld [vmem:[%s5 + $0xa4] sm:$0xf]
      %v2738 = vld [vmem:[%s5 + $0xa8] sm:$0xf]
      %v2739 = vld [vmem:[%s5 + $0xac] sm:$0xf]
      %v2740 = vld [vmem:[%s5 + $0xb0] sm:$0xf]
      %v2741 = vld [vmem:[%s5 + $0xb4] sm:$0xf]
      %v2742 = vld [vmem:[%s5 + $0xb8] sm:$0xf]
      %v2743 = vld [vmem:[%s5 + $0xbc] sm:$0xf]
      %v2744 = vld [vmem:[%s1212] sm:$0xff]
      %v2745 = vld [vmem:[%s1212 + $0x8] sm:$0xff]
      %v2746 = vld [vmem:[%s1212 + $0x10] sm:$0xff]
      %v2747 = vld [vmem:[%s1212 + $0x18] sm:$0xff]
      %v2748 = vld [vmem:[%s1212 + $0x20] sm:$0xff]
      %v2749 = vld [vmem:[%s1212 + $0x28] sm:$0xff]
      %v2750 = vld [vmem:[%s1212 + $0x30] sm:$0xff]
      %v2751 = vld [vmem:[%s1212 + $0x38] sm:$0xff]
      %v2752 = vld [vmem:[%s1212 + $0x40] sm:$0xff]
      %v2753 = vld [vmem:[%s1212 + $0x48] sm:$0xff]
      %v2754 = vld [vmem:[%s1212 + $0x50] sm:$0xff]
      %v2755 = vld [vmem:[%s1212 + $0x58] sm:$0xff]
      %v2756 = vld [vmem:[%s1212 + $0x60] sm:$0xff]
      %v2757 = vld [vmem:[%s1212 + $0x68] sm:$0xff]
      %v2758 = vld [vmem:[%s1212 + $0x70] sm:$0xff]
      %v2759 = vld [vmem:[%s1212 + $0x78] sm:$0xff]
      %v2760 = vld [vmem:[%s1212 + $0x80] sm:$0xff]
      %v2761 = vld [vmem:[%s1212 + $0x88] sm:$0xff]
      %v2762 = vld [vmem:[%s1212 + $0x90] sm:$0xff]
      %v2763 = vld [vmem:[%s1212 + $0x98] sm:$0xff]
      %v2764 = vld [vmem:[%s1212 + $0xa0] sm:$0xff]
      %v2765 = vld [vmem:[%s1212 + $0xa8] sm:$0xff]
      %v2766 = vld [vmem:[%s1212 + $0xb0] sm:$0xff]
      %v2767 = vld [vmem:[%s1212 + $0xb8] sm:$0xff]
      %v2768 = vld [vmem:[%s1464] sm:$0xf]
      %v2769 = vld [vmem:[%s1464 + $0x4] sm:$0xf]
      %v2770 = vld [vmem:[%s1464 + $0x8] sm:$0xf]
      %v2771 = vld [vmem:[%s1464 + $0xc] sm:$0xf]
      %v2772 = vld [vmem:[%s1464 + $0x10] sm:$0xf]
      %v2773 = vld [vmem:[%s1464 + $0x14] sm:$0xf]
      %v2774 = vld [vmem:[%s1464 + $0x18] sm:$0xf]
      %v2775 = vld [vmem:[%s1464 + $0x1c] sm:$0xf]
      %v2776 = vld [vmem:[%s1464 + $0x20] sm:$0xf]
      %v2777 = vld [vmem:[%s1464 + $0x24] sm:$0xf]
      %v2778 = vld [vmem:[%s1464 + $0x28] sm:$0xf]
      %v2779 = vld [vmem:[%s1464 + $0x2c] sm:$0xf]
      %v2780 = vld [vmem:[%s1464 + $0x30] sm:$0xf]
      %v2781 = vld [vmem:[%s1464 + $0x34] sm:$0xf]
      %v2782 = vld [vmem:[%s1464 + $0x38] sm:$0xf]
      %v2783 = vld [vmem:[%s1464 + $0x3c] sm:$0xf]
      %v2784 = vld [vmem:[%s1464 + $0x40] sm:$0xf]
      %v2785 = vld [vmem:[%s1464 + $0x44] sm:$0xf]
      %v2786 = vld [vmem:[%s1464 + $0x48] sm:$0xf]
      %v2787 = vld [vmem:[%s1464 + $0x4c] sm:$0xf]
      %v2788 = vld [vmem:[%s1464 + $0x50] sm:$0xf]
      %v2789 = vld [vmem:[%s1464 + $0x54] sm:$0xf]
      %v2790 = vld [vmem:[%s1464 + $0x58] sm:$0xf]
      %v2791 = vld [vmem:[%s1464 + $0x5c] sm:$0xf]
      %v2792 = vld [vmem:[%s1464 + $0x60] sm:$0xf]
      %v2793 = vld [vmem:[%s1464 + $0x64] sm:$0xf]
      %v2794 = vld [vmem:[%s1464 + $0x68] sm:$0xf]
      %v2795 = vld [vmem:[%s1464 + $0x6c] sm:$0xf]
      %v2796 = vld [vmem:[%s1464 + $0x70] sm:$0xf]
      %v2797 = vld [vmem:[%s1464 + $0x74] sm:$0xf]
      %v2798 = vld [vmem:[%s1464 + $0x78] sm:$0xf]
      %v2799 = vld [vmem:[%s1464 + $0x7c] sm:$0xf]
      %v2800 = vld [vmem:[%s1464 + $0x80] sm:$0xf]
      %v2801 = vld [vmem:[%s1464 + $0x84] sm:$0xf]
      %v2802 = vld [vmem:[%s1464 + $0x88] sm:$0xf]
      %v2803 = vld [vmem:[%s1464 + $0x8c] sm:$0xf]
      %v2804 = vld [vmem:[%s1464 + $0x90] sm:$0xf]
      %v2805 = vld [vmem:[%s1464 + $0x94] sm:$0xf]
      %v2806 = vld [vmem:[%s1464 + $0x98] sm:$0xf]
      %v2807 = vld [vmem:[%s1464 + $0x9c] sm:$0xf]
      %v2808 = vld [vmem:[%s1464 + $0xa0] sm:$0xf]
      %v2809 = vld [vmem:[%s1464 + $0xa4] sm:$0xf]
      %v2810 = vld [vmem:[%s1464 + $0xa8] sm:$0xf]
      %v2811 = vld [vmem:[%s1464 + $0xac] sm:$0xf]
      %v2812 = vld [vmem:[%s1464 + $0xb0] sm:$0xf]
      %v2813 = vld [vmem:[%s1464 + $0xb4] sm:$0xf]
      %v2814 = vld [vmem:[%s1464 + $0xb8] sm:$0xf]
      %v2815 = vld [vmem:[%s1464 + $0xbc] sm:$0xf]
      %v2864 = vunpack.c.l.b16 %v2768
      %v2865 = vunpack.c.l.b16 %v2769
      %v2866 = vunpack.c.l.b16 %v2770
      %v2867 = vunpack.c.l.b16 %v2771
      %v2868 = vunpack.c.l.b16 %v2772
      %v2869 = vunpack.c.l.b16 %v2773
      %v2870 = vunpack.c.l.b16 %v2774
      %v2871 = vunpack.c.l.b16 %v2775
      %v2872 = vunpack.c.l.b16 %v2776
      %v2873 = vunpack.c.l.b16 %v2777
      %v2874 = vunpack.c.l.b16 %v2778
      %v2875 = vunpack.c.l.b16 %v2779
      %v2876 = vunpack.c.l.b16 %v2780
      %v2877 = vunpack.c.l.b16 %v2781
      %v2878 = vunpack.c.l.b16 %v2782
      %v2879 = vunpack.c.l.b16 %v2783
      %v2880 = vunpack.c.l.b16 %v2784
      %v2881 = vunpack.c.l.b16 %v2785
      %v2882 = vunpack.c.l.b16 %v2786
      %v2883 = vunpack.c.l.b16 %v2787
      %v2884 = vunpack.c.l.b16 %v2788
      %v2885 = vunpack.c.l.b16 %v2789
      %v2886 = vunpack.c.l.b16 %v2790
      %v2887 = vunpack.c.l.b16 %v2791
      %v2888 = vunpack.c.l.b16 %v2792
      %v2889 = vunpack.c.l.b16 %v2793
      %v2890 = vunpack.c.l.b16 %v2794
      %v2891 = vunpack.c.l.b16 %v2795
      %v2892 = vunpack.c.l.b16 %v2796
      %v2893 = vunpack.c.l.b16 %v2797
      %v2894 = vunpack.c.l.b16 %v2798
      %v2895 = vunpack.c.l.b16 %v2799
      %v2896 = vunpack.c.l.b16 %v2800
      %v2897 = vunpack.c.l.b16 %v2801
      %v2898 = vunpack.c.l.b16 %v2802
      %v2899 = vunpack.c.l.b16 %v2803
      %v2900 = vunpack.c.l.b16 %v2804
      %v2901 = vunpack.c.l.b16 %v2805
      %v2902 = vunpack.c.l.b16 %v2806
      %v2903 = vunpack.c.l.b16 %v2807
      %v2904 = vunpack.c.l.b16 %v2808
      %v2905 = vunpack.c.l.b16 %v2809
      %v2906 = vunpack.c.l.b16 %v2810
      %v2907 = vunpack.c.l.b16 %v2811
      %v2908 = vunpack.c.l.b16 %v2812
      %v2909 = vunpack.c.l.b16 %v2813
      %v2910 = vunpack.c.l.b16 %v2814
      %v2911 = vunpack.c.l.b16 %v2815
      %v2912 = vpack.c.b16 %v2865, %v2864
      %v2913 = vpack.c.b16 %v2867, %v2866
      %v2914 = vpack.c.b16 %v2869, %v2868
      %v2915 = vpack.c.b16 %v2871, %v2870
      %v2916 = vpack.c.b16 %v2873, %v2872
      %v2917 = vpack.c.b16 %v2875, %v2874
      %v2918 = vpack.c.b16 %v2877, %v2876
      %v2919 = vpack.c.b16 %v2879, %v2878
      %v2920 = vpack.c.b16 %v2881, %v2880
      %v2921 = vpack.c.b16 %v2883, %v2882
      %v2922 = vpack.c.b16 %v2885, %v2884
      %v2923 = vpack.c.b16 %v2887, %v2886
      %v2924 = vpack.c.b16 %v2889, %v2888
      %v2925 = vpack.c.b16 %v2891, %v2890
      %v2926 = vpack.c.b16 %v2893, %v2892
      %v2927 = vpack.c.b16 %v2895, %v2894
      %v2928 = vpack.c.b16 %v2897, %v2896
      %v2929 = vpack.c.b16 %v2899, %v2898
      %v2930 = vpack.c.b16 %v2901, %v2900
      %v2931 = vpack.c.b16 %v2903, %v2902
      %v2932 = vpack.c.b16 %v2905, %v2904
      %v2933 = vpack.c.b16 %v2907, %v2906
      %v2934 = vpack.c.b16 %v2909, %v2908
      %v2935 = vpack.c.b16 %v2911, %v2910
      %2960 = vmatprep.subr.bf16.mxu0 0
      %2961 = vmatpush1.bf16.msra.mxu0 %v2912
      %2962 = vmatprep.subr.bf16.mxu0 0
      %2963 = vmatpush1.bf16.msra.mxu0 %v2913
      %2964 = vmatprep.subr.bf16.mxu0 0
      %2965 = vmatpush1.bf16.msra.mxu0 %v2914
      %2966 = vmatprep.subr.bf16.mxu0 0
      %2967 = vmatpush1.bf16.msra.mxu0 %v2915
      %2968 = vmatprep.subr.bf16.mxu0 0
      %2969 = vmatpush1.bf16.msra.mxu0 %v2916
      %2970 = vmatprep.subr.bf16.mxu0 0
      %2971 = vmatpush1.bf16.msra.mxu0 %v2917
      %2972 = vmatprep.subr.bf16.mxu0 0
      %2973 = vmatpush1.bf16.msra.mxu0 %v2918
      %2974 = vmatprep.subr.bf16.mxu0 0
      %2975 = vmatpush1.bf16.msra.mxu0 %v2919
      %2976 = vmatprep.subr.bf16.mxu0 0
      %2977 = vmatpush1.bf16.msra.mxu0 %v2920
      %2978 = vmatprep.subr.bf16.mxu0 0
      %2979 = vmatpush1.bf16.msra.mxu0 %v2921
      %2980 = vmatprep.subr.bf16.mxu0 0
      %2981 = vmatpush1.bf16.msra.mxu0 %v2922
      %2982 = vmatprep.subr.bf16.mxu0 0
      %2983 = vmatpush1.bf16.msra.mxu0 %v2923
      %2984 = vmatprep.subr.bf16.mxu0 0
      %2985 = vmatpush1.bf16.msra.mxu0 %v2924
      %2986 = vmatprep.subr.bf16.mxu0 0
      %2987 = vmatpush1.bf16.msra.mxu0 %v2925
      %2988 = vmatprep.subr.bf16.mxu0 0
      %2989 = vmatpush1.bf16.msra.mxu0 %v2926
      %2990 = vmatprep.subr.bf16.mxu0 0
      %2991 = vmatpush1.bf16.msra.mxu0 %v2927
      %2992 = vmatprep.mubr.bf16.mxu0 %v2745
      %2993 = vmatmul.mubr.bf16.gmra.mrb[0].mxu0 %v2744
      %v2994 = vpop.f32.mrb[0].mxu0
      %v2995 = vadd.f32 0.0, %v2994
      %v2996 = vpop.f32.mrb[0].mxu0
      %v2997 = vpop.f32.mrb[0].mxu0
      %v2998 = vadd.f32 0.0, %v2997
      %v2999 = vpop.f32.mrb[0].mxu0
      %3000 = vmatprep.mubr.bf16.mxu0 %v2748
      %3001 = vmatmul.mubr.bf16.gmra.mrb[0].mxu0 %v2747
      %v3002 = vpop.f32.mrb[0].mxu0
      %v3003 = vadd.f32 0.0, %v3002
      %v3004 = vpop.f32.mrb[0].mxu0
      %v3005 = vpop.f32.mrb[0].mxu0
      %v3006 = vadd.f32 0.0, %v3005
      %v3007 = vpop.f32.mrb[0].mxu0
      %3008 = vmatprep.mubr.bf16.mxu0 %v2751
      %3009 = vmatmul.mubr.bf16.gmra.mrb[0].mxu0 %v2750
      %v3010 = vpop.f32.mrb[0].mxu0
      %v3011 = vadd.f32 0.0, %v3010
      %v3012 = vpop.f32.mrb[0].mxu0
      %v3013 = vpop.f32.mrb[0].mxu0
      %v3014 = vadd.f32 0.0, %v3013
      %v3015 = vpop.f32.mrb[0].mxu0
      %3016 = vmatprep.mubr.bf16.mxu0 %v2754
      %3017 = vmatmul.mubr.bf16.gmra.mrb[0].mxu0 %v2753
      %v3018 = vpop.f32.mrb[0].mxu0
      %v3019 = vadd.f32 0.0, %v3018
      %v3020 = vpop.f32.mrb[0].mxu0
      %v3021 = vpop.f32.mrb[0].mxu0
      %v3022 = vadd.f32 0.0, %v3021
      %v3023 = vpop.f32.mrb[0].mxu0
      %3024 = vmatprep.mubr.bf16.mxu0 %v2757
      %3025 = vmatmul.mubr.bf16.gmra.mrb[0].mxu0 %v2756
      %v3026 = vpop.f32.mrb[0].mxu0
      %v3027 = vadd.f32 0.0, %v3026
      %v3028 = vpop.f32.mrb[0].mxu0
      %v3029 = vpop.f32.mrb[0].mxu0
      %v3030 = vadd.f32 0.0, %v3029
      %v3031 = vpop.f32.mrb[0].mxu0
      %3032 = vmatprep.mubr.bf16.mxu0 %v2760
      %3033 = vmatmul.mubr.bf16.gmra.mrb[0].mxu0 %v2759
      %v3034 = vpop.f32.mrb[0].mxu0
      %v3035 = vadd.f32 0.0, %v3034
      %v3036 = vpop.f32.mrb[0].mxu0
      %v3037 = vpop.f32.mrb[0].mxu0
      %v3038 = vadd.f32 0.0, %v3037
      %v3039 = vpop.f32.mrb[0].mxu0
      %3040 = vmatprep.mubr.bf16.mxu0 %v2763
      %3041 = vmatmul.mubr.bf16.gmra.mrb[0].mxu0 %v2762
      %v3042 = vpop.f32.mrb[0].mxu0
      %v3043 = vadd.f32 0.0, %v3042
      %v3044 = vpop.f32.mrb[0].mxu0
      %v3045 = vpop.f32.mrb[0].mxu0
      %v3046 = vadd.f32 0.0, %v3045
      %v3047 = vpop.f32.mrb[0].mxu0
      %3048 = vmatprep.mubr.bf16.mxu0 %v2766
      %3049 = vmatmul.mubr.bf16.gmra.mrb[0].mxu0 %v2765
      %v3050 = vpop.f32.mrb[0].mxu0
      %v3051 = vadd.f32 0.0, %v3050
      %v3052 = vpop.f32.mrb[0].mxu0
      %v3053 = vpop.f32.mrb[0].mxu0
      %v3054 = vadd.f32 0.0, %v3053
      %v3055 = vpop.f32.mrb[0].mxu0
      %3056 = vdwg.mxu0
      %3057 = vmatprep.subr.bf16.mxu0 0
      %3058 = vmatpush1.bf16.msra.mxu0 %v2928
      %3059 = vmatprep.subr.bf16.mxu0 0
      %3060 = vmatpush1.bf16.msra.mxu0 %v2929
      %3061 = vmatprep.subr.bf16.mxu0 0
      %3062 = vmatpush1.bf16.msra.mxu0 %v2930
      %3063 = vmatprep.subr.bf16.mxu0 0
      %3064 = vmatpush1.bf16.msra.mxu0 %v2931
      %3065 = vmatprep.subr.bf16.mxu0 0
      %3066 = vmatpush1.bf16.msra.mxu0 %v2932
      %3067 = vmatprep.subr.bf16.mxu0 0
      %3068 = vmatpush1.bf16.msra.mxu0 %v2933
      %3069 = vmatprep.subr.bf16.mxu0 0
      %3070 = vmatpush1.bf16.msra.mxu0 %v2934
      %3071 = vmatprep.subr.bf16.mxu0 0
      %3072 = vmatpush1.bf16.msra.mxu0 %v2935
      %3073 = vmatprep.subr.bf16.mxu0 0
      %3074 = vmatpush1.bf16.msra.mxu0 0
      %3075 = vmatprep.subr.bf16.mxu0 0
      %3076 = vmatpush1.bf16.msra.mxu0 0
      %3077 = vmatprep.subr.bf16.mxu0 0
      %3078 = vmatpush1.bf16.msra.mxu0 0
      %3079 = vmatprep.subr.bf16.mxu0 0
      %3080 = vmatpush1.bf16.msra.mxu0 0
      %3081 = vmatprep.subr.bf16.mxu0 0
      %3082 = vmatpush1.bf16.msra.mxu0 0
      %3083 = vmatprep.subr.bf16.mxu0 0
      %3084 = vmatpush1.bf16.msra.mxu0 0
      %3085 = vmatprep.subr.bf16.mxu0 0
      %3086 = vmatpush1.bf16.msra.mxu0 0
      %3087 = vmatprep.subr.bf16.mxu0 0
      %3088 = vmatpush1.bf16.msra.mxu0 0
      %3089 = vmatprep.mubr.bf16.mxu0 0
      %3090 = vmatmul.mubr.bf16.gmra.mrb[0].mxu0 %v2746
      %v3091 = vpop.f32.mrb[0].mxu0
      %v3092 = vadd.f32 %v2995, %v3091
      %v3093 = vpop.f32.mrb[0].mxu0
      %v3094 = vpop.f32.mrb[0].mxu0
      %v3095 = vadd.f32 %v2998, %v3094
      %v3096 = vpop.f32.mrb[0].mxu0
      %3097 = vmatprep.mubr.bf16.mxu0 0
      %3098 = vmatmul.mubr.bf16.gmra.mrb[0].mxu0 %v2749
      %v3099 = vpop.f32.mrb[0].mxu0
      %v3100 = vadd.f32 %v3003, %v3099
      %v3101 = vpop.f32.mrb[0].mxu0
      %v3102 = vpop.f32.mrb[0].mxu0
      %v3103 = vadd.f32 %v3006, %v3102
      %v3104 = vpop.f32.mrb[0].mxu0
      %3105 = vmatprep.mubr.bf16.mxu0 0
      %3106 = vmatmul.mubr.bf16.gmra.mrb[0].mxu0 %v2752
      %v3107 = vpop.f32.mrb[0].mxu0
      %v3108 = vadd.f32 %v3011, %v3107
      %v3109 = vpop.f32.mrb[0].mxu0
      %v3110 = vpop.f32.mrb[0].mxu0
      %v3111 = vadd.f32 %v3014, %v3110
      %v3112 = vpop.f32.mrb[0].mxu0
      %3113 = vmatprep.mubr.bf16.mxu0 0
      %3114 = vmatmul.mubr.bf16.gmra.mrb[0].mxu0 %v2755
      %v3115 = vpop.f32.mrb[0].mxu0
      %v3116 = vadd.f32 %v3019, %v3115
      %v3117 = vpop.f32.mrb[0].mxu0
      %v3118 = vpop.f32.mrb[0].mxu0
      %v3119 = vadd.f32 %v3022, %v3118
      %v3120 = vpop.f32.mrb[0].mxu0
      %3121 = vmatprep.mubr.bf16.mxu0 0
      %3122 = vmatmul.mubr.bf16.gmra.mrb[0].mxu0 %v2758
      %v3123 = vpop.f32.mrb[0].mxu0
      %v3124 = vadd.f32 %v3027, %v3123
      %v3125 = vpop.f32.mrb[0].mxu0
      %v3126 = vpop.f32.mrb[0].mxu0
      %v3127 = vadd.f32 %v3030, %v3126
      %v3128 = vpop.f32.mrb[0].mxu0
      %3129 = vmatprep.mubr.bf16.mxu0 0
      %3130 = vmatmul.mubr.bf16.gmra.mrb[0].mxu0 %v2761
      %v3131 = vpop.f32.mrb[0].mxu0
      %v3132 = vadd.f32 %v3035, %v3131
      %v3133 = vpop.f32.mrb[0].mxu0
      %v3134 = vpop.f32.mrb[0].mxu0
      %v3135 = vadd.f32 %v3038, %v3134
      %v3136 = vpop.f32.mrb[0].mxu0
      %3137 = vmatprep.mubr.bf16.mxu0 0
      %3138 = vmatmul.mubr.bf16.gmra.mrb[0].mxu0 %v2764
      %v3139 = vpop.f32.mrb[0].mxu0
      %v3140 = vadd.f32 %v3043, %v3139
      %v3141 = vpop.f32.mrb[0].mxu0
      %v3142 = vpop.f32.mrb[0].mxu0
      %v3143 = vadd.f32 %v3046, %v3142
      %v3144 = vpop.f32.mrb[0].mxu0
      %3145 = vmatprep.mubr.bf16.mxu0 0
      %3146 = vmatmul.mubr.bf16.gmra.mrb[0].mxu0 %v2767
      %v3147 = vpop.f32.mrb[0].mxu0
      %v3148 = vadd.f32 %v3051, %v3147
      %v3149 = vpop.f32.mrb[0].mxu0
      %v3150 = vpop.f32.mrb[0].mxu0
      %v3151 = vadd.f32 %v3054, %v3150
      %v3152 = vpop.f32.mrb[0].mxu0
      %3153 = vdwg.mxu0
      %v3202 = vunpack.c.l.b16 %v2696
      %v3203 = vunpack.c.l.b16 %v2697
      %v3204 = vunpack.c.l.b16 %v2698
      %v3205 = vunpack.c.l.b16 %v2699
      %v3206 = vunpack.c.l.b16 %v2700
      %v3207 = vunpack.c.l.b16 %v2701
      %v3208 = vunpack.c.l.b16 %v2702
      %v3209 = vunpack.c.l.b16 %v2703
      %v3210 = vunpack.c.l.b16 %v2704
      %v3211 = vunpack.c.l.b16 %v2705
      %v3212 = vunpack.c.l.b16 %v2706
      %v3213 = vunpack.c.l.b16 %v2707
      %v3214 = vunpack.c.l.b16 %v2708
      %v3215 = vunpack.c.l.b16 %v2709
      %v3216 = vunpack.c.l.b16 %v2710
      %v3217 = vunpack.c.l.b16 %v2711
      %v3218 = vunpack.c.l.b16 %v2712
      %v3219 = vunpack.c.l.b16 %v2713
      %v3220 = vunpack.c.l.b16 %v2714
      %v3221 = vunpack.c.l.b16 %v2715
      %v3222 = vunpack.c.l.b16 %v2716
      %v3223 = vunpack.c.l.b16 %v2717
      %v3224 = vunpack.c.l.b16 %v2718
      %v3225 = vunpack.c.l.b16 %v2719
      %v3226 = vunpack.c.l.b16 %v2720
      %v3227 = vunpack.c.l.b16 %v2721
      %v3228 = vunpack.c.l.b16 %v2722
      %v3229 = vunpack.c.l.b16 %v2723
      %v3230 = vunpack.c.l.b16 %v2724
      %v3231 = vunpack.c.l.b16 %v2725
      %v3232 = vunpack.c.l.b16 %v2726
      %v3233 = vunpack.c.l.b16 %v2727
      %v3234 = vunpack.c.l.b16 %v2728
      %v3235 = vunpack.c.l.b16 %v2729
      %v3236 = vunpack.c.l.b16 %v2730
      %v3237 = vunpack.c.l.b16 %v2731
      %v3238 = vunpack.c.l.b16 %v2732
      %v3239 = vunpack.c.l.b16 %v2733
      %v3240 = vunpack.c.l.b16 %v2734
      %v3241 = vunpack.c.l.b16 %v2735
      %v3242 = vunpack.c.l.b16 %v2736
      %v3243 = vunpack.c.l.b16 %v2737
      %v3244 = vunpack.c.l.b16 %v2738
      %v3245 = vunpack.c.l.b16 %v2739
      %v3246 = vunpack.c.l.b16 %v2740
      %v3247 = vunpack.c.l.b16 %v2741
      %v3248 = vunpack.c.l.b16 %v2742
      %v3249 = vunpack.c.l.b16 %v2743
      %v3250 = vpack.c.b16 %v3203, %v3202
      %v3251 = vpack.c.b16 %v3205, %v3204
      %v3252 = vpack.c.b16 %v3207, %v3206
      %v3253 = vpack.c.b16 %v3209, %v3208
      %v3254 = vpack.c.b16 %v3211, %v3210
      %v3255 = vpack.c.b16 %v3213, %v3212
      %v3256 = vpack.c.b16 %v3215, %v3214
      %v3257 = vpack.c.b16 %v3217, %v3216
      %v3258 = vpack.c.b16 %v3219, %v3218
      %v3259 = vpack.c.b16 %v3221, %v3220
      %v3260 = vpack.c.b16 %v3223, %v3222
      %v3261 = vpack.c.b16 %v3225, %v3224
      %v3262 = vpack.c.b16 %v3227, %v3226
      %v3263 = vpack.c.b16 %v3229, %v3228
      %v3264 = vpack.c.b16 %v3231, %v3230
      %v3265 = vpack.c.b16 %v3233, %v3232
      %v3266 = vpack.c.b16 %v3235, %v3234
      %v3267 = vpack.c.b16 %v3237, %v3236
      %v3268 = vpack.c.b16 %v3239, %v3238
      %v3269 = vpack.c.b16 %v3241, %v3240
      %v3270 = vpack.c.b16 %v3243, %v3242
      %v3271 = vpack.c.b16 %v3245, %v3244
      %v3272 = vpack.c.b16 %v3247, %v3246
      %v3273 = vpack.c.b16 %v3249, %v3248
      %3298 = vmatprep.subr.bf16.mxu0 0
      %3299 = vmatpush1.bf16.msra.mxu0 %v3250
      %3300 = vmatprep.subr.bf16.mxu0 0
      %3301 = vmatpush1.bf16.msra.mxu0 %v3251
      %3302 = vmatprep.subr.bf16.mxu0 0
      %3303 = vmatpush1.bf16.msra.mxu0 %v3252
      %3304 = vmatprep.subr.bf16.mxu0 0
      %3305 = vmatpush1.bf16.msra.mxu0 %v3253
      %3306 = vmatprep.subr.bf16.mxu0 0
      %3307 = vmatpush1.bf16.msra.mxu0 %v3254
      %3308 = vmatprep.subr.bf16.mxu0 0
      %3309 = vmatpush1.bf16.msra.mxu0 %v3255
      %3310 = vmatprep.subr.bf16.mxu0 0
      %3311 = vmatpush1.bf16.msra.mxu0 %v3256
      %3312 = vmatprep.subr.bf16.mxu0 0
      %3313 = vmatpush1.bf16.msra.mxu0 %v3257
      %3314 = vmatprep.subr.bf16.mxu0 0
      %3315 = vmatpush1.bf16.msra.mxu0 %v3258
      %3316 = vmatprep.subr.bf16.mxu0 0
      %3317 = vmatpush1.bf16.msra.mxu0 %v3259
      %3318 = vmatprep.subr.bf16.mxu0 0
      %3319 = vmatpush1.bf16.msra.mxu0 %v3260
      %3320 = vmatprep.subr.bf16.mxu0 0
      %3321 = vmatpush1.bf16.msra.mxu0 %v3261
      %3322 = vmatprep.subr.bf16.mxu0 0
      %3323 = vmatpush1.bf16.msra.mxu0 %v3262
      %3324 = vmatprep.subr.bf16.mxu0 0
      %3325 = vmatpush1.bf16.msra.mxu0 %v3263
      %3326 = vmatprep.subr.bf16.mxu0 0
      %3327 = vmatpush1.bf16.msra.mxu0 %v3264
      %3328 = vmatprep.subr.bf16.mxu0 0
      %3329 = vmatpush1.bf16.msra.mxu0 %v3265
      %3330 = vmatprep.mubr.bf16.mxu0 %v2673
      %3331 = vmatmul.mubr.bf16.gmra.mrb[0].mxu0 %v2672
      %v3332 = vpop.f32.mrb[0].mxu0
      %v3333 = vadd.f32 %v3092, %v3332
      %v3334 = vpop.f32.mrb[0].mxu0
      %v3335 = vpop.f32.mrb[0].mxu0
      %v3336 = vadd.f32 %v3095, %v3335
      %v3337 = vpop.f32.mrb[0].mxu0
      %3338 = vmatprep.mubr.bf16.mxu0 %v2676
      %3339 = vmatmul.mubr.bf16.gmra.mrb[0].mxu0 %v2675
      %v3340 = vpop.f32.mrb[0].mxu0
      %v3341 = vadd.f32 %v3100, %v3340
      %v3342 = vpop.f32.mrb[0].mxu0
      %v3343 = vpop.f32.mrb[0].mxu0
      %v3344 = vadd.f32 %v3103, %v3343
      %v3345 = vpop.f32.mrb[0].mxu0
      %3346 = vmatprep.mubr.bf16.mxu0 %v2679
      %3347 = vmatmul.mubr.bf16.gmra.mrb[0].mxu0 %v2678
      %v3348 = vpop.f32.mrb[0].mxu0
      %v3349 = vadd.f32 %v3108, %v3348
      %v3350 = vpop.f32.mrb[0].mxu0
      %v3351 = vpop.f32.mrb[0].mxu0
      %v3352 = vadd.f32 %v3111, %v3351
      %v3353 = vpop.f32.mrb[0].mxu0
      %3354 = vmatprep.mubr.bf16.mxu0 %v2682
      %3355 = vmatmul.mubr.bf16.gmra.mrb[0].mxu0 %v2681
      %v3356 = vpop.f32.mrb[0].mxu0
      %v3357 = vadd.f32 %v3116, %v3356
      %v3358 = vpop.f32.mrb[0].mxu0
      %v3359 = vpop.f32.mrb[0].mxu0
      %v3360 = vadd.f32 %v3119, %v3359
      %v3361 = vpop.f32.mrb[0].mxu0
      %3362 = vmatprep.mubr.bf16.mxu0 %v2685
      %3363 = vmatmul.mubr.bf16.gmra.mrb[0].mxu0 %v2684
      %v3364 = vpop.f32.mrb[0].mxu0
      %v3365 = vadd.f32 %v3124, %v3364
      %v3366 = vpop.f32.mrb[0].mxu0
      %v3367 = vpop.f32.mrb[0].mxu0
      %v3368 = vadd.f32 %v3127, %v3367
      %v3369 = vpop.f32.mrb[0].mxu0
      %3370 = vmatprep.mubr.bf16.mxu0 %v2688
      %3371 = vmatmul.mubr.bf16.gmra.mrb[0].mxu0 %v2687
      %v3372 = vpop.f32.mrb[0].mxu0
      %v3373 = vadd.f32 %v3132, %v3372
      %v3374 = vpop.f32.mrb[0].mxu0
      %v3375 = vpop.f32.mrb[0].mxu0
      %v3376 = vadd.f32 %v3135, %v3375
      %v3377 = vpop.f32.mrb[0].mxu0
      %3378 = vmatprep.mubr.bf16.mxu0 %v2691
      %3379 = vmatmul.mubr.bf16.gmra.mrb[0].mxu0 %v2690
      %v3380 = vpop.f32.mrb[0].mxu0
      %v3381 = vadd.f32 %v3140, %v3380
      %v3382 = vpop.f32.mrb[0].mxu0
      %v3383 = vpop.f32.mrb[0].mxu0
      %v3384 = vadd.f32 %v3143, %v3383
      %v3385 = vpop.f32.mrb[0].mxu0
      %3386 = vmatprep.mubr.bf16.mxu0 %v2694
      %3387 = vmatmul.mubr.bf16.gmra.mrb[0].mxu0 %v2693
      %v3388 = vpop.f32.mrb[0].mxu0
      %v3389 = vadd.f32 %v3148, %v3388
      %v3390 = vpop.f32.mrb[0].mxu0
      %v3391 = vpop.f32.mrb[0].mxu0
      %v3392 = vadd.f32 %v3151, %v3391
      %v3393 = vpop.f32.mrb[0].mxu0
      %3394 = vdwg.mxu0
      %3395 = vmatprep.subr.bf16.mxu0 0
      %3396 = vmatpush1.bf16.msra.mxu0 %v3266
      %3397 = vmatprep.subr.bf16.mxu0 0
      %3398 = vmatpush1.bf16.msra.mxu0 %v3267
      %3399 = vmatprep.subr.bf16.mxu0 0
      %3400 = vmatpush1.bf16.msra.mxu0 %v3268
      %3401 = vmatprep.subr.bf16.mxu0 0
      %3402 = vmatpush1.bf16.msra.mxu0 %v3269
      %3403 = vmatprep.subr.bf16.mxu0 0
      %3404 = vmatpush1.bf16.msra.mxu0 %v3270
      %3405 = vmatprep.subr.bf16.mxu0 0
      %3406 = vmatpush1.bf16.msra.mxu0 %v3271
      %3407 = vmatprep.subr.bf16.mxu0 0
      %3408 = vmatpush1.bf16.msra.mxu0 %v3272
      %3409 = vmatprep.subr.bf16.mxu0 0
      %3410 = vmatpush1.bf16.msra.mxu0 %v3273
      %3411 = vmatprep.subr.bf16.mxu0 0
      %3412 = vmatpush1.bf16.msra.mxu0 0
      %3413 = vmatprep.subr.bf16.mxu0 0
      %3414 = vmatpush1.bf16.msra.mxu0 0
      %3415 = vmatprep.subr.bf16.mxu0 0
      %3416 = vmatpush1.bf16.msra.mxu0 0
      %3417 = vmatprep.subr.bf16.mxu0 0
      %3418 = vmatpush1.bf16.msra.mxu0 0
      %3419 = vmatprep.subr.bf16.mxu0 0
      %3420 = vmatpush1.bf16.msra.mxu0 0
      %3421 = vmatprep.subr.bf16.mxu0 0
      %3422 = vmatpush1.bf16.msra.mxu0 0
      %3423 = vmatprep.subr.bf16.mxu0 0
      %3424 = vmatpush1.bf16.msra.mxu0 0
      %3425 = vmatprep.subr.bf16.mxu0 0
      %3426 = vmatpush1.bf16.msra.mxu0 0
      %3427 = vmatprep.mubr.bf16.mxu0 0
      %3428 = vmatmul.mubr.bf16.gmra.mrb[0].mxu0 %v2674
      %v3429 = vpop.f32.mrb[0].mxu0
      %v3430 = vadd.f32 %v3333, %v3429
      %v3431 = vpop.f32.mrb[0].mxu0
      %v3432 = vpop.f32.mrb[0].mxu0
      %v3433 = vadd.f32 %v3336, %v3432
      %v3434 = vpop.f32.mrb[0].mxu0
      %3435 = vmatprep.mubr.bf16.mxu0 0
      %3436 = vmatmul.mubr.bf16.gmra.mrb[0].mxu0 %v2677
      %v3437 = vpop.f32.mrb[0].mxu0
      %v3438 = vadd.f32 %v3341, %v3437
      %v3439 = vpop.f32.mrb[0].mxu0
      %v3440 = vpop.f32.mrb[0].mxu0
      %v3441 = vadd.f32 %v3344, %v3440
      %v3442 = vpop.f32.mrb[0].mxu0
      %3443 = vmatprep.mubr.bf16.mxu0 0
      %3444 = vmatmul.mubr.bf16.gmra.mrb[0].mxu0 %v2680
      %v3445 = vpop.f32.mrb[0].mxu0
      %v3446 = vadd.f32 %v3349, %v3445
      %v3447 = vpop.f32.mrb[0].mxu0
      %v3448 = vpop.f32.mrb[0].mxu0
      %v3449 = vadd.f32 %v3352, %v3448
      %v3450 = vpop.f32.mrb[0].mxu0
      %3451 = vmatprep.mubr.bf16.mxu0 0
      %3452 = vmatmul.mubr.bf16.gmra.mrb[0].mxu0 %v2683
      %v3453 = vpop.f32.mrb[0].mxu0
      %v3454 = vadd.f32 %v3357, %v3453
      %v3455 = vpop.f32.mrb[0].mxu0
      %v3456 = vpop.f32.mrb[0].mxu0
      %v3457 = vadd.f32 %v3360, %v3456
      %v3458 = vpop.f32.mrb[0].mxu0
      %3459 = vmatprep.mubr.bf16.mxu0 0
      %3460 = vmatmul.mubr.bf16.gmra.mrb[0].mxu0 %v2686
      %v3461 = vpop.f32.mrb[0].mxu0
      %v3462 = vadd.f32 %v3365, %v3461
      %v3463 = vpop.f32.mrb[0].mxu0
      %v3464 = vpop.f32.mrb[0].mxu0
      %v3465 = vadd.f32 %v3368, %v3464
      %v3466 = vpop.f32.mrb[0].mxu0
      %3467 = vmatprep.mubr.bf16.mxu0 0
      %3468 = vmatmul.mubr.bf16.gmra.mrb[0].mxu0 %v2689
      %v3469 = vpop.f32.mrb[0].mxu0
      %v3470 = vadd.f32 %v3373, %v3469
      %v3471 = vpop.f32.mrb[0].mxu0
      %v3472 = vpop.f32.mrb[0].mxu0
      %v3473 = vadd.f32 %v3376, %v3472
      %v3474 = vpop.f32.mrb[0].mxu0
      %3475 = vmatprep.mubr.bf16.mxu0 0
      %3476 = vmatmul.mubr.bf16.gmra.mrb[0].mxu0 %v2692
      %v3477 = vpop.f32.mrb[0].mxu0
      %v3478 = vadd.f32 %v3381, %v3477
      %v3479 = vpop.f32.mrb[0].mxu0
      %v3480 = vpop.f32.mrb[0].mxu0
      %v3481 = vadd.f32 %v3384, %v3480
      %v3482 = vpop.f32.mrb[0].mxu0
      %3483 = vmatprep.mubr.bf16.mxu0 0
      %3484 = vmatmul.mubr.bf16.gmra.mrb[0].mxu0 %v2695
      %v3485 = vpop.f32.mrb[0].mxu0
      %v3486 = vadd.f32 %v3389, %v3485
      %v3487 = vpop.f32.mrb[0].mxu0
      %v3488 = vpop.f32.mrb[0].mxu0
      %v3489 = vadd.f32 %v3392, %v3488
      %v3490 = vpop.f32.mrb[0].mxu0
      %3491 = vdwg.mxu0
      %s3492 = scalar_lea.vmem [#allocation2], 240
      %v3493 = vld [vmem:[%s3492] sm:$0xff]
      %v3494 = vld [vmem:[%s3492 + $0x8] sm:$0xff]
      %v3495 = vld [vmem:[%s3492 + $0x10] sm:$0xff]
      %v3496 = vld [vmem:[%s3492 + $0x18] sm:$0xff]
      %v3497 = vld [vmem:[%s3492 + $0x20] sm:$0xff]
      %v3498 = vld [vmem:[%s3492 + $0x28] sm:$0xff]
      %v3499 = vld [vmem:[%s3492 + $0x30] sm:$0xff]
      %v3500 = vld [vmem:[%s3492 + $0x38] sm:$0xff]
      %v3501 = vld [vmem:[%s3492 + $0x40] sm:$0xff]
      %v3502 = vld [vmem:[%s3492 + $0x48] sm:$0xff]
      %v3503 = vld [vmem:[%s3492 + $0x50] sm:$0xff]
      %v3504 = vld [vmem:[%s3492 + $0x58] sm:$0xff]
      %v3505 = vld [vmem:[%s3492 + $0x60] sm:$0xff]
      %v3506 = vld [vmem:[%s3492 + $0x68] sm:$0xff]
      %v3507 = vld [vmem:[%s3492 + $0x70] sm:$0xff]
      %v3508 = vld [vmem:[%s3492 + $0x78] sm:$0xff]
      %v3509 = vld [vmem:[%s3492 + $0x80] sm:$0xff]
      %v3510 = vld [vmem:[%s3492 + $0x88] sm:$0xff]
      %v3511 = vld [vmem:[%s3492 + $0x90] sm:$0xff]
      %v3512 = vld [vmem:[%s3492 + $0x98] sm:$0xff]
      %v3513 = vld [vmem:[%s3492 + $0xa0] sm:$0xff]
      %v3514 = vld [vmem:[%s3492 + $0xa8] sm:$0xff]
      %v3515 = vld [vmem:[%s3492 + $0xb0] sm:$0xff]
      %v3516 = vld [vmem:[%s3492 + $0xb8] sm:$0xff]
      %v3517 = vld [vmem:[%s2214] sm:$0xf]
      %v3518 = vld [vmem:[%s2214 + $0x4] sm:$0xf]
      %v3519 = vld [vmem:[%s2214 + $0x8] sm:$0xf]
      %v3520 = vld [vmem:[%s2214 + $0xc] sm:$0xf]
      %v3521 = vld [vmem:[%s2214 + $0x10] sm:$0xf]
      %v3522 = vld [vmem:[%s2214 + $0x14] sm:$0xf]
      %v3523 = vld [vmem:[%s2214 + $0x18] sm:$0xf]
      %v3524 = vld [vmem:[%s2214 + $0x1c] sm:$0xf]
      %v3525 = vld [vmem:[%s2214 + $0x20] sm:$0xf]
      %v3526 = vld [vmem:[%s2214 + $0x24] sm:$0xf]
      %v3527 = vld [vmem:[%s2214 + $0x28] sm:$0xf]
      %v3528 = vld [vmem:[%s2214 + $0x2c] sm:$0xf]
      %v3529 = vld [vmem:[%s2214 + $0x30] sm:$0xf]
      %v3530 = vld [vmem:[%s2214 + $0x34] sm:$0xf]
      %v3531 = vld [vmem:[%s2214 + $0x38] sm:$0xf]
      %v3532 = vld [vmem:[%s2214 + $0x3c] sm:$0xf]
      %v3533 = vld [vmem:[%s2214 + $0x40] sm:$0xf]
      %v3534 = vld [vmem:[%s2214 + $0x44] sm:$0xf]
      %v3535 = vld [vmem:[%s2214 + $0x48] sm:$0xf]
      %v3536 = vld [vmem:[%s2214 + $0x4c] sm:$0xf]
      %v3537 = vld [vmem:[%s2214 + $0x50] sm:$0xf]
      %v3538 = vld [vmem:[%s2214 + $0x54] sm:$0xf]
      %v3539 = vld [vmem:[%s2214 + $0x58] sm:$0xf]
      %v3540 = vld [vmem:[%s2214 + $0x5c] sm:$0xf]
      %v3541 = vld [vmem:[%s2214 + $0x60] sm:$0xf]
      %v3542 = vld [vmem:[%s2214 + $0x64] sm:$0xf]
      %v3543 = vld [vmem:[%s2214 + $0x68] sm:$0xf]
      %v3544 = vld [vmem:[%s2214 + $0x6c] sm:$0xf]
      %v3545 = vld [vmem:[%s2214 + $0x70] sm:$0xf]
      %v3546 = vld [vmem:[%s2214 + $0x74] sm:$0xf]
      %v3547 = vld [vmem:[%s2214 + $0x78] sm:$0xf]
      %v3548 = vld [vmem:[%s2214 + $0x7c] sm:$0xf]
      %v3549 = vld [vmem:[%s2214 + $0x80] sm:$0xf]
      %v3550 = vld [vmem:[%s2214 + $0x84] sm:$0xf]
      %v3551 = vld [vmem:[%s2214 + $0x88] sm:$0xf]
      %v3552 = vld [vmem:[%s2214 + $0x8c] sm:$0xf]
      %v3553 = vld [vmem:[%s2214 + $0x90] sm:$0xf]
      %v3554 = vld [vmem:[%s2214 + $0x94] sm:$0xf]
      %v3555 = vld [vmem:[%s2214 + $0x98] sm:$0xf]
      %v3556 = vld [vmem:[%s2214 + $0x9c] sm:$0xf]
      %v3557 = vld [vmem:[%s2214 + $0xa0] sm:$0xf]
      %v3558 = vld [vmem:[%s2214 + $0xa4] sm:$0xf]
      %v3559 = vld [vmem:[%s2214 + $0xa8] sm:$0xf]
      %v3560 = vld [vmem:[%s2214 + $0xac] sm:$0xf]
      %v3561 = vld [vmem:[%s2214 + $0xb0] sm:$0xf]
      %v3562 = vld [vmem:[%s2214 + $0xb4] sm:$0xf]
      %v3563 = vld [vmem:[%s2214 + $0xb8] sm:$0xf]
      %v3564 = vld [vmem:[%s2214 + $0xbc] sm:$0xf]
      %v3613 = vunpack.c.l.b16 %v3517
      %v3614 = vunpack.c.l.b16 %v3518
      %v3615 = vunpack.c.l.b16 %v3519
      %v3616 = vunpack.c.l.b16 %v3520
      %v3617 = vunpack.c.l.b16 %v3521
      %v3618 = vunpack.c.l.b16 %v3522
      %v3619 = vunpack.c.l.b16 %v3523
      %v3620 = vunpack.c.l.b16 %v3524
      %v3621 = vunpack.c.l.b16 %v3525
      %v3622 = vunpack.c.l.b16 %v3526
      %v3623 = vunpack.c.l.b16 %v3527
      %v3624 = vunpack.c.l.b16 %v3528
      %v3625 = vunpack.c.l.b16 %v3529
      %v3626 = vunpack.c.l.b16 %v3530
      %v3627 = vunpack.c.l.b16 %v3531
      %v3628 = vunpack.c.l.b16 %v3532
      %v3629 = vunpack.c.l.b16 %v3533
      %v3630 = vunpack.c.l.b16 %v3534
      %v3631 = vunpack.c.l.b16 %v3535
      %v3632 = vunpack.c.l.b16 %v3536
      %v3633 = vunpack.c.l.b16 %v3537
      %v3634 = vunpack.c.l.b16 %v3538
      %v3635 = vunpack.c.l.b16 %v3539
      %v3636 = vunpack.c.l.b16 %v3540
      %v3637 = vunpack.c.l.b16 %v3541
      %v3638 = vunpack.c.l.b16 %v3542
      %v3639 = vunpack.c.l.b16 %v3543
      %v3640 = vunpack.c.l.b16 %v3544
      %v3641 = vunpack.c.l.b16 %v3545
      %v3642 = vunpack.c.l.b16 %v3546
      %v3643 = vunpack.c.l.b16 %v3547
      %v3644 = vunpack.c.l.b16 %v3548
      %v3645 = vunpack.c.l.b16 %v3549
      %v3646 = vunpack.c.l.b16 %v3550
      %v3647 = vunpack.c.l.b16 %v3551
      %v3648 = vunpack.c.l.b16 %v3552
      %v3649 = vunpack.c.l.b16 %v3553
      %v3650 = vunpack.c.l.b16 %v3554
      %v3651 = vunpack.c.l.b16 %v3555
      %v3652 = vunpack.c.l.b16 %v3556
      %v3653 = vunpack.c.l.b16 %v3557
      %v3654 = vunpack.c.l.b16 %v3558
      %v3655 = vunpack.c.l.b16 %v3559
      %v3656 = vunpack.c.l.b16 %v3560
      %v3657 = vunpack.c.l.b16 %v3561
      %v3658 = vunpack.c.l.b16 %v3562
      %v3659 = vunpack.c.l.b16 %v3563
      %v3660 = vunpack.c.l.b16 %v3564
      %v3661 = vpack.c.b16 %v3614, %v3613
      %v3662 = vpack.c.b16 %v3616, %v3615
      %v3663 = vpack.c.b16 %v3618, %v3617
      %v3664 = vpack.c.b16 %v3620, %v3619
      %v3665 = vpack.c.b16 %v3622, %v3621
      %v3666 = vpack.c.b16 %v3624, %v3623
      %v3667 = vpack.c.b16 %v3626, %v3625
      %v3668 = vpack.c.b16 %v3628, %v3627
      %v3669 = vpack.c.b16 %v3630, %v3629
      %v3670 = vpack.c.b16 %v3632, %v3631
      %v3671 = vpack.c.b16 %v3634, %v3633
      %v3672 = vpack.c.b16 %v3636, %v3635
      %v3673 = vpack.c.b16 %v3638, %v3637
      %v3674 = vpack.c.b16 %v3640, %v3639
      %v3675 = vpack.c.b16 %v3642, %v3641
      %v3676 = vpack.c.b16 %v3644, %v3643
      %v3677 = vpack.c.b16 %v3646, %v3645
      %v3678 = vpack.c.b16 %v3648, %v3647
      %v3679 = vpack.c.b16 %v3650, %v3649
      %v3680 = vpack.c.b16 %v3652, %v3651
      %v3681 = vpack.c.b16 %v3654, %v3653
      %v3682 = vpack.c.b16 %v3656, %v3655
      %v3683 = vpack.c.b16 %v3658, %v3657
      %v3684 = vpack.c.b16 %v3660, %v3659
      %3709 = vmatprep.subr.bf16.mxu0 0
      %3710 = vmatpush1.bf16.msra.mxu0 %v3661
      %3711 = vmatprep.subr.bf16.mxu0 0
      %3712 = vmatpush1.bf16.msra.mxu0 %v3662
      %3713 = vmatprep.subr.bf16.mxu0 0
      %3714 = vmatpush1.bf16.msra.mxu0 %v3663
      %3715 = vmatprep.subr.bf16.mxu0 0
      %3716 = vmatpush1.bf16.msra.mxu0 %v3664
      %3717 = vmatprep.subr.bf16.mxu0 0
      %3718 = vmatpush1.bf16.msra.mxu0 %v3665
      %3719 = vmatprep.subr.bf16.mxu0 0
      %3720 = vmatpush1.bf16.msra.mxu0 %v3666
      %3721 = vmatprep.subr.bf16.mxu0 0
      %3722 = vmatpush1.bf16.msra.mxu0 %v3667
      %3723 = vmatprep.subr.bf16.mxu0 0
      %3724 = vmatpush1.bf16.msra.mxu0 %v3668
      %3725 = vmatprep.subr.bf16.mxu0 0
      %3726 = vmatpush1.bf16.msra.mxu0 %v3669
      %3727 = vmatprep.subr.bf16.mxu0 0
      %3728 = vmatpush1.bf16.msra.mxu0 %v3670
      %3729 = vmatprep.subr.bf16.mxu0 0
      %3730 = vmatpush1.bf16.msra.mxu0 %v3671
      %3731 = vmatprep.subr.bf16.mxu0 0
      %3732 = vmatpush1.bf16.msra.mxu0 %v3672
      %3733 = vmatprep.subr.bf16.mxu0 0
      %3734 = vmatpush1.bf16.msra.mxu0 %v3673
      %3735 = vmatprep.subr.bf16.mxu0 0
      %3736 = vmatpush1.bf16.msra.mxu0 %v3674
      %3737 = vmatprep.subr.bf16.mxu0 0
      %3738 = vmatpush1.bf16.msra.mxu0 %v3675
      %3739 = vmatprep.subr.bf16.mxu0 0
      %3740 = vmatpush1.bf16.msra.mxu0 %v3676
      %3741 = vmatprep.mubr.bf16.mxu0 %v3494
      %3742 = vmatmul.mubr.bf16.gmra.mrb[0].mxu0 %v3493
      %v3743 = vpop.f32.mrb[0].mxu0
      %v3744 = vadd.f32 0.0, %v3743
      %v3745 = vpop.f32.mrb[0].mxu0
      %v3746 = vpop.f32.mrb[0].mxu0
      %v3747 = vadd.f32 0.0, %v3746
      %v3748 = vpop.f32.mrb[0].mxu0
      %3749 = vmatprep.mubr.bf16.mxu0 %v3497
      %3750 = vmatmul.mubr.bf16.gmra.mrb[0].mxu0 %v3496
      %v3751 = vpop.f32.mrb[0].mxu0
      %v3752 = vadd.f32 0.0, %v3751
      %v3753 = vpop.f32.mrb[0].mxu0
      %v3754 = vpop.f32.mrb[0].mxu0
      %v3755 = vadd.f32 0.0, %v3754
      %v3756 = vpop.f32.mrb[0].mxu0
      %3757 = vmatprep.mubr.bf16.mxu0 %v3500
      %3758 = vmatmul.mubr.bf16.gmra.mrb[0].mxu0 %v3499
      %v3759 = vpop.f32.mrb[0].mxu0
      %v3760 = vadd.f32 0.0, %v3759
      %v3761 = vpop.f32.mrb[0].mxu0
      %v3762 = vpop.f32.mrb[0].mxu0
      %v3763 = vadd.f32 0.0, %v3762
      %v3764 = vpop.f32.mrb[0].mxu0
      %3765 = vmatprep.mubr.bf16.mxu0 %v3503
      %3766 = vmatmul.mubr.bf16.gmra.mrb[0].mxu0 %v3502
      %v3767 = vpop.f32.mrb[0].mxu0
      %v3768 = vadd.f32 0.0, %v3767
      %v3769 = vpop.f32.mrb[0].mxu0
      %v3770 = vpop.f32.mrb[0].mxu0
      %v3771 = vadd.f32 0.0, %v3770
      %v3772 = vpop.f32.mrb[0].mxu0
      %3773 = vmatprep.mubr.bf16.mxu0 %v3506
      %3774 = vmatmul.mubr.bf16.gmra.mrb[0].mxu0 %v3505
      %v3775 = vpop.f32.mrb[0].mxu0
      %v3776 = vadd.f32 0.0, %v3775
      %v3777 = vpop.f32.mrb[0].mxu0
      %v3778 = vpop.f32.mrb[0].mxu0
      %v3779 = vadd.f32 0.0, %v3778
      %v3780 = vpop.f32.mrb[0].mxu0
      %3781 = vmatprep.mubr.bf16.mxu0 %v3509
      %3782 = vmatmul.mubr.bf16.gmra.mrb[0].mxu0 %v3508
      %v3783 = vpop.f32.mrb[0].mxu0
      %v3784 = vadd.f32 0.0, %v3783
      %v3785 = vpop.f32.mrb[0].mxu0
      %v3786 = vpop.f32.mrb[0].mxu0
      %v3787 = vadd.f32 0.0, %v3786
      %v3788 = vpop.f32.mrb[0].mxu0
      %3789 = vmatprep.mubr.bf16.mxu0 %v3512
      %3790 = vmatmul.mubr.bf16.gmra.mrb[0].mxu0 %v3511
      %v3791 = vpop.f32.mrb[0].mxu0
      %v3792 = vadd.f32 0.0, %v3791
      %v3793 = vpop.f32.mrb[0].mxu0
      %v3794 = vpop.f32.mrb[0].mxu0
      %v3795 = vadd.f32 0.0, %v3794
      %v3796 = vpop.f32.mrb[0].mxu0
      %3797 = vmatprep.mubr.bf16.mxu0 %v3515
      %3798 = vmatmul.mubr.bf16.gmra.mrb[0].mxu0 %v3514
      %v3799 = vpop.f32.mrb[0].mxu0
      %v3800 = vadd.f32 0.0, %v3799
      %v3801 = vpop.f32.mrb[0].mxu0
      %v3802 = vpop.f32.mrb[0].mxu0
      %v3803 = vadd.f32 0.0, %v3802
      %v3804 = vpop.f32.mrb[0].mxu0
      %3805 = vdwg.mxu0
      %3806 = vmatprep.subr.bf16.mxu0 0
      %3807 = vmatpush1.bf16.msra.mxu0 %v3677
      %3808 = vmatprep.subr.bf16.mxu0 0
      %3809 = vmatpush1.bf16.msra.mxu0 %v3678
      %3810 = vmatprep.subr.bf16.mxu0 0
      %3811 = vmatpush1.bf16.msra.mxu0 %v3679
      %3812 = vmatprep.subr.bf16.mxu0 0
      %3813 = vmatpush1.bf16.msra.mxu0 %v3680
      %3814 = vmatprep.subr.bf16.mxu0 0
      %3815 = vmatpush1.bf16.msra.mxu0 %v3681
      %3816 = vmatprep.subr.bf16.mxu0 0
      %3817 = vmatpush1.bf16.msra.mxu0 %v3682
      %3818 = vmatprep.subr.bf16.mxu0 0
      %3819 = vmatpush1.bf16.msra.mxu0 %v3683
      %3820 = vmatprep.subr.bf16.mxu0 0
      %3821 = vmatpush1.bf16.msra.mxu0 %v3684
      %3822 = vmatprep.subr.bf16.mxu0 0
      %3823 = vmatpush1.bf16.msra.mxu0 0
      %3824 = vmatprep.subr.bf16.mxu0 0
      %3825 = vmatpush1.bf16.msra.mxu0 0
      %3826 = vmatprep.subr.bf16.mxu0 0
      %3827 = vmatpush1.bf16.msra.mxu0 0
      %3828 = vmatprep.subr.bf16.mxu0 0
      %3829 = vmatpush1.bf16.msra.mxu0 0
      %3830 = vmatprep.subr.bf16.mxu0 0
      %3831 = vmatpush1.bf16.msra.mxu0 0
      %3832 = vmatprep.subr.bf16.mxu0 0
      %3833 = vmatpush1.bf16.msra.mxu0 0
      %3834 = vmatprep.subr.bf16.mxu0 0
      %3835 = vmatpush1.bf16.msra.mxu0 0
      %3836 = vmatprep.subr.bf16.mxu0 0
      %3837 = vmatpush1.bf16.msra.mxu0 0
      %3838 = vmatprep.mubr.bf16.mxu0 0
      %3839 = vmatmul.mubr.bf16.gmra.mrb[0].mxu0 %v3495
      %v3840 = vpop.f32.mrb[0].mxu0
      %v3841 = vadd.f32 %v3744, %v3840
      %v3842 = vpop.f32.mrb[0].mxu0
      %v3843 = vpop.f32.mrb[0].mxu0
      %v3844 = vadd.f32 %v3747, %v3843
      %v3845 = vpop.f32.mrb[0].mxu0
      %3846 = vmatprep.mubr.bf16.mxu0 0
      %3847 = vmatmul.mubr.bf16.gmra.mrb[0].mxu0 %v3498
      %v3848 = vpop.f32.mrb[0].mxu0
      %v3849 = vadd.f32 %v3752, %v3848
      %v3850 = vpop.f32.mrb[0].mxu0
      %v3851 = vpop.f32.mrb[0].mxu0
      %v3852 = vadd.f32 %v3755, %v3851
      %v3853 = vpop.f32.mrb[0].mxu0
      %3854 = vmatprep.mubr.bf16.mxu0 0
      %3855 = vmatmul.mubr.bf16.gmra.mrb[0].mxu0 %v3501
      %v3856 = vpop.f32.mrb[0].mxu0
      %v3857 = vadd.f32 %v3760, %v3856
      %v3858 = vpop.f32.mrb[0].mxu0
      %v3859 = vpop.f32.mrb[0].mxu0
      %v3860 = vadd.f32 %v3763, %v3859
      %v3861 = vpop.f32.mrb[0].mxu0
      %3862 = vmatprep.mubr.bf16.mxu0 0
      %3863 = vmatmul.mubr.bf16.gmra.mrb[0].mxu0 %v3504
      %v3864 = vpop.f32.mrb[0].mxu0
      %v3865 = vadd.f32 %v3768, %v3864
      %v3866 = vpop.f32.mrb[0].mxu0
      %v3867 = vpop.f32.mrb[0].mxu0
      %v3868 = vadd.f32 %v3771, %v3867
      %v3869 = vpop.f32.mrb[0].mxu0
      %3870 = vmatprep.mubr.bf16.mxu0 0
      %3871 = vmatmul.mubr.bf16.gmra.mrb[0].mxu0 %v3507
      %v3872 = vpop.f32.mrb[0].mxu0
      %v3873 = vadd.f32 %v3776, %v3872
      %v3874 = vpop.f32.mrb[0].mxu0
      %v3875 = vpop.f32.mrb[0].mxu0
      %v3876 = vadd.f32 %v3779, %v3875
      %v3877 = vpop.f32.mrb[0].mxu0
      %3878 = vmatprep.mubr.bf16.mxu0 0
      %3879 = vmatmul.mubr.bf16.gmra.mrb[0].mxu0 %v3510
      %v3880 = vpop.f32.mrb[0].mxu0
      %v3881 = vadd.f32 %v3784, %v3880
      %v3882 = vpop.f32.mrb[0].mxu0
      %v3883 = vpop.f32.mrb[0].mxu0
      %v3884 = vadd.f32 %v3787, %v3883
      %v3885 = vpop.f32.mrb[0].mxu0
      %3886 = vmatprep.mubr.bf16.mxu0 0
      %3887 = vmatmul.mubr.bf16.gmra.mrb[0].mxu0 %v3513
      %v3888 = vpop.f32.mrb[0].mxu0
      %v3889 = vadd.f32 %v3792, %v3888
      %v3890 = vpop.f32.mrb[0].mxu0
      %v3891 = vpop.f32.mrb[0].mxu0
      %v3892 = vadd.f32 %v3795, %v3891
      %v3893 = vpop.f32.mrb[0].mxu0
      %3894 = vmatprep.mubr.bf16.mxu0 0
      %3895 = vmatmul.mubr.bf16.gmra.mrb[0].mxu0 %v3516
      %v3896 = vpop.f32.mrb[0].mxu0
      %v3897 = vadd.f32 %v3800, %v3896
      %v3898 = vpop.f32.mrb[0].mxu0
      %v3899 = vpop.f32.mrb[0].mxu0
      %v3900 = vadd.f32 %v3803, %v3899
      %v3901 = vpop.f32.mrb[0].mxu0
      %3902 = vdwg.mxu0
      %v3903 = vadd.f32 %v3430, %v3841
      %v3904 = vadd.f32 %v3433, %v3844
      %v3905 = vadd.f32 %v3438, %v3849
      %v3906 = vadd.f32 %v3441, %v3852
      %v3907 = vadd.f32 %v3446, %v3857
      %v3908 = vadd.f32 %v3449, %v3860
      %v3909 = vadd.f32 %v3454, %v3865
      %v3910 = vadd.f32 %v3457, %v3868
      %v3911 = vadd.f32 %v3462, %v3873
      %v3912 = vadd.f32 %v3465, %v3876
      %v3913 = vadd.f32 %v3470, %v3881
      %v3914 = vadd.f32 %v3473, %v3884
      %v3915 = vadd.f32 %v3478, %v3889
      %v3916 = vadd.f32 %v3481, %v3892
      %v3917 = vadd.f32 %v3486, %v3897
      %v3918 = vadd.f32 %v3489, %v3900
      %v3919 = vadd.f32 %v3903, %v2621
      %v3920 = vadd.f32 %v3904, %v2621
      %v3921 = vadd.f32 %v3905, %v2621
      %v3922 = vadd.f32 %v3906, %v2621
      %v3923 = vadd.f32 %v3907, %v2621
      %v3924 = vadd.f32 %v3908, %v2621
      %v3925 = vadd.f32 %v3909, %v2621
      %v3926 = vadd.f32 %v3910, %v2621
      %v3927 = vadd.f32 %v3911, %v2621
      %v3928 = vadd.f32 %v3912, %v2621
      %v3929 = vadd.f32 %v3913, %v2621
      %v3930 = vadd.f32 %v3914, %v2621
      %v3931 = vadd.f32 %v3915, %v2621
      %v3932 = vadd.f32 %v3916, %v2621
      %v3933 = vadd.f32 %v3917, %v2621
      %v3934 = vadd.f32 %v3918, %v2621
      %v3935 = vmax.f32 %v3919, 0.0
      %v3936 = vmax.f32 %v3920, 0.0
      %v3937 = vmax.f32 %v3921, 0.0
      %v3938 = vmax.f32 %v3922, 0.0
      %v3939 = vmax.f32 %v3923, 0.0
      %v3940 = vmax.f32 %v3924, 0.0
      %v3941 = vmax.f32 %v3925, 0.0
      %v3942 = vmax.f32 %v3926, 0.0
      %v3943 = vmax.f32 %v3927, 0.0
      %v3944 = vmax.f32 %v3928, 0.0
      %v3945 = vmax.f32 %v3929, 0.0
      %v3946 = vmax.f32 %v3930, 0.0
      %v3947 = vmax.f32 %v3931, 0.0
      %v3948 = vmax.f32 %v3932, 0.0
      %v3949 = vmax.f32 %v3933, 0.0
      %v3950 = vmax.f32 %v3934, 0.0
      %s3951 = scalar_lea.vmem %s445, 128
      %3952 = vst [vmem:[%s3951] sm:$0xff] %v3935
      %3953 = vst [vmem:[%s3951 + $0x8] sm:$0xff] %v3936
      %3954 = vst [vmem:[%s3951 + $0x10] sm:$0xff] %v3937
      %3955 = vst [vmem:[%s3951 + $0x18] sm:$0xff] %v3938
      %3956 = vst [vmem:[%s3951 + $0x20] sm:$0xff] %v3939
      %3957 = vst [vmem:[%s3951 + $0x28] sm:$0xff] %v3940
      %3958 = vst [vmem:[%s3951 + $0x30] sm:$0xff] %v3941
      %3959 = vst [vmem:[%s3951 + $0x38] sm:$0xff] %v3942
      %3960 = vst [vmem:[%s3951 + $0x40] sm:$0xff] %v3943
      %3961 = vst [vmem:[%s3951 + $0x48] sm:$0xff] %v3944
      %3962 = vst [vmem:[%s3951 + $0x50] sm:$0xff] %v3945
      %3963 = vst [vmem:[%s3951 + $0x58] sm:$0xff] %v3946
      %3964 = vst [vmem:[%s3951 + $0x60] sm:$0xff] %v3947
      %3965 = vst [vmem:[%s3951 + $0x68] sm:$0xff] %v3948
      %3966 = vst [vmem:[%s3951 + $0x70] sm:$0xff] %v3949
      %3967 = vst [vmem:[%s3951 + $0x78] sm:$0xff] %v3950
      %s3968 = smul.u32 16, %s23
      %p3969 = scmp.lt.s32.totalorder %s22, 1
      %s3970 = scalar_select %p3969, %s22, 1
      %p3971 = scmp.lt.s32.totalorder %s3968, 15
      %s3972 = scalar_select %p3971, %s3968, 15
      %s3973 = smul.addr %s3972, 2
      %s3974 = smul.addr %s3970, 32
      %s3975 = sadd.s32 %s3973, %s3974
      %s3976 = smul.addr %s3975, 8
      %s3977 = scalar_lea.vmem %s7, %s3976
      // Predicated region
      $region49: #{inconv_forward.1} parent=47 // pred_check
        %p3978 = pneg %p234
      $region50: #{inconv_forward.1} parent=47 // pred_check_branch
        %3980 = sbr.rel (%p3978) target = $region52
      $region51: #{inconv_forward.1} parent=47 // pred_region
        %s3981 = smul.u32 16, %s23
      $region52: #{inconv_forward.1} parent=47 // pred_fallthru
        _
    $region48: #{inconv_forward.1} parent=5 // pred_fallthru
      _
    %p3982 = scmp.le.s32.totalorder 2, %s13
    // Predicated region
    $region53: #{inconv_forward.1} parent=5 // pred_check
      %p3983 = pneg %p3982
    $region54: #{inconv_forward.1} parent=5 // pred_check_branch
      %3985 = sbr.rel (%p3983) target = $region56
    $region55: #{inconv_forward.1} parent=5 // pred_region
      %s3986 = ssub.s32 %s13, 2
      // Predicated region
      $region57: #{inconv_forward.1} parent=55 // pred_check
        %p3987 = pneg %p240
      $region58: #{inconv_forward.1} parent=55 // pred_check_branch
        %3989 = sbr.rel (%p3987) target = $region60
      $region59: #{inconv_forward.1} parent=55 // pred_region
        %s3990 = smul.u32 16, %s25
        %p3991 = scmp.lt.s32.totalorder %s24, 1
        %s3992 = scalar_select %p3991, %s24, 1
        %p3993 = scmp.lt.s32.totalorder %s3990, 15
        %s3994 = scalar_select %p3993, %s3990, 15
        %s3995 = smul.addr %s3994, 2
        %s3996 = smul.addr %s3992, 32
        %s3997 = sadd.s32 %s3995, %s3996
        %s3998 = smul.addr %s3997, 8
        %s3999 = scalar_lea.vmem %s7, %s3998
      $region60: #{inconv_forward.1} parent=55 // pred_fallthru
        _
    $region56: #{inconv_forward.1} parent=5 // pred_fallthru
      _
  $region6: #{inconv_forward.1} parent=0 // loop_footer
    %s17 = sadd.s32 1, %s13
  $region7: #{inconv_forward.1} parent=0 // loop_footer_branch
    %12 = sbr.rel target = $region3
  $region8: #{inconv_forward.1} parent=0 // loop_exit
    _

</llo_original>
